<compile_context>
chip_gen: v6e
topology: v6e:2x2x1
jax: 0.10.0
libtpu: 0.0.40
codegen_flags: <defaults>
</compile_context>

<pallas_src>
import math
import functools

import jax
import jax.numpy as jnp
from jax.experimental import pallas as pl
from jax.experimental.pallas import tpu as pltpu


# ------------------------- Pallas kernels -------------------------

def _mha_ln_kernel(*refs, nhead, scale, has_mask, has_kpm):
    """Fused multi-head attention sub-layer for one batch item.

    q/k/v projections (per-head weights), softmax attention, output projection,
    residual add and LayerNorm, all on VMEM-resident data.
    """
    it = iter(refs)
    xq_ref = next(it)      # (1, Lq, D) f32
    xkv_ref = next(it)     # (1, Lk, D) f32
    wq_ref = next(it)      # (H, D, dh) bf16
    bq_ref = next(it)      # (H, 1, dh) f32
    wk_ref = next(it)
    bk_ref = next(it)
    wv_ref = next(it)
    bv_ref = next(it)
    wo_ref = next(it)      # (H, dh, D) bf16
    bo_ref = next(it)      # (1, D) f32
    g_ref = next(it)       # (1, D) f32
    b_ref = next(it)       # (1, D) f32
    mask_ref = next(it) if has_mask else None   # (Lq, Lk) f32 additive
    kpm_ref = next(it) if has_kpm else None     # (1, 1, Lk) f32 additive
    o_ref = next(it)       # (1, Lq, D) f32

    xq = xq_ref[0]                       # (Lq, D)
    xkv = xkv_ref[0]                     # (Lk, D)
    xq_b = xq.astype(jnp.bfloat16)
    xkv_b = xkv.astype(jnp.bfloat16)
    Lq, D = xq.shape

    mask = None
    if has_mask:
        mask = mask_ref[...]             # (Lq, Lk)
    if has_kpm:
        kpm = kpm_ref[0]                 # (1, Lk) -> broadcasts over rows
        mask = kpm if mask is None else mask + kpm

    acc = jnp.zeros((Lq, D), jnp.float32)
    for h in range(nhead):               # static unroll; all heads in one call
        q_h = jnp.dot(xq_b, wq_ref[h], preferred_element_type=jnp.float32) + bq_ref[h]
        k_h = jnp.dot(xkv_b, wk_ref[h], preferred_element_type=jnp.float32) + bk_ref[h]
        v_h = jnp.dot(xkv_b, wv_ref[h], preferred_element_type=jnp.float32) + bv_ref[h]

        s = jax.lax.dot_general(
            q_h.astype(jnp.bfloat16), k_h.astype(jnp.bfloat16),
            (((1,), (1,)), ((), ())), preferred_element_type=jnp.float32,
        ) * scale                        # (Lq, Lk) f32
        if mask is not None:
            s = s + mask
        s = s - jnp.max(s, axis=-1, keepdims=True)
        p = jnp.exp(s)
        p = p * pl.reciprocal(jnp.sum(p, axis=-1, keepdims=True), approx=True)

        o_h = jnp.dot(p.astype(jnp.bfloat16), v_h.astype(jnp.bfloat16),
                      preferred_element_type=jnp.float32)           # (Lq, dh)
        acc = acc + jnp.dot(o_h.astype(jnp.bfloat16), wo_ref[h],
                            preferred_element_type=jnp.float32)     # (Lq, D)

    y = xq + acc + bo_ref[...]           # residual + out-proj bias, f32
    mean = jnp.mean(y, axis=-1, keepdims=True)
    yc = y - mean
    var = jnp.mean(yc * yc, axis=-1, keepdims=True)
    o_ref[0] = yc * jax.lax.rsqrt(var + 1e-5) * g_ref[...] + b_ref[...]


def _ffn_ln_kernel(x_ref, w1_ref, b1_ref, w2_ref, b2_ref, g_ref, b_ref, o_ref):
    """Fused FFN sub-layer: linear -> ReLU -> linear -> residual -> LayerNorm."""
    x = x_ref[...]                                                   # (tm, D) f32
    h = jnp.dot(x.astype(jnp.bfloat16), w1_ref[...],
                preferred_element_type=jnp.float32) + b1_ref[...]
    h = jnp.maximum(h, 0.0)
    y = jnp.dot(h.astype(jnp.bfloat16), w2_ref[...],
                preferred_element_type=jnp.float32) + b2_ref[...]
    y = x + y
    mean = jnp.mean(y, axis=-1, keepdims=True)
    yc = y - mean
    var = jnp.mean(yc * yc, axis=-1, keepdims=True)
    o_ref[...] = yc * jax.lax.rsqrt(var + 1e-5) * g_ref[...] + b_ref[...]


def _layernorm_kernel(x_ref, g_ref, b_ref, o_ref):
    x = x_ref[...]
    mean = jnp.mean(x, axis=-1, keepdims=True)
    xc = x - mean
    var = jnp.mean(xc * xc, axis=-1, keepdims=True)
    o_ref[...] = xc * jax.lax.rsqrt(var + 1e-5) * g_ref[...] + b_ref[...]


def _linear_kernel(x_ref, w_ref, b_ref, o_ref):
    o_ref[...] = jnp.dot(x_ref[...].astype(jnp.bfloat16), w_ref[...],
                         preferred_element_type=jnp.float32) + b_ref[...]


# ------------------------- Pallas wrappers -------------------------

def pallas_mha_ln(xq, xkv, p, nhead, attn_mask=None, kpm_add=None):
    """xq: (N, Lq, D), xkv: (N, Lk, D); returns LayerNorm(xq + MHA(xq, xkv))."""
    N, Lq, D = xq.shape
    Lk = xkv.shape[1]
    dh = D // nhead
    scale = 1.0 / math.sqrt(dh)
    has_mask = attn_mask is not None
    has_kpm = kpm_add is not None

    inputs = [xq, xkv, p["wq"], p["bq"], p["wk"], p["bk"], p["wv"], p["bv"],
              p["wo"], p["bo"], p["ln_g"], p["ln_b"]]
    in_specs = [
        pl.BlockSpec((1, Lq, D), lambda n: (n, 0, 0)),
        pl.BlockSpec((1, Lk, D), lambda n: (n, 0, 0)),
        pl.BlockSpec((nhead, D, dh), lambda n: (0, 0, 0)),
        pl.BlockSpec((nhead, 1, dh), lambda n: (0, 0, 0)),
        pl.BlockSpec((nhead, D, dh), lambda n: (0, 0, 0)),
        pl.BlockSpec((nhead, 1, dh), lambda n: (0, 0, 0)),
        pl.BlockSpec((nhead, D, dh), lambda n: (0, 0, 0)),
        pl.BlockSpec((nhead, 1, dh), lambda n: (0, 0, 0)),
        pl.BlockSpec((nhead, dh, D), lambda n: (0, 0, 0)),
        pl.BlockSpec((1, D), lambda n: (0, 0)),
        pl.BlockSpec((1, D), lambda n: (0, 0)),
        pl.BlockSpec((1, D), lambda n: (0, 0)),
    ]
    if has_mask:
        inputs.append(attn_mask.astype(jnp.float32))                 # (Lq, Lk) shared
        in_specs.append(pl.BlockSpec((Lq, Lk), lambda n: (0, 0)))
    if has_kpm:
        inputs.append(kpm_add.reshape(N, 1, Lk))                     # (N, 1, Lk)
        in_specs.append(pl.BlockSpec((1, 1, Lk), lambda n: (n, 0, 0)))

    kernel = functools.partial(_mha_ln_kernel, nhead=nhead, scale=scale,
                               has_mask=has_mask, has_kpm=has_kpm)
    return pl.pallas_call(
        kernel,
        out_shape=jax.ShapeDtypeStruct((N, Lq, D), jnp.float32),
        grid=(N,),
        in_specs=in_specs,
        out_specs=pl.BlockSpec((1, Lq, D), lambda n: (n, 0, 0)),
        compiler_params=pltpu.CompilerParams(dimension_semantics=("parallel",)),
    )(*inputs)


def pallas_ffn_ln(x, w1, b1, w2, b2, g, b):
    M, D = x.shape
    F = w1.shape[1]
    tm = min(M, 256)
    return pl.pallas_call(
        _ffn_ln_kernel,
        out_shape=jax.ShapeDtypeStruct((M, D), jnp.float32),
        grid=(pl.cdiv(M, tm),),
        in_specs=[
            pl.BlockSpec((tm, D), lambda i: (i, 0)),
            pl.BlockSpec((D, F), lambda i: (0, 0)),
            pl.BlockSpec((1, F), lambda i: (0, 0)),
            pl.BlockSpec((F, D), lambda i: (0, 0)),
            pl.BlockSpec((1, D), lambda i: (0, 0)),
            pl.BlockSpec((1, D), lambda i: (0, 0)),
            pl.BlockSpec((1, D), lambda i: (0, 0)),
        ],
        out_specs=pl.BlockSpec((tm, D), lambda i: (i, 0)),
        compiler_params=pltpu.CompilerParams(dimension_semantics=("parallel",)),
    )(x, w1, b1, w2, b2, g, b)


def pallas_layernorm(x, g, b):
    M, D = x.shape
    tm = min(M, 256)
    return pl.pallas_call(
        _layernorm_kernel,
        out_shape=jax.ShapeDtypeStruct((M, D), jnp.float32),
        grid=(pl.cdiv(M, tm),),
        in_specs=[pl.BlockSpec((tm, D), lambda i: (i, 0)),
                  pl.BlockSpec((1, D), lambda i: (0, 0)),
                  pl.BlockSpec((1, D), lambda i: (0, 0))],
        out_specs=pl.BlockSpec((tm, D), lambda i: (i, 0)),
        compiler_params=pltpu.CompilerParams(dimension_semantics=("parallel",)),
    )(x, g, b)


def pallas_linear(x, w, b):
    M, K = x.shape
    Np = w.shape[1]
    tm = min(M, 256)
    return pl.pallas_call(
        _linear_kernel,
        out_shape=jax.ShapeDtypeStruct((M, Np), jnp.float32),
        grid=(pl.cdiv(M, tm),),
        in_specs=[pl.BlockSpec((tm, K), lambda i: (i, 0)),
                  pl.BlockSpec((K, Np), lambda i: (0, 0)),
                  pl.BlockSpec((1, Np), lambda i: (0, 0))],
        out_specs=pl.BlockSpec((tm, Np), lambda i: (i, 0)),
        compiler_params=pltpu.CompilerParams(dimension_semantics=("parallel",)),
    )(x, w, b)


# ------------------------- model pieces (glue in JAX) -------------------------

def positional_encoding(max_len, d_model):
    pos = jnp.arange(max_len, dtype=jnp.float32)[:, None]
    div = jnp.exp(
        jnp.arange(0, d_model, 2, dtype=jnp.float32) * (-math.log(10000.0) / d_model)
    )
    pe = jnp.zeros((max_len, d_model), jnp.float32)
    pe = pe.at[:, 0::2].set(jnp.sin(pos * div))
    pe = pe.at[:, 1::2].set(jnp.cos(pos * div))
    return pe


def encoder_layer(x, p, nhead, src_mask, src_kpm):
    # x: (N, S, D) batch-first
    x = pallas_mha_ln(x, x, p["attn"], nhead, src_mask, src_kpm)
    N, S, D = x.shape
    x = pallas_ffn_ln(x.reshape(N * S, D), p["w1"], p["b1"], p["w2"], p["b2"],
                      p["n2_g"], p["n2_b"]).reshape(N, S, D)
    return x


def decoder_layer(x, mem, p, nhead, tgt_mask, mem_mask, tgt_kpm, mem_kpm):
    x = pallas_mha_ln(x, x, p["self_attn"], nhead, tgt_mask, tgt_kpm)
    x = pallas_mha_ln(x, mem, p["cross_attn"], nhead, mem_mask, mem_kpm)
    N, T, D = x.shape
    x = pallas_ffn_ln(x.reshape(N * T, D), p["w1"], p["b1"], p["w2"], p["b2"],
                      p["n3_g"], p["n3_b"]).reshape(N, T, D)
    return x


def transformer_forward(params, src_ids, tgt_ids, *, nhead, tgt_vocab,
                        src_mask=None, tgt_mask=None, memory_mask=None,
                        src_key_padding_mask=None, tgt_key_padding_mask=None,
                        memory_key_padding_mask=None):
    D = params["pe"].shape[-1]          # static (shape), safe under jit
    sqrt_d = math.sqrt(D)

    # Embedding lookup (XLA gather) + scale + positional encoding; dropout = identity.
    src = jnp.take(params["src_emb"], src_ids, axis=0) * sqrt_d      # (N, S, D)
    tgt = jnp.take(params["tgt_emb"], tgt_ids, axis=0) * sqrt_d      # (N, T, D)
    src = src + params["pe"][None, :src.shape[1], :]
    tgt = tgt + params["pe"][None, :tgt.shape[1], :]

    def kpm_to_add(m):
        # PyTorch bool key_padding_mask (True = pad) -> additive f32 mask.
        return None if m is None else jnp.where(m, -1e9, 0.0).astype(jnp.float32)

    src_kpm = kpm_to_add(src_key_padding_mask)
    tgt_kpm = kpm_to_add(tgt_key_padding_mask)
    mem_kpm = kpm_to_add(memory_key_padding_mask)

    # Encoder stack + final norm.
    mem = src
    for lp in params["enc_layers"]:
        mem = encoder_layer(mem, lp, nhead, src_mask, src_kpm)
    N, S, _ = mem.shape
    mem = pallas_layernorm(mem.reshape(N * S, D),
                           params["enc_norm_g"], params["enc_norm_b"]).reshape(N, S, D)

    # Decoder stack + final norm.
    out = tgt
    for lp in params["dec_layers"]:
        out = decoder_layer(out, mem, lp, nhead, tgt_mask, memory_mask,
                            tgt_kpm, mem_kpm)
    T = out.shape[1]
    out = pallas_layernorm(out.reshape(N * T, D),
                           params["dec_norm_g"], params["dec_norm_b"]).reshape(N, T, D)

    # Output projection to (lane-padded) target vocab; slice back in the wrapper.
    logits = pallas_linear(out.reshape(N * T, D), params["out_w"], params["out_b"])
    logits = logits[:, :tgt_vocab].reshape(N, T, tgt_vocab)
    return jnp.transpose(logits, (1, 0, 2))                          # (T, N, V)


# ------------------------- deterministic param init -------------------------

def init_params(key, src_vocab, tgt_vocab, d_model, nhead,
                num_enc, num_dec, d_ff, max_len=64):
    dh = d_model // nhead
    keys = iter(jax.random.split(key, 256))

    def w(shape, scale=0.02, dtype=jnp.bfloat16):
        return (jax.random.normal(next(keys), shape, jnp.float32) * scale).astype(dtype)

    def attn_params():
        return {
            "wq": w((nhead, d_model, dh)), "bq": jnp.zeros((nhead, 1, dh), jnp.float32),
            "wk": w((nhead, d_model, dh)), "bk": jnp.zeros((nhead, 1, dh), jnp.float32),
            "wv": w((nhead, d_model, dh)), "bv": jnp.zeros((nhead, 1, dh), jnp.float32),
            "wo": w((nhead, dh, d_model)), "bo": jnp.zeros((1, d_model), jnp.float32),
            "ln_g": jnp.ones((1, d_model), jnp.float32),
            "ln_b": jnp.zeros((1, d_model), jnp.float32),
        }

    def enc_layer_params():
        return {
            "attn": attn_params(),
            "w1": w((d_model, d_ff)), "b1": jnp.zeros((1, d_ff), jnp.float32),
            "w2": w((d_ff, d_model)), "b2": jnp.zeros((1, d_model), jnp.float32),
            "n2_g": jnp.ones((1, d_model), jnp.float32),
            "n2_b": jnp.zeros((1, d_model), jnp.float32),
        }

    def dec_layer_params():
        return {
            "self_attn": attn_params(),
            "cross_attn": attn_params(),
            "w1": w((d_model, d_ff)), "b1": jnp.zeros((1, d_ff), jnp.float32),
            "w2": w((d_ff, d_model)), "b2": jnp.zeros((1, d_model), jnp.float32),
            "n3_g": jnp.ones((1, d_model), jnp.float32),
            "n3_b": jnp.zeros((1, d_model), jnp.float32),
        }

    # Lane-pad the vocab projection to a multiple of 128 (lane-dense stores).
    vocab_pad = max(128, ((tgt_vocab + 127) // 128) * 128)
    out_w = jnp.zeros((d_model, vocab_pad), jnp.float32)
    out_w = out_w.at[:, :tgt_vocab].set(
        jax.random.normal(next(keys), (d_model, tgt_vocab), jnp.float32) * 0.02)

    return {
        "src_emb": jax.random.normal(next(keys), (src_vocab, d_model), jnp.float32),
        "tgt_emb": jax.random.normal(next(keys), (tgt_vocab, d_model), jnp.float32),
        "pe": positional_encoding(max_len, d_model),
        "enc_layers": [enc_layer_params() for _ in range(num_enc)],
        "dec_layers": [dec_layer_params() for _ in range(num_dec)],
        "enc_norm_g": jnp.ones((1, d_model), jnp.float32),
        "enc_norm_b": jnp.zeros((1, d_model), jnp.float32),
        "dec_norm_g": jnp.ones((1, d_model), jnp.float32),
        "dec_norm_b": jnp.zeros((1, d_model), jnp.float32),
        "out_w": out_w.astype(jnp.bfloat16),
        "out_b": jnp.zeros((1, vocab_pad), jnp.float32),
    }


def causal_mask(T):
    # Additive float mask: 0 on/below diagonal, -1e9 above (matches
    # nn.Transformer.generate_square_subsequent_mask semantics, -inf -> -1e9).
    return jnp.triu(jnp.ones((T, T), jnp.float32), k=1) * -1e9


# ------------------------- main -------------------------

if __name__ == "__main__":
    # Small, transformer-consistent shapes.
    SRC_VOCAB, TGT_VOCAB = 53, 50
    D_MODEL, NHEAD = 32, 4
    NUM_ENC, NUM_DEC = 2, 2
    D_FF = 64
    N, S, T = 2, 8, 8

    key = jax.random.PRNGKey(0)
    kp, ks, kt = jax.random.split(key, 3)

    params = init_params(kp, SRC_VOCAB, TGT_VOCAB, D_MODEL, NHEAD,
                         NUM_ENC, NUM_DEC, D_FF)

    src_ids = jax.random.randint(ks, (N, S), 0, SRC_VOCAB)   # (N, S)
    tgt_ids = jax.random.randint(kt, (N, T), 0, TGT_VOCAB)   # (N, T)
    tgt_mask = causal_mask(T)                                 # (T, T)

    fwd = jax.jit(functools.partial(transformer_forward,
                                    nhead=NHEAD, tgt_vocab=TGT_VOCAB))
    logits = fwd(params, src_ids, tgt_ids, tgt_mask=tgt_mask)
    logits = jax.block_until_ready(logits)

    assert logits.shape == (T, N, TGT_VOCAB), logits.shape
    assert bool(jnp.all(jnp.isfinite(logits)))
    print("KERNEL_OK")
</pallas_src>

<mosaic_0001>
module attributes {stable_mosaic.version = 11 : i64} {
  func.func @_mha_ln_kernel(%arg0: i32, %arg1: memref<1x8x32xf32, #tpu.memory_space<vmem>>, %arg2: memref<1x8x32xf32, #tpu.memory_space<vmem>>, %arg3: memref<4x32x8xbf16, #tpu.memory_space<vmem>>, %arg4: memref<4x1x8xf32, #tpu.memory_space<vmem>>, %arg5: memref<4x32x8xbf16, #tpu.memory_space<vmem>>, %arg6: memref<4x1x8xf32, #tpu.memory_space<vmem>>, %arg7: memref<4x32x8xbf16, #tpu.memory_space<vmem>>, %arg8: memref<4x1x8xf32, #tpu.memory_space<vmem>>, %arg9: memref<4x8x32xbf16, #tpu.memory_space<vmem>>, %arg10: memref<1x32xf32, #tpu.memory_space<vmem>>, %arg11: memref<1x32xf32, #tpu.memory_space<vmem>>, %arg12: memref<1x32xf32, #tpu.memory_space<vmem>>, %arg13: memref<8x8xf32, #tpu.memory_space<vmem>>, %arg14: memref<1x8x32xf32, #tpu.memory_space<vmem>>) attributes {dimension_semantics = [#tpu.dimension_semantics<parallel>], iteration_bounds = array<i64: 2>, scalar_prefetch = 0 : i64, scratch_operands = 0 : i64, tpu.core_type = #tpu.core_type<tc>, window_params = [{transform_indices = @transform_0, window_bounds = array<i64: 1, 8, 32>}, {transform_indices = @transform_1, window_bounds = array<i64: 1, 8, 32>}, {pipeline_mode = #tpu.pipeline_mode<synchronous>, transform_indices = @transform_2, window_bounds = array<i64: 4, 32, 8>}, {pipeline_mode = #tpu.pipeline_mode<synchronous>, transform_indices = @transform_3, window_bounds = array<i64: 4, 1, 8>}, {pipeline_mode = #tpu.pipeline_mode<synchronous>, transform_indices = @transform_4, window_bounds = array<i64: 4, 32, 8>}, {pipeline_mode = #tpu.pipeline_mode<synchronous>, transform_indices = @transform_5, window_bounds = array<i64: 4, 1, 8>}, {pipeline_mode = #tpu.pipeline_mode<synchronous>, transform_indices = @transform_6, window_bounds = array<i64: 4, 32, 8>}, {pipeline_mode = #tpu.pipeline_mode<synchronous>, transform_indices = @transform_7, window_bounds = array<i64: 4, 1, 8>}, {pipeline_mode = #tpu.pipeline_mode<synchronous>, transform_indices = @transform_8, window_bounds = array<i64: 4, 8, 32>}, {pipeline_mode = #tpu.pipeline_mode<synchronous>, transform_indices = @transform_9, window_bounds = array<i64: 1, 32>}, {pipeline_mode = #tpu.pipeline_mode<synchronous>, transform_indices = @transform_10, window_bounds = array<i64: 1, 32>}, {pipeline_mode = #tpu.pipeline_mode<synchronous>, transform_indices = @transform_11, window_bounds = array<i64: 1, 32>}, {pipeline_mode = #tpu.pipeline_mode<synchronous>, transform_indices = @transform_12, window_bounds = array<i64: 8, 8>}, {transform_indices = @transform_13, window_bounds = array<i64: 1, 8, 32>}]} {
    %c0 = arith.constant 0 : index
    %c0_0 = arith.constant 0 : index
    %c0_1 = arith.constant 0 : index
    %0 = vector.load %arg1[%c0, %c0_0, %c0_1] : memref<1x8x32xf32, #tpu.memory_space<vmem>>, vector<1x8x32xf32>
    %1 = vector.shape_cast %0 : vector<1x8x32xf32> to vector<8x32xf32>
    %c0_2 = arith.constant 0 : index
    %c0_3 = arith.constant 0 : index
    %c0_4 = arith.constant 0 : index
    %2 = vector.load %arg2[%c0_2, %c0_3, %c0_4] : memref<1x8x32xf32, #tpu.memory_space<vmem>>, vector<1x8x32xf32>
    %3 = vector.shape_cast %2 : vector<1x8x32xf32> to vector<8x32xf32>
    %4 = arith.truncf %1 : vector<8x32xf32> to vector<8x32xbf16>
    %5 = arith.truncf %3 : vector<8x32xf32> to vector<8x32xbf16>
    %c0_5 = arith.constant 0 : index
    %c0_6 = arith.constant 0 : index
    %6 = vector.load %arg13[%c0_5, %c0_6] : memref<8x8xf32, #tpu.memory_space<vmem>>, vector<8x8xf32>
    %cst = arith.constant 0.000000e+00 : f32
    %7 = vector.broadcast %cst : f32 to vector<8x32xf32>
    %c0_7 = arith.constant 0 : index
    %c0_8 = arith.constant 0 : index
    %c0_9 = arith.constant 0 : index
    %8 = vector.load %arg3[%c0_7, %c0_8, %c0_9] : memref<4x32x8xbf16, #tpu.memory_space<vmem>>, vector<1x32x8xbf16>
    %9 = vector.shape_cast %8 : vector<1x32x8xbf16> to vector<32x8xbf16>
    %cst_10 = arith.constant dense<0.000000e+00> : vector<8x8xf32>
    %10 = tpu.matmul %4, %9, %cst_10 {dimension_numbers = #tpu.dot_dimension_numbers<[1], [0], [0], [1], [0, 0, 1, 1], [], []>} : vector<8x32xbf16>, vector<32x8xbf16>, vector<8x8xf32> -> vector<8x8xf32>
    %c0_11 = arith.constant 0 : index
    %c0_12 = arith.constant 0 : index
    %c0_13 = arith.constant 0 : index
    %11 = vector.load %arg4[%c0_11, %c0_12, %c0_13] : memref<4x1x8xf32, #tpu.memory_space<vmem>>, vector<1x1x8xf32>
    %12 = vector.shape_cast %11 : vector<1x1x8xf32> to vector<1x8xf32>
    %13 = vector.broadcast %12 : vector<1x8xf32> to vector<8x8xf32>
    %14 = arith.addf %10, %13 : vector<8x8xf32>
    %c0_14 = arith.constant 0 : index
    %c0_15 = arith.constant 0 : index
    %c0_16 = arith.constant 0 : index
    %15 = vector.load %arg5[%c0_14, %c0_15, %c0_16] : memref<4x32x8xbf16, #tpu.memory_space<vmem>>, vector<1x32x8xbf16>
    %16 = vector.shape_cast %15 : vector<1x32x8xbf16> to vector<32x8xbf16>
    %cst_17 = arith.constant dense<0.000000e+00> : vector<8x8xf32>
    %17 = tpu.matmul %5, %16, %cst_17 {dimension_numbers = #tpu.dot_dimension_numbers<[1], [0], [0], [1], [0, 0, 1, 1], [], []>} : vector<8x32xbf16>, vector<32x8xbf16>, vector<8x8xf32> -> vector<8x8xf32>
    %c0_18 = arith.constant 0 : index
    %c0_19 = arith.constant 0 : index
    %c0_20 = arith.constant 0 : index
    %18 = vector.load %arg6[%c0_18, %c0_19, %c0_20] : memref<4x1x8xf32, #tpu.memory_space<vmem>>, vector<1x1x8xf32>
    %19 = vector.shape_cast %18 : vector<1x1x8xf32> to vector<1x8xf32>
    %20 = vector.broadcast %19 : vector<1x8xf32> to vector<8x8xf32>
    %21 = arith.addf %17, %20 : vector<8x8xf32>
    %c0_21 = arith.constant 0 : index
    %c0_22 = arith.constant 0 : index
    %c0_23 = arith.constant 0 : index
    %22 = vector.load %arg7[%c0_21, %c0_22, %c0_23] : memref<4x32x8xbf16, #tpu.memory_space<vmem>>, vector<1x32x8xbf16>
    %23 = vector.shape_cast %22 : vector<1x32x8xbf16> to vector<32x8xbf16>
    %cst_24 = arith.constant dense<0.000000e+00> : vector<8x8xf32>
    %24 = tpu.matmul %5, %23, %cst_24 {dimension_numbers = #tpu.dot_dimension_numbers<[1], [0], [0], [1], [0, 0, 1, 1], [], []>} : vector<8x32xbf16>, vector<32x8xbf16>, vector<8x8xf32> -> vector<8x8xf32>
    %c0_25 = arith.constant 0 : index
    %c0_26 = arith.constant 0 : index
    %c0_27 = arith.constant 0 : index
    %25 = vector.load %arg8[%c0_25, %c0_26, %c0_27] : memref<4x1x8xf32, #tpu.memory_space<vmem>>, vector<1x1x8xf32>
    %26 = vector.shape_cast %25 : vector<1x1x8xf32> to vector<1x8xf32>
    %27 = vector.broadcast %26 : vector<1x8xf32> to vector<8x8xf32>
    %28 = arith.addf %24, %27 : vector<8x8xf32>
    %29 = arith.truncf %14 : vector<8x8xf32> to vector<8x8xbf16>
    %30 = arith.truncf %21 : vector<8x8xf32> to vector<8x8xbf16>
    %cst_28 = arith.constant dense<0.000000e+00> : vector<8x8xf32>
    %31 = tpu.matmul %29, %30, %cst_28 {dimension_numbers = #tpu.dot_dimension_numbers<[1], [1], [0], [0], [0, 0, 1, 0], [], []>} : vector<8x8xbf16>, vector<8x8xbf16>, vector<8x8xf32> -> vector<8x8xf32>
    %cst_29 = arith.constant 0.353553385 : f32
    %32 = vector.broadcast %cst_29 : f32 to vector<8x8xf32>
    %33 = arith.mulf %31, %32 : vector<8x8xf32>
    %34 = arith.addf %33, %6 : vector<8x8xf32>
    %cst_30 = arith.constant dense<0xFF800000> : vector<8xf32>
    %35 = vector.multi_reduction <maximumf>, %34, %cst_30 [1] : vector<8x8xf32> to vector<8xf32>
    %36 = vector.shape_cast %35 : vector<8xf32> to vector<8x1xf32>
    %37 = vector.broadcast %36 : vector<8x1xf32> to vector<8x8xf32>
    %38 = arith.subf %34, %37 : vector<8x8xf32>
    %39 = math.exp %38 : vector<8x8xf32>
    %cst_31 = arith.constant dense<0.000000e+00> : vector<8xf32>
    %40 = vector.multi_reduction <add>, %39, %cst_31 [1] : vector<8x8xf32> to vector<8xf32>
    %41 = vector.shape_cast %40 : vector<8xf32> to vector<8x1xf32>
    %42 = tpu.reciprocal %41 {approx = true} : vector<8x1xf32> -> vector<8x1xf32>
    %43 = vector.broadcast %42 : vector<8x1xf32> to vector<8x8xf32>
    %44 = arith.mulf %39, %43 : vector<8x8xf32>
    %45 = arith.truncf %44 : vector<8x8xf32> to vector<8x8xbf16>
    %46 = arith.truncf %28 : vector<8x8xf32> to vector<8x8xbf16>
    %cst_32 = arith.constant dense<0.000000e+00> : vector<8x8xf32>
    %47 = tpu.matmul %45, %46, %cst_32 {dimension_numbers = #tpu.dot_dimension_numbers<[1], [0], [0], [1], [0, 0, 1, 1], [], []>} : vector<8x8xbf16>, vector<8x8xbf16>, vector<8x8xf32> -> vector<8x8xf32>
    %48 = arith.truncf %47 : vector<8x8xf32> to vector<8x8xbf16>
    %c0_33 = arith.constant 0 : index
    %c0_34 = arith.constant 0 : index
    %c0_35 = arith.constant 0 : index
    %49 = vector.load %arg9[%c0_33, %c0_34, %c0_35] : memref<4x8x32xbf16, #tpu.memory_space<vmem>>, vector<1x8x32xbf16>
    %50 = vector.shape_cast %49 : vector<1x8x32xbf16> to vector<8x32xbf16>
    %cst_36 = arith.constant dense<0.000000e+00> : vector<8x32xf32>
    %51 = tpu.matmul %48, %50, %cst_36 {dimension_numbers = #tpu.dot_dimension_numbers<[1], [0], [0], [1], [0, 0, 1, 1], [], []>} : vector<8x8xbf16>, vector<8x32xbf16>, vector<8x32xf32> -> vector<8x32xf32>
    %52 = arith.addf %7, %51 : vector<8x32xf32>
    %c1 = arith.constant 1 : index
    %c0_37 = arith.constant 0 : index
    %c0_38 = arith.constant 0 : index
    %53 = vector.load %arg3[%c1, %c0_37, %c0_38] : memref<4x32x8xbf16, #tpu.memory_space<vmem>>, vector<1x32x8xbf16>
    %54 = vector.shape_cast %53 : vector<1x32x8xbf16> to vector<32x8xbf16>
    %cst_39 = arith.constant dense<0.000000e+00> : vector<8x8xf32>
    %55 = tpu.matmul %4, %54, %cst_39 {dimension_numbers = #tpu.dot_dimension_numbers<[1], [0], [0], [1], [0, 0, 1, 1], [], []>} : vector<8x32xbf16>, vector<32x8xbf16>, vector<8x8xf32> -> vector<8x8xf32>
    %c1_40 = arith.constant 1 : index
    %c0_41 = arith.constant 0 : index
    %c0_42 = arith.constant 0 : index
    %56 = vector.load %arg4[%c1_40, %c0_41, %c0_42] : memref<4x1x8xf32, #tpu.memory_space<vmem>>, vector<1x1x8xf32>
    %57 = vector.shape_cast %56 : vector<1x1x8xf32> to vector<1x8xf32>
    %58 = vector.broadcast %57 : vector<1x8xf32> to vector<8x8xf32>
    %59 = arith.addf %55, %58 : vector<8x8xf32>
    %c1_43 = arith.constant 1 : index
    %c0_44 = arith.constant 0 : index
    %c0_45 = arith.constant 0 : index
    %60 = vector.load %arg5[%c1_43, %c0_44, %c0_45] : memref<4x32x8xbf16, #tpu.memory_space<vmem>>, vector<1x32x8xbf16>
    %61 = vector.shape_cast %60 : vector<1x32x8xbf16> to vector<32x8xbf16>
    %cst_46 = arith.constant dense<0.000000e+00> : vector<8x8xf32>
    %62 = tpu.matmul %5, %61, %cst_46 {dimension_numbers = #tpu.dot_dimension_numbers<[1], [0], [0], [1], [0, 0, 1, 1], [], []>} : vector<8x32xbf16>, vector<32x8xbf16>, vector<8x8xf32> -> vector<8x8xf32>
    %c1_47 = arith.constant 1 : index
    %c0_48 = arith.constant 0 : index
    %c0_49 = arith.constant 0 : index
    %63 = vector.load %arg6[%c1_47, %c0_48, %c0_49] : memref<4x1x8xf32, #tpu.memory_space<vmem>>, vector<1x1x8xf32>
    %64 = vector.shape_cast %63 : vector<1x1x8xf32> to vector<1x8xf32>
    %65 = vector.broadcast %64 : vector<1x8xf32> to vector<8x8xf32>
    %66 = arith.addf %62, %65 : vector<8x8xf32>
    %c1_50 = arith.constant 1 : index
    %c0_51 = arith.constant 0 : index
    %c0_52 = arith.constant 0 : index
    %67 = vector.load %arg7[%c1_50, %c0_51, %c0_52] : memref<4x32x8xbf16, #tpu.memory_space<vmem>>, vector<1x32x8xbf16>
    %68 = vector.shape_cast %67 : vector<1x32x8xbf16> to vector<32x8xbf16>
    %cst_53 = arith.constant dense<0.000000e+00> : vector<8x8xf32>
    %69 = tpu.matmul %5, %68, %cst_53 {dimension_numbers = #tpu.dot_dimension_numbers<[1], [0], [0], [1], [0, 0, 1, 1], [], []>} : vector<8x32xbf16>, vector<32x8xbf16>, vector<8x8xf32> -> vector<8x8xf32>
    %c1_54 = arith.constant 1 : index
    %c0_55 = arith.constant 0 : index
    %c0_56 = arith.constant 0 : index
    %70 = vector.load %arg8[%c1_54, %c0_55, %c0_56] : memref<4x1x8xf32, #tpu.memory_space<vmem>>, vector<1x1x8xf32>
    %71 = vector.shape_cast %70 : vector<1x1x8xf32> to vector<1x8xf32>
    %72 = vector.broadcast %71 : vector<1x8xf32> to vector<8x8xf32>
    %73 = arith.addf %69, %72 : vector<8x8xf32>
    %74 = arith.truncf %59 : vector<8x8xf32> to vector<8x8xbf16>
    %75 = arith.truncf %66 : vector<8x8xf32> to vector<8x8xbf16>
    %cst_57 = arith.constant dense<0.000000e+00> : vector<8x8xf32>
    %76 = tpu.matmul %74, %75, %cst_57 {dimension_numbers = #tpu.dot_dimension_numbers<[1], [1], [0], [0], [0, 0, 1, 0], [], []>} : vector<8x8xbf16>, vector<8x8xbf16>, vector<8x8xf32> -> vector<8x8xf32>
    %cst_58 = arith.constant 0.353553385 : f32
    %77 = vector.broadcast %cst_58 : f32 to vector<8x8xf32>
    %78 = arith.mulf %76, %77 : vector<8x8xf32>
    %79 = arith.addf %78, %6 : vector<8x8xf32>
    %cst_59 = arith.constant dense<0xFF800000> : vector<8xf32>
    %80 = vector.multi_reduction <maximumf>, %79, %cst_59 [1] : vector<8x8xf32> to vector<8xf32>
    %81 = vector.shape_cast %80 : vector<8xf32> to vector<8x1xf32>
    %82 = vector.broadcast %81 : vector<8x1xf32> to vector<8x8xf32>
    %83 = arith.subf %79, %82 : vector<8x8xf32>
    %84 = math.exp %83 : vector<8x8xf32>
    %cst_60 = arith.constant dense<0.000000e+00> : vector<8xf32>
    %85 = vector.multi_reduction <add>, %84, %cst_60 [1] : vector<8x8xf32> to vector<8xf32>
    %86 = vector.shape_cast %85 : vector<8xf32> to vector<8x1xf32>
    %87 = tpu.reciprocal %86 {approx = true} : vector<8x1xf32> -> vector<8x1xf32>
    %88 = vector.broadcast %87 : vector<8x1xf32> to vector<8x8xf32>
    %89 = arith.mulf %84, %88 : vector<8x8xf32>
    %90 = arith.truncf %89 : vector<8x8xf32> to vector<8x8xbf16>
    %91 = arith.truncf %73 : vector<8x8xf32> to vector<8x8xbf16>
    %cst_61 = arith.constant dense<0.000000e+00> : vector<8x8xf32>
    %92 = tpu.matmul %90, %91, %cst_61 {dimension_numbers = #tpu.dot_dimension_numbers<[1], [0], [0], [1], [0, 0, 1, 1], [], []>} : vector<8x8xbf16>, vector<8x8xbf16>, vector<8x8xf32> -> vector<8x8xf32>
    %93 = arith.truncf %92 : vector<8x8xf32> to vector<8x8xbf16>
    %c1_62 = arith.constant 1 : index
    %c0_63 = arith.constant 0 : index
    %c0_64 = arith.constant 0 : index
    %94 = vector.load %arg9[%c1_62, %c0_63, %c0_64] : memref<4x8x32xbf16, #tpu.memory_space<vmem>>, vector<1x8x32xbf16>
    %95 = vector.shape_cast %94 : vector<1x8x32xbf16> to vector<8x32xbf16>
    %cst_65 = arith.constant dense<0.000000e+00> : vector<8x32xf32>
    %96 = tpu.matmul %93, %95, %cst_65 {dimension_numbers = #tpu.dot_dimension_numbers<[1], [0], [0], [1], [0, 0, 1, 1], [], []>} : vector<8x8xbf16>, vector<8x32xbf16>, vector<8x32xf32> -> vector<8x32xf32>
    %97 = arith.addf %52, %96 : vector<8x32xf32>
    %c2 = arith.constant 2 : index
    %c0_66 = arith.constant 0 : index
    %c0_67 = arith.constant 0 : index
    %98 = vector.load %arg3[%c2, %c0_66, %c0_67] : memref<4x32x8xbf16, #tpu.memory_space<vmem>>, vector<1x32x8xbf16>
    %99 = vector.shape_cast %98 : vector<1x32x8xbf16> to vector<32x8xbf16>
    %cst_68 = arith.constant dense<0.000000e+00> : vector<8x8xf32>
    %100 = tpu.matmul %4, %99, %cst_68 {dimension_numbers = #tpu.dot_dimension_numbers<[1], [0], [0], [1], [0, 0, 1, 1], [], []>} : vector<8x32xbf16>, vector<32x8xbf16>, vector<8x8xf32> -> vector<8x8xf32>
    %c2_69 = arith.constant 2 : index
    %c0_70 = arith.constant 0 : index
    %c0_71 = arith.constant 0 : index
    %101 = vector.load %arg4[%c2_69, %c0_70, %c0_71] : memref<4x1x8xf32, #tpu.memory_space<vmem>>, vector<1x1x8xf32>
    %102 = vector.shape_cast %101 : vector<1x1x8xf32> to vector<1x8xf32>
    %103 = vector.broadcast %102 : vector<1x8xf32> to vector<8x8xf32>
    %104 = arith.addf %100, %103 : vector<8x8xf32>
    %c2_72 = arith.constant 2 : index
    %c0_73 = arith.constant 0 : index
    %c0_74 = arith.constant 0 : index
    %105 = vector.load %arg5[%c2_72, %c0_73, %c0_74] : memref<4x32x8xbf16, #tpu.memory_space<vmem>>, vector<1x32x8xbf16>
    %106 = vector.shape_cast %105 : vector<1x32x8xbf16> to vector<32x8xbf16>
    %cst_75 = arith.constant dense<0.000000e+00> : vector<8x8xf32>
    %107 = tpu.matmul %5, %106, %cst_75 {dimension_numbers = #tpu.dot_dimension_numbers<[1], [0], [0], [1], [0, 0, 1, 1], [], []>} : vector<8x32xbf16>, vector<32x8xbf16>, vector<8x8xf32> -> vector<8x8xf32>
    %c2_76 = arith.constant 2 : index
    %c0_77 = arith.constant 0 : index
    %c0_78 = arith.constant 0 : index
    %108 = vector.load %arg6[%c2_76, %c0_77, %c0_78] : memref<4x1x8xf32, #tpu.memory_space<vmem>>, vector<1x1x8xf32>
    %109 = vector.shape_cast %108 : vector<1x1x8xf32> to vector<1x8xf32>
    %110 = vector.broadcast %109 : vector<1x8xf32> to vector<8x8xf32>
    %111 = arith.addf %107, %110 : vector<8x8xf32>
    %c2_79 = arith.constant 2 : index
    %c0_80 = arith.constant 0 : index
    %c0_81 = arith.constant 0 : index
    %112 = vector.load %arg7[%c2_79, %c0_80, %c0_81] : memref<4x32x8xbf16, #tpu.memory_space<vmem>>, vector<1x32x8xbf16>
    %113 = vector.shape_cast %112 : vector<1x32x8xbf16> to vector<32x8xbf16>
    %cst_82 = arith.constant dense<0.000000e+00> : vector<8x8xf32>
    %114 = tpu.matmul %5, %113, %cst_82 {dimension_numbers = #tpu.dot_dimension_numbers<[1], [0], [0], [1], [0, 0, 1, 1], [], []>} : vector<8x32xbf16>, vector<32x8xbf16>, vector<8x8xf32> -> vector<8x8xf32>
    %c2_83 = arith.constant 2 : index
    %c0_84 = arith.constant 0 : index
    %c0_85 = arith.constant 0 : index
    %115 = vector.load %arg8[%c2_83, %c0_84, %c0_85] : memref<4x1x8xf32, #tpu.memory_space<vmem>>, vector<1x1x8xf32>
    %116 = vector.shape_cast %115 : vector<1x1x8xf32> to vector<1x8xf32>
    %117 = vector.broadcast %116 : vector<1x8xf32> to vector<8x8xf32>
    %118 = arith.addf %114, %117 : vector<8x8xf32>
    %119 = arith.truncf %104 : vector<8x8xf32> to vector<8x8xbf16>
    %120 = arith.truncf %111 : vector<8x8xf32> to vector<8x8xbf16>
    %cst_86 = arith.constant dense<0.000000e+00> : vector<8x8xf32>
    %121 = tpu.matmul %119, %120, %cst_86 {dimension_numbers = #tpu.dot_dimension_numbers<[1], [1], [0], [0], [0, 0, 1, 0], [], []>} : vector<8x8xbf16>, vector<8x8xbf16>, vector<8x8xf32> -> vector<8x8xf32>
    %cst_87 = arith.constant 0.353553385 : f32
    %122 = vector.broadcast %cst_87 : f32 to vector<8x8xf32>
    %123 = arith.mulf %121, %122 : vector<8x8xf32>
    %124 = arith.addf %123, %6 : vector<8x8xf32>
    %cst_88 = arith.constant dense<0xFF800000> : vector<8xf32>
    %125 = vector.multi_reduction <maximumf>, %124, %cst_88 [1] : vector<8x8xf32> to vector<8xf32>
    %126 = vector.shape_cast %125 : vector<8xf32> to vector<8x1xf32>
    %127 = vector.broadcast %126 : vector<8x1xf32> to vector<8x8xf32>
    %128 = arith.subf %124, %127 : vector<8x8xf32>
    %129 = math.exp %128 : vector<8x8xf32>
    %cst_89 = arith.constant dense<0.000000e+00> : vector<8xf32>
    %130 = vector.multi_reduction <add>, %129, %cst_89 [1] : vector<8x8xf32> to vector<8xf32>
    %131 = vector.shape_cast %130 : vector<8xf32> to vector<8x1xf32>
    %132 = tpu.reciprocal %131 {approx = true} : vector<8x1xf32> -> vector<8x1xf32>
    %133 = vector.broadcast %132 : vector<8x1xf32> to vector<8x8xf32>
    %134 = arith.mulf %129, %133 : vector<8x8xf32>
    %135 = arith.truncf %134 : vector<8x8xf32> to vector<8x8xbf16>
    %136 = arith.truncf %118 : vector<8x8xf32> to vector<8x8xbf16>
    %cst_90 = arith.constant dense<0.000000e+00> : vector<8x8xf32>
    %137 = tpu.matmul %135, %136, %cst_90 {dimension_numbers = #tpu.dot_dimension_numbers<[1], [0], [0], [1], [0, 0, 1, 1], [], []>} : vector<8x8xbf16>, vector<8x8xbf16>, vector<8x8xf32> -> vector<8x8xf32>
    %138 = arith.truncf %137 : vector<8x8xf32> to vector<8x8xbf16>
    %c2_91 = arith.constant 2 : index
    %c0_92 = arith.constant 0 : index
    %c0_93 = arith.constant 0 : index
    %139 = vector.load %arg9[%c2_91, %c0_92, %c0_93] : memref<4x8x32xbf16, #tpu.memory_space<vmem>>, vector<1x8x32xbf16>
    %140 = vector.shape_cast %139 : vector<1x8x32xbf16> to vector<8x32xbf16>
    %cst_94 = arith.constant dense<0.000000e+00> : vector<8x32xf32>
    %141 = tpu.matmul %138, %140, %cst_94 {dimension_numbers = #tpu.dot_dimension_numbers<[1], [0], [0], [1], [0, 0, 1, 1], [], []>} : vector<8x8xbf16>, vector<8x32xbf16>, vector<8x32xf32> -> vector<8x32xf32>
    %142 = arith.addf %97, %141 : vector<8x32xf32>
    %c3 = arith.constant 3 : index
    %c0_95 = arith.constant 0 : index
    %c0_96 = arith.constant 0 : index
    %143 = vector.load %arg3[%c3, %c0_95, %c0_96] : memref<4x32x8xbf16, #tpu.memory_space<vmem>>, vector<1x32x8xbf16>
    %144 = vector.shape_cast %143 : vector<1x32x8xbf16> to vector<32x8xbf16>
    %cst_97 = arith.constant dense<0.000000e+00> : vector<8x8xf32>
    %145 = tpu.matmul %4, %144, %cst_97 {dimension_numbers = #tpu.dot_dimension_numbers<[1], [0], [0], [1], [0, 0, 1, 1], [], []>} : vector<8x32xbf16>, vector<32x8xbf16>, vector<8x8xf32> -> vector<8x8xf32>
    %c3_98 = arith.constant 3 : index
    %c0_99 = arith.constant 0 : index
    %c0_100 = arith.constant 0 : index
    %146 = vector.load %arg4[%c3_98, %c0_99, %c0_100] : memref<4x1x8xf32, #tpu.memory_space<vmem>>, vector<1x1x8xf32>
    %147 = vector.shape_cast %146 : vector<1x1x8xf32> to vector<1x8xf32>
    %148 = vector.broadcast %147 : vector<1x8xf32> to vector<8x8xf32>
    %149 = arith.addf %145, %148 : vector<8x8xf32>
    %c3_101 = arith.constant 3 : index
    %c0_102 = arith.constant 0 : index
    %c0_103 = arith.constant 0 : index
    %150 = vector.load %arg5[%c3_101, %c0_102, %c0_103] : memref<4x32x8xbf16, #tpu.memory_space<vmem>>, vector<1x32x8xbf16>
    %151 = vector.shape_cast %150 : vector<1x32x8xbf16> to vector<32x8xbf16>
    %cst_104 = arith.constant dense<0.000000e+00> : vector<8x8xf32>
    %152 = tpu.matmul %5, %151, %cst_104 {dimension_numbers = #tpu.dot_dimension_numbers<[1], [0], [0], [1], [0, 0, 1, 1], [], []>} : vector<8x32xbf16>, vector<32x8xbf16>, vector<8x8xf32> -> vector<8x8xf32>
    %c3_105 = arith.constant 3 : index
    %c0_106 = arith.constant 0 : index
    %c0_107 = arith.constant 0 : index
    %153 = vector.load %arg6[%c3_105, %c0_106, %c0_107] : memref<4x1x8xf32, #tpu.memory_space<vmem>>, vector<1x1x8xf32>
    %154 = vector.shape_cast %153 : vector<1x1x8xf32> to vector<1x8xf32>
    %155 = vector.broadcast %154 : vector<1x8xf32> to vector<8x8xf32>
    %156 = arith.addf %152, %155 : vector<8x8xf32>
    %c3_108 = arith.constant 3 : index
    %c0_109 = arith.constant 0 : index
    %c0_110 = arith.constant 0 : index
    %157 = vector.load %arg7[%c3_108, %c0_109, %c0_110] : memref<4x32x8xbf16, #tpu.memory_space<vmem>>, vector<1x32x8xbf16>
    %158 = vector.shape_cast %157 : vector<1x32x8xbf16> to vector<32x8xbf16>
    %cst_111 = arith.constant dense<0.000000e+00> : vector<8x8xf32>
    %159 = tpu.matmul %5, %158, %cst_111 {dimension_numbers = #tpu.dot_dimension_numbers<[1], [0], [0], [1], [0, 0, 1, 1], [], []>} : vector<8x32xbf16>, vector<32x8xbf16>, vector<8x8xf32> -> vector<8x8xf32>
    %c3_112 = arith.constant 3 : index
    %c0_113 = arith.constant 0 : index
    %c0_114 = arith.constant 0 : index
    %160 = vector.load %arg8[%c3_112, %c0_113, %c0_114] : memref<4x1x8xf32, #tpu.memory_space<vmem>>, vector<1x1x8xf32>
    %161 = vector.shape_cast %160 : vector<1x1x8xf32> to vector<1x8xf32>
    %162 = vector.broadcast %161 : vector<1x8xf32> to vector<8x8xf32>
    %163 = arith.addf %159, %162 : vector<8x8xf32>
    %164 = arith.truncf %149 : vector<8x8xf32> to vector<8x8xbf16>
    %165 = arith.truncf %156 : vector<8x8xf32> to vector<8x8xbf16>
    %cst_115 = arith.constant dense<0.000000e+00> : vector<8x8xf32>
    %166 = tpu.matmul %164, %165, %cst_115 {dimension_numbers = #tpu.dot_dimension_numbers<[1], [1], [0], [0], [0, 0, 1, 0], [], []>} : vector<8x8xbf16>, vector<8x8xbf16>, vector<8x8xf32> -> vector<8x8xf32>
    %cst_116 = arith.constant 0.353553385 : f32
    %167 = vector.broadcast %cst_116 : f32 to vector<8x8xf32>
    %168 = arith.mulf %166, %167 : vector<8x8xf32>
    %169 = arith.addf %168, %6 : vector<8x8xf32>
    %cst_117 = arith.constant dense<0xFF800000> : vector<8xf32>
    %170 = vector.multi_reduction <maximumf>, %169, %cst_117 [1] : vector<8x8xf32> to vector<8xf32>
    %171 = vector.shape_cast %170 : vector<8xf32> to vector<8x1xf32>
    %172 = vector.broadcast %171 : vector<8x1xf32> to vector<8x8xf32>
    %173 = arith.subf %169, %172 : vector<8x8xf32>
    %174 = math.exp %173 : vector<8x8xf32>
    %cst_118 = arith.constant dense<0.000000e+00> : vector<8xf32>
    %175 = vector.multi_reduction <add>, %174, %cst_118 [1] : vector<8x8xf32> to vector<8xf32>
    %176 = vector.shape_cast %175 : vector<8xf32> to vector<8x1xf32>
    %177 = tpu.reciprocal %176 {approx = true} : vector<8x1xf32> -> vector<8x1xf32>
    %178 = vector.broadcast %177 : vector<8x1xf32> to vector<8x8xf32>
    %179 = arith.mulf %174, %178 : vector<8x8xf32>
    %180 = arith.truncf %179 : vector<8x8xf32> to vector<8x8xbf16>
    %181 = arith.truncf %163 : vector<8x8xf32> to vector<8x8xbf16>
    %cst_119 = arith.constant dense<0.000000e+00> : vector<8x8xf32>
    %182 = tpu.matmul %180, %181, %cst_119 {dimension_numbers = #tpu.dot_dimension_numbers<[1], [0], [0], [1], [0, 0, 1, 1], [], []>} : vector<8x8xbf16>, vector<8x8xbf16>, vector<8x8xf32> -> vector<8x8xf32>
    %183 = arith.truncf %182 : vector<8x8xf32> to vector<8x8xbf16>
    %c3_120 = arith.constant 3 : index
    %c0_121 = arith.constant 0 : index
    %c0_122 = arith.constant 0 : index
    %184 = vector.load %arg9[%c3_120, %c0_121, %c0_122] : memref<4x8x32xbf16, #tpu.memory_space<vmem>>, vector<1x8x32xbf16>
    %185 = vector.shape_cast %184 : vector<1x8x32xbf16> to vector<8x32xbf16>
    %cst_123 = arith.constant dense<0.000000e+00> : vector<8x32xf32>
    %186 = tpu.matmul %183, %185, %cst_123 {dimension_numbers = #tpu.dot_dimension_numbers<[1], [0], [0], [1], [0, 0, 1, 1], [], []>} : vector<8x8xbf16>, vector<8x32xbf16>, vector<8x32xf32> -> vector<8x32xf32>
    %187 = arith.addf %142, %186 : vector<8x32xf32>
    %188 = arith.addf %1, %187 : vector<8x32xf32>
    %c0_124 = arith.constant 0 : index
    %c0_125 = arith.constant 0 : index
    %189 = vector.load %arg10[%c0_124, %c0_125] : memref<1x32xf32, #tpu.memory_space<vmem>>, vector<1x32xf32>
    %190 = vector.broadcast %189 : vector<1x32xf32> to vector<8x32xf32>
    %191 = arith.addf %188, %190 : vector<8x32xf32>
    %cst_126 = arith.constant dense<0.000000e+00> : vector<8xf32>
    %192 = vector.multi_reduction <add>, %191, %cst_126 [1] : vector<8x32xf32> to vector<8xf32>
    %193 = vector.shape_cast %192 : vector<8xf32> to vector<8x1xf32>
    %cst_127 = arith.constant 3.200000e+01 : f32
    %194 = vector.broadcast %cst_127 : f32 to vector<8x1xf32>
    %195 = arith.divf %193, %194 : vector<8x1xf32>
    %196 = vector.broadcast %195 : vector<8x1xf32> to vector<8x32xf32>
    %197 = arith.subf %191, %196 : vector<8x32xf32>
    %198 = arith.mulf %197, %197 : vector<8x32xf32>
    %cst_128 = arith.constant dense<0.000000e+00> : vector<8xf32>
    %199 = vector.multi_reduction <add>, %198, %cst_128 [1] : vector<8x32xf32> to vector<8xf32>
    %200 = vector.shape_cast %199 : vector<8xf32> to vector<8x1xf32>
    %cst_129 = arith.constant 3.200000e+01 : f32
    %201 = vector.broadcast %cst_129 : f32 to vector<8x1xf32>
    %202 = arith.divf %200, %201 : vector<8x1xf32>
    %cst_130 = arith.constant 9.99999974E-6 : f32
    %203 = vector.broadcast %cst_130 : f32 to vector<8x1xf32>
    %204 = arith.addf %202, %203 : vector<8x1xf32>
    %205 = math.rsqrt %204 : vector<8x1xf32>
    %206 = vector.broadcast %205 : vector<8x1xf32> to vector<8x32xf32>
    %207 = arith.mulf %197, %206 : vector<8x32xf32>
    %c0_131 = arith.constant 0 : index
    %c0_132 = arith.constant 0 : index
    %208 = vector.load %arg11[%c0_131, %c0_132] : memref<1x32xf32, #tpu.memory_space<vmem>>, vector<1x32xf32>
    %209 = vector.broadcast %208 : vector<1x32xf32> to vector<8x32xf32>
    %210 = arith.mulf %207, %209 : vector<8x32xf32>
    %c0_133 = arith.constant 0 : index
    %c0_134 = arith.constant 0 : index
    %211 = vector.load %arg12[%c0_133, %c0_134] : memref<1x32xf32, #tpu.memory_space<vmem>>, vector<1x32xf32>
    %212 = vector.broadcast %211 : vector<1x32xf32> to vector<8x32xf32>
    %213 = arith.addf %210, %212 : vector<8x32xf32>
    %c0_135 = arith.constant 0 : index
    %c0_136 = arith.constant 0 : index
    %c0_137 = arith.constant 0 : index
    %214 = vector.load %arg14[%c0_135, %c0_136, %c0_137] : memref<1x8x32xf32, #tpu.memory_space<vmem>>, vector<1x8x32xf32>
    %215 = vector.shape_cast %214 : vector<1x8x32xf32> to vector<8x32xf32>
    %216 = vector.shape_cast %213 : vector<8x32xf32> to vector<1x8x32xf32>
    tpu.vector_store %arg14[%c0_135, %c0_136, %c0_137], %216 {strides = array<i32>} : memref<1x8x32xf32, #tpu.memory_space<vmem>>, vector<1x8x32xf32>,
    return
  }
  func.func @transform_0(%arg0: i32) -> (i32, i32, i32) {
    %c0_i32 = arith.constant 0 : i32
    %c0_i32_0 = arith.constant 0 : i32
    %c0_i32_1 = arith.constant 0 : i32
    return %arg0, %c0_i32, %c0_i32_0 : i32, i32, i32
  }
  func.func @transform_1(%arg0: i32) -> (i32, i32, i32) {
    %c0_i32 = arith.constant 0 : i32
    %c0_i32_0 = arith.constant 0 : i32
    %c0_i32_1 = arith.constant 0 : i32
    return %arg0, %c0_i32, %c0_i32_0 : i32, i32, i32
  }
  func.func @transform_2(%arg0: i32) -> (i32, i32, i32) {
    %c0_i32 = arith.constant 0 : i32
    %c0_i32_0 = arith.constant 0 : i32
    %c0_i32_1 = arith.constant 0 : i32
    %c0_i32_2 = arith.constant 0 : i32
    return %c0_i32, %c0_i32_0, %c0_i32_1 : i32, i32, i32
  }
  func.func @transform_3(%arg0: i32) -> (i32, i32, i32) {
    %c0_i32 = arith.constant 0 : i32
    %c0_i32_0 = arith.constant 0 : i32
    %c0_i32_1 = arith.constant 0 : i32
    %c0_i32_2 = arith.constant 0 : i32
    return %c0_i32, %c0_i32_0, %c0_i32_1 : i32, i32, i32
  }
  func.func @transform_4(%arg0: i32) -> (i32, i32, i32) {
    %c0_i32 = arith.constant 0 : i32
    %c0_i32_0 = arith.constant 0 : i32
    %c0_i32_1 = arith.constant 0 : i32
    %c0_i32_2 = arith.constant 0 : i32
    return %c0_i32, %c0_i32_0, %c0_i32_1 : i32, i32, i32
  }
  func.func @transform_5(%arg0: i32) -> (i32, i32, i32) {
    %c0_i32 = arith.constant 0 : i32
    %c0_i32_0 = arith.constant 0 : i32
    %c0_i32_1 = arith.constant 0 : i32
    %c0_i32_2 = arith.constant 0 : i32
    return %c0_i32, %c0_i32_0, %c0_i32_1 : i32, i32, i32
  }
  func.func @transform_6(%arg0: i32) -> (i32, i32, i32) {
    %c0_i32 = arith.constant 0 : i32
    %c0_i32_0 = arith.constant 0 : i32
    %c0_i32_1 = arith.constant 0 : i32
    %c0_i32_2 = arith.constant 0 : i32
    return %c0_i32, %c0_i32_0, %c0_i32_1 : i32, i32, i32
  }
  func.func @transform_7(%arg0: i32) -> (i32, i32, i32) {
    %c0_i32 = arith.constant 0 : i32
    %c0_i32_0 = arith.constant 0 : i32
    %c0_i32_1 = arith.constant 0 : i32
    %c0_i32_2 = arith.constant 0 : i32
    return %c0_i32, %c0_i32_0, %c0_i32_1 : i32, i32, i32
  }
  func.func @transform_8(%arg0: i32) -> (i32, i32, i32) {
    %c0_i32 = arith.constant 0 : i32
    %c0_i32_0 = arith.constant 0 : i32
    %c0_i32_1 = arith.constant 0 : i32
    %c0_i32_2 = arith.constant 0 : i32
    return %c0_i32, %c0_i32_0, %c0_i32_1 : i32, i32, i32
  }
  func.func @transform_9(%arg0: i32) -> (i32, i32) {
    %c0_i32 = arith.constant 0 : i32
    %c0_i32_0 = arith.constant 0 : i32
    %c0_i32_1 = arith.constant 0 : i32
    return %c0_i32, %c0_i32_0 : i32, i32
  }
  func.func @transform_10(%arg0: i32) -> (i32, i32) {
    %c0_i32 = arith.constant 0 : i32
    %c0_i32_0 = arith.constant 0 : i32
    %c0_i32_1 = arith.constant 0 : i32
    return %c0_i32, %c0_i32_0 : i32, i32
  }
  func.func @transform_11(%arg0: i32) -> (i32, i32) {
    %c0_i32 = arith.constant 0 : i32
    %c0_i32_0 = arith.constant 0 : i32
    %c0_i32_1 = arith.constant 0 : i32
    return %c0_i32, %c0_i32_0 : i32, i32
  }
  func.func @transform_12(%arg0: i32) -> (i32, i32) {
    %c0_i32 = arith.constant 0 : i32
    %c0_i32_0 = arith.constant 0 : i32
    %c0_i32_1 = arith.constant 0 : i32
    return %c0_i32, %c0_i32_0 : i32, i32
  }
  func.func @transform_13(%arg0: i32) -> (i32, i32, i32) {
    %c0_i32 = arith.constant 0 : i32
    %c0_i32_0 = arith.constant 0 : i32
    %c0_i32_1 = arith.constant 0 : i32
    return %arg0, %c0_i32, %c0_i32_0 : i32, i32, i32
  }
}

module attributes {stable_mosaic.version = 11 : i64} {
  func.func @_layernorm_kernel(%arg0: i32, %arg1: memref<16x32xf32, #tpu.memory_space<vmem>>, %arg2: memref<1x32xf32, #tpu.memory_space<vmem>>, %arg3: memref<1x32xf32, #tpu.memory_space<vmem>>, %arg4: memref<16x32xf32, #tpu.memory_space<vmem>>) attributes {dimension_semantics = [#tpu.dimension_semantics<parallel>], iteration_bounds = array<i64: 1>, scalar_prefetch = 0 : i64, scratch_operands = 0 : i64, tpu.core_type = #tpu.core_type<tc>, window_params = [{transform_indices = @transform_0, window_bounds = array<i64: 16, 32>}, {pipeline_mode = #tpu.pipeline_mode<synchronous>, transform_indices = @transform_1, window_bounds = array<i64: 1, 32>}, {pipeline_mode = #tpu.pipeline_mode<synchronous>, transform_indices = @transform_2, window_bounds = array<i64: 1, 32>}, {transform_indices = @transform_3, window_bounds = array<i64: 16, 32>}]} {
    %c0 = arith.constant 0 : index
    %c0_0 = arith.constant 0 : index
    %0 = vector.load %arg1[%c0, %c0_0] : memref<16x32xf32, #tpu.memory_space<vmem>>, vector<16x32xf32>
    %cst = arith.constant dense<0.000000e+00> : vector<16xf32>
    %1 = vector.multi_reduction <add>, %0, %cst [1] : vector<16x32xf32> to vector<16xf32>
    %2 = vector.shape_cast %1 : vector<16xf32> to vector<16x1xf32>
    %cst_1 = arith.constant 3.200000e+01 : f32
    %3 = vector.broadcast %cst_1 : f32 to vector<16x1xf32>
    %4 = arith.divf %2, %3 : vector<16x1xf32>
    %5 = vector.broadcast %4 : vector<16x1xf32> to vector<16x32xf32>
    %6 = arith.subf %0, %5 : vector<16x32xf32>
    %7 = arith.mulf %6, %6 : vector<16x32xf32>
    %cst_2 = arith.constant dense<0.000000e+00> : vector<16xf32>
    %8 = vector.multi_reduction <add>, %7, %cst_2 [1] : vector<16x32xf32> to vector<16xf32>
    %9 = vector.shape_cast %8 : vector<16xf32> to vector<16x1xf32>
    %cst_3 = arith.constant 3.200000e+01 : f32
    %10 = vector.broadcast %cst_3 : f32 to vector<16x1xf32>
    %11 = arith.divf %9, %10 : vector<16x1xf32>
    %cst_4 = arith.constant 9.99999974E-6 : f32
    %12 = vector.broadcast %cst_4 : f32 to vector<16x1xf32>
    %13 = arith.addf %11, %12 : vector<16x1xf32>
    %14 = math.rsqrt %13 : vector<16x1xf32>
    %15 = vector.broadcast %14 : vector<16x1xf32> to vector<16x32xf32>
    %16 = arith.mulf %6, %15 : vector<16x32xf32>
    %c0_5 = arith.constant 0 : index
    %c0_6 = arith.constant 0 : index
    %17 = vector.load %arg2[%c0_5, %c0_6] : memref<1x32xf32, #tpu.memory_space<vmem>>, vector<1x32xf32>
    %18 = vector.broadcast %17 : vector<1x32xf32> to vector<16x32xf32>
    %19 = arith.mulf %16, %18 : vector<16x32xf32>
    %c0_7 = arith.constant 0 : index
    %c0_8 = arith.constant 0 : index
    %20 = vector.load %arg3[%c0_7, %c0_8] : memref<1x32xf32, #tpu.memory_space<vmem>>, vector<1x32xf32>
    %21 = vector.broadcast %20 : vector<1x32xf32> to vector<16x32xf32>
    %22 = arith.addf %19, %21 : vector<16x32xf32>
    %c0_9 = arith.constant 0 : index
    %c0_10 = arith.constant 0 : index
    %23 = vector.load %arg4[%c0_9, %c0_10] : memref<16x32xf32, #tpu.memory_space<vmem>>, vector<16x32xf32>
    tpu.vector_store %arg4[%c0_9, %c0_10], %22 {strides = array<i32>} : memref<16x32xf32, #tpu.memory_space<vmem>>, vector<16x32xf32>,
    return
  }
  func.func @transform_0(%arg0: i32) -> (i32, i32) {
    %c0_i32 = arith.constant 0 : i32
    %c0_i32_0 = arith.constant 0 : i32
    return %arg0, %c0_i32 : i32, i32
  }
  func.func @transform_1(%arg0: i32) -> (i32, i32) {
    %c0_i32 = arith.constant 0 : i32
    %c0_i32_0 = arith.constant 0 : i32
    %c0_i32_1 = arith.constant 0 : i32
    return %c0_i32, %c0_i32_0 : i32, i32
  }
  func.func @transform_2(%arg0: i32) -> (i32, i32) {
    %c0_i32 = arith.constant 0 : i32
    %c0_i32_0 = arith.constant 0 : i32
    %c0_i32_1 = arith.constant 0 : i32
    return %c0_i32, %c0_i32_0 : i32, i32
  }
  func.func @transform_3(%arg0: i32) -> (i32, i32) {
    %c0_i32 = arith.constant 0 : i32
    %c0_i32_0 = arith.constant 0 : i32
    return %arg0, %c0_i32 : i32, i32
  }
}

module attributes {stable_mosaic.version = 11 : i64} {
  func.func @_mha_ln_kernel(%arg0: i32, %arg1: memref<1x8x32xf32, #tpu.memory_space<vmem>>, %arg2: memref<1x8x32xf32, #tpu.memory_space<vmem>>, %arg3: memref<4x32x8xbf16, #tpu.memory_space<vmem>>, %arg4: memref<4x1x8xf32, #tpu.memory_space<vmem>>, %arg5: memref<4x32x8xbf16, #tpu.memory_space<vmem>>, %arg6: memref<4x1x8xf32, #tpu.memory_space<vmem>>, %arg7: memref<4x32x8xbf16, #tpu.memory_space<vmem>>, %arg8: memref<4x1x8xf32, #tpu.memory_space<vmem>>, %arg9: memref<4x8x32xbf16, #tpu.memory_space<vmem>>, %arg10: memref<1x32xf32, #tpu.memory_space<vmem>>, %arg11: memref<1x32xf32, #tpu.memory_space<vmem>>, %arg12: memref<1x32xf32, #tpu.memory_space<vmem>>, %arg13: memref<1x8x32xf32, #tpu.memory_space<vmem>>) attributes {dimension_semantics = [#tpu.dimension_semantics<parallel>], iteration_bounds = array<i64: 2>, scalar_prefetch = 0 : i64, scratch_operands = 0 : i64, tpu.core_type = #tpu.core_type<tc>, window_params = [{transform_indices = @transform_0, window_bounds = array<i64: 1, 8, 32>}, {transform_indices = @transform_1, window_bounds = array<i64: 1, 8, 32>}, {pipeline_mode = #tpu.pipeline_mode<synchronous>, transform_indices = @transform_2, window_bounds = array<i64: 4, 32, 8>}, {pipeline_mode = #tpu.pipeline_mode<synchronous>, transform_indices = @transform_3, window_bounds = array<i64: 4, 1, 8>}, {pipeline_mode = #tpu.pipeline_mode<synchronous>, transform_indices = @transform_4, window_bounds = array<i64: 4, 32, 8>}, {pipeline_mode = #tpu.pipeline_mode<synchronous>, transform_indices = @transform_5, window_bounds = array<i64: 4, 1, 8>}, {pipeline_mode = #tpu.pipeline_mode<synchronous>, transform_indices = @transform_6, window_bounds = array<i64: 4, 32, 8>}, {pipeline_mode = #tpu.pipeline_mode<synchronous>, transform_indices = @transform_7, window_bounds = array<i64: 4, 1, 8>}, {pipeline_mode = #tpu.pipeline_mode<synchronous>, transform_indices = @transform_8, window_bounds = array<i64: 4, 8, 32>}, {pipeline_mode = #tpu.pipeline_mode<synchronous>, transform_indices = @transform_9, window_bounds = array<i64: 1, 32>}, {pipeline_mode = #tpu.pipeline_mode<synchronous>, transform_indices = @transform_10, window_bounds = array<i64: 1, 32>}, {pipeline_mode = #tpu.pipeline_mode<synchronous>, transform_indices = @transform_11, window_bounds = array<i64: 1, 32>}, {transform_indices = @transform_12, window_bounds = array<i64: 1, 8, 32>}]} {
    %c0 = arith.constant 0 : index
    %c0_0 = arith.constant 0 : index
    %c0_1 = arith.constant 0 : index
    %0 = vector.load %arg1[%c0, %c0_0, %c0_1] : memref<1x8x32xf32, #tpu.memory_space<vmem>>, vector<1x8x32xf32>
    %1 = vector.shape_cast %0 : vector<1x8x32xf32> to vector<8x32xf32>
    %c0_2 = arith.constant 0 : index
    %c0_3 = arith.constant 0 : index
    %c0_4 = arith.constant 0 : index
    %2 = vector.load %arg2[%c0_2, %c0_3, %c0_4] : memref<1x8x32xf32, #tpu.memory_space<vmem>>, vector<1x8x32xf32>
    %3 = vector.shape_cast %2 : vector<1x8x32xf32> to vector<8x32xf32>
    %4 = arith.truncf %1 : vector<8x32xf32> to vector<8x32xbf16>
    %5 = arith.truncf %3 : vector<8x32xf32> to vector<8x32xbf16>
    %cst = arith.constant 0.000000e+00 : f32
    %6 = vector.broadcast %cst : f32 to vector<8x32xf32>
    %c0_5 = arith.constant 0 : index
    %c0_6 = arith.constant 0 : index
    %c0_7 = arith.constant 0 : index
    %7 = vector.load %arg3[%c0_5, %c0_6, %c0_7] : memref<4x32x8xbf16, #tpu.memory_space<vmem>>, vector<1x32x8xbf16>
    %8 = vector.shape_cast %7 : vector<1x32x8xbf16> to vector<32x8xbf16>
    %cst_8 = arith.constant dense<0.000000e+00> : vector<8x8xf32>
    %9 = tpu.matmul %4, %8, %cst_8 {dimension_numbers = #tpu.dot_dimension_numbers<[1], [0], [0], [1], [0, 0, 1, 1], [], []>} : vector<8x32xbf16>, vector<32x8xbf16>, vector<8x8xf32> -> vector<8x8xf32>
    %c0_9 = arith.constant 0 : index
    %c0_10 = arith.constant 0 : index
    %c0_11 = arith.constant 0 : index
    %10 = vector.load %arg4[%c0_9, %c0_10, %c0_11] : memref<4x1x8xf32, #tpu.memory_space<vmem>>, vector<1x1x8xf32>
    %11 = vector.shape_cast %10 : vector<1x1x8xf32> to vector<1x8xf32>
    %12 = vector.broadcast %11 : vector<1x8xf32> to vector<8x8xf32>
    %13 = arith.addf %9, %12 : vector<8x8xf32>
    %c0_12 = arith.constant 0 : index
    %c0_13 = arith.constant 0 : index
    %c0_14 = arith.constant 0 : index
    %14 = vector.load %arg5[%c0_12, %c0_13, %c0_14] : memref<4x32x8xbf16, #tpu.memory_space<vmem>>, vector<1x32x8xbf16>
    %15 = vector.shape_cast %14 : vector<1x32x8xbf16> to vector<32x8xbf16>
    %cst_15 = arith.constant dense<0.000000e+00> : vector<8x8xf32>
    %16 = tpu.matmul %5, %15, %cst_15 {dimension_numbers = #tpu.dot_dimension_numbers<[1], [0], [0], [1], [0, 0, 1, 1], [], []>} : vector<8x32xbf16>, vector<32x8xbf16>, vector<8x8xf32> -> vector<8x8xf32>
    %c0_16 = arith.constant 0 : index
    %c0_17 = arith.constant 0 : index
    %c0_18 = arith.constant 0 : index
    %17 = vector.load %arg6[%c0_16, %c0_17, %c0_18] : memref<4x1x8xf32, #tpu.memory_space<vmem>>, vector<1x1x8xf32>
    %18 = vector.shape_cast %17 : vector<1x1x8xf32> to vector<1x8xf32>
    %19 = vector.broadcast %18 : vector<1x8xf32> to vector<8x8xf32>
    %20 = arith.addf %16, %19 : vector<8x8xf32>
    %c0_19 = arith.constant 0 : index
    %c0_20 = arith.constant 0 : index
    %c0_21 = arith.constant 0 : index
    %21 = vector.load %arg7[%c0_19, %c0_20, %c0_21] : memref<4x32x8xbf16, #tpu.memory_space<vmem>>, vector<1x32x8xbf16>
    %22 = vector.shape_cast %21 : vector<1x32x8xbf16> to vector<32x8xbf16>
    %cst_22 = arith.constant dense<0.000000e+00> : vector<8x8xf32>
    %23 = tpu.matmul %5, %22, %cst_22 {dimension_numbers = #tpu.dot_dimension_numbers<[1], [0], [0], [1], [0, 0, 1, 1], [], []>} : vector<8x32xbf16>, vector<32x8xbf16>, vector<8x8xf32> -> vector<8x8xf32>
    %c0_23 = arith.constant 0 : index
    %c0_24 = arith.constant 0 : index
    %c0_25 = arith.constant 0 : index
    %24 = vector.load %arg8[%c0_23, %c0_24, %c0_25] : memref<4x1x8xf32, #tpu.memory_space<vmem>>, vector<1x1x8xf32>
    %25 = vector.shape_cast %24 : vector<1x1x8xf32> to vector<1x8xf32>
    %26 = vector.broadcast %25 : vector<1x8xf32> to vector<8x8xf32>
    %27 = arith.addf %23, %26 : vector<8x8xf32>
    %28 = arith.truncf %13 : vector<8x8xf32> to vector<8x8xbf16>
    %29 = arith.truncf %20 : vector<8x8xf32> to vector<8x8xbf16>
    %cst_26 = arith.constant dense<0.000000e+00> : vector<8x8xf32>
    %30 = tpu.matmul %28, %29, %cst_26 {dimension_numbers = #tpu.dot_dimension_numbers<[1], [1], [0], [0], [0, 0, 1, 0], [], []>} : vector<8x8xbf16>, vector<8x8xbf16>, vector<8x8xf32> -> vector<8x8xf32>
    %cst_27 = arith.constant 0.353553385 : f32
    %31 = vector.broadcast %cst_27 : f32 to vector<8x8xf32>
    %32 = arith.mulf %30, %31 : vector<8x8xf32>
    %cst_28 = arith.constant dense<0xFF800000> : vector<8xf32>
    %33 = vector.multi_reduction <maximumf>, %32, %cst_28 [1] : vector<8x8xf32> to vector<8xf32>
    %34 = vector.shape_cast %33 : vector<8xf32> to vector<8x1xf32>
    %35 = vector.broadcast %34 : vector<8x1xf32> to vector<8x8xf32>
    %36 = arith.subf %32, %35 : vector<8x8xf32>
    %37 = math.exp %36 : vector<8x8xf32>
    %cst_29 = arith.constant dense<0.000000e+00> : vector<8xf32>
    %38 = vector.multi_reduction <add>, %37, %cst_29 [1] : vector<8x8xf32> to vector<8xf32>
    %39 = vector.shape_cast %38 : vector<8xf32> to vector<8x1xf32>
    %40 = tpu.reciprocal %39 {approx = true} : vector<8x1xf32> -> vector<8x1xf32>
    %41 = vector.broadcast %40 : vector<8x1xf32> to vector<8x8xf32>
    %42 = arith.mulf %37, %41 : vector<8x8xf32>
    %43 = arith.truncf %42 : vector<8x8xf32> to vector<8x8xbf16>
    %44 = arith.truncf %27 : vector<8x8xf32> to vector<8x8xbf16>
    %cst_30 = arith.constant dense<0.000000e+00> : vector<8x8xf32>
    %45 = tpu.matmul %43, %44, %cst_30 {dimension_numbers = #tpu.dot_dimension_numbers<[1], [0], [0], [1], [0, 0, 1, 1], [], []>} : vector<8x8xbf16>, vector<8x8xbf16>, vector<8x8xf32> -> vector<8x8xf32>
    %46 = arith.truncf %45 : vector<8x8xf32> to vector<8x8xbf16>
    %c0_31 = arith.constant 0 : index
    %c0_32 = arith.constant 0 : index
    %c0_33 = arith.constant 0 : index
    %47 = vector.load %arg9[%c0_31, %c0_32, %c0_33] : memref<4x8x32xbf16, #tpu.memory_space<vmem>>, vector<1x8x32xbf16>
    %48 = vector.shape_cast %47 : vector<1x8x32xbf16> to vector<8x32xbf16>
    %cst_34 = arith.constant dense<0.000000e+00> : vector<8x32xf32>
    %49 = tpu.matmul %46, %48, %cst_34 {dimension_numbers = #tpu.dot_dimension_numbers<[1], [0], [0], [1], [0, 0, 1, 1], [], []>} : vector<8x8xbf16>, vector<8x32xbf16>, vector<8x32xf32> -> vector<8x32xf32>
    %50 = arith.addf %6, %49 : vector<8x32xf32>
    %c1 = arith.constant 1 : index
    %c0_35 = arith.constant 0 : index
    %c0_36 = arith.constant 0 : index
    %51 = vector.load %arg3[%c1, %c0_35, %c0_36] : memref<4x32x8xbf16, #tpu.memory_space<vmem>>, vector<1x32x8xbf16>
    %52 = vector.shape_cast %51 : vector<1x32x8xbf16> to vector<32x8xbf16>
    %cst_37 = arith.constant dense<0.000000e+00> : vector<8x8xf32>
    %53 = tpu.matmul %4, %52, %cst_37 {dimension_numbers = #tpu.dot_dimension_numbers<[1], [0], [0], [1], [0, 0, 1, 1], [], []>} : vector<8x32xbf16>, vector<32x8xbf16>, vector<8x8xf32> -> vector<8x8xf32>
    %c1_38 = arith.constant 1 : index
    %c0_39 = arith.constant 0 : index
    %c0_40 = arith.constant 0 : index
    %54 = vector.load %arg4[%c1_38, %c0_39, %c0_40] : memref<4x1x8xf32, #tpu.memory_space<vmem>>, vector<1x1x8xf32>
    %55 = vector.shape_cast %54 : vector<1x1x8xf32> to vector<1x8xf32>
    %56 = vector.broadcast %55 : vector<1x8xf32> to vector<8x8xf32>
    %57 = arith.addf %53, %56 : vector<8x8xf32>
    %c1_41 = arith.constant 1 : index
    %c0_42 = arith.constant 0 : index
    %c0_43 = arith.constant 0 : index
    %58 = vector.load %arg5[%c1_41, %c0_42, %c0_43] : memref<4x32x8xbf16, #tpu.memory_space<vmem>>, vector<1x32x8xbf16>
    %59 = vector.shape_cast %58 : vector<1x32x8xbf16> to vector<32x8xbf16>
    %cst_44 = arith.constant dense<0.000000e+00> : vector<8x8xf32>
    %60 = tpu.matmul %5, %59, %cst_44 {dimension_numbers = #tpu.dot_dimension_numbers<[1], [0], [0], [1], [0, 0, 1, 1], [], []>} : vector<8x32xbf16>, vector<32x8xbf16>, vector<8x8xf32> -> vector<8x8xf32>
    %c1_45 = arith.constant 1 : index
    %c0_46 = arith.constant 0 : index
    %c0_47 = arith.constant 0 : index
    %61 = vector.load %arg6[%c1_45, %c0_46, %c0_47] : memref<4x1x8xf32, #tpu.memory_space<vmem>>, vector<1x1x8xf32>
    %62 = vector.shape_cast %61 : vector<1x1x8xf32> to vector<1x8xf32>
    %63 = vector.broadcast %62 : vector<1x8xf32> to vector<8x8xf32>
    %64 = arith.addf %60, %63 : vector<8x8xf32>
    %c1_48 = arith.constant 1 : index
    %c0_49 = arith.constant 0 : index
    %c0_50 = arith.constant 0 : index
    %65 = vector.load %arg7[%c1_48, %c0_49, %c0_50] : memref<4x32x8xbf16, #tpu.memory_space<vmem>>, vector<1x32x8xbf16>
    %66 = vector.shape_cast %65 : vector<1x32x8xbf16> to vector<32x8xbf16>
    %cst_51 = arith.constant dense<0.000000e+00> : vector<8x8xf32>
    %67 = tpu.matmul %5, %66, %cst_51 {dimension_numbers = #tpu.dot_dimension_numbers<[1], [0], [0], [1], [0, 0, 1, 1], [], []>} : vector<8x32xbf16>, vector<32x8xbf16>, vector<8x8xf32> -> vector<8x8xf32>
    %c1_52 = arith.constant 1 : index
    %c0_53 = arith.constant 0 : index
    %c0_54 = arith.constant 0 : index
    %68 = vector.load %arg8[%c1_52, %c0_53, %c0_54] : memref<4x1x8xf32, #tpu.memory_space<vmem>>, vector<1x1x8xf32>
    %69 = vector.shape_cast %68 : vector<1x1x8xf32> to vector<1x8xf32>
    %70 = vector.broadcast %69 : vector<1x8xf32> to vector<8x8xf32>
    %71 = arith.addf %67, %70 : vector<8x8xf32>
    %72 = arith.truncf %57 : vector<8x8xf32> to vector<8x8xbf16>
    %73 = arith.truncf %64 : vector<8x8xf32> to vector<8x8xbf16>
    %cst_55 = arith.constant dense<0.000000e+00> : vector<8x8xf32>
    %74 = tpu.matmul %72, %73, %cst_55 {dimension_numbers = #tpu.dot_dimension_numbers<[1], [1], [0], [0], [0, 0, 1, 0], [], []>} : vector<8x8xbf16>, vector<8x8xbf16>, vector<8x8xf32> -> vector<8x8xf32>
    %cst_56 = arith.constant 0.353553385 : f32
    %75 = vector.broadcast %cst_56 : f32 to vector<8x8xf32>
    %76 = arith.mulf %74, %75 : vector<8x8xf32>
    %cst_57 = arith.constant dense<0xFF800000> : vector<8xf32>
    %77 = vector.multi_reduction <maximumf>, %76, %cst_57 [1] : vector<8x8xf32> to vector<8xf32>
    %78 = vector.shape_cast %77 : vector<8xf32> to vector<8x1xf32>
    %79 = vector.broadcast %78 : vector<8x1xf32> to vector<8x8xf32>
    %80 = arith.subf %76, %79 : vector<8x8xf32>
    %81 = math.exp %80 : vector<8x8xf32>
    %cst_58 = arith.constant dense<0.000000e+00> : vector<8xf32>
    %82 = vector.multi_reduction <add>, %81, %cst_58 [1] : vector<8x8xf32> to vector<8xf32>
    %83 = vector.shape_cast %82 : vector<8xf32> to vector<8x1xf32>
    %84 = tpu.reciprocal %83 {approx = true} : vector<8x1xf32> -> vector<8x1xf32>
    %85 = vector.broadcast %84 : vector<8x1xf32> to vector<8x8xf32>
    %86 = arith.mulf %81, %85 : vector<8x8xf32>
    %87 = arith.truncf %86 : vector<8x8xf32> to vector<8x8xbf16>
    %88 = arith.truncf %71 : vector<8x8xf32> to vector<8x8xbf16>
    %cst_59 = arith.constant dense<0.000000e+00> : vector<8x8xf32>
    %89 = tpu.matmul %87, %88, %cst_59 {dimension_numbers = #tpu.dot_dimension_numbers<[1], [0], [0], [1], [0, 0, 1, 1], [], []>} : vector<8x8xbf16>, vector<8x8xbf16>, vector<8x8xf32> -> vector<8x8xf32>
    %90 = arith.truncf %89 : vector<8x8xf32> to vector<8x8xbf16>
    %c1_60 = arith.constant 1 : index
    %c0_61 = arith.constant 0 : index
    %c0_62 = arith.constant 0 : index
    %91 = vector.load %arg9[%c1_60, %c0_61, %c0_62] : memref<4x8x32xbf16, #tpu.memory_space<vmem>>, vector<1x8x32xbf16>
    %92 = vector.shape_cast %91 : vector<1x8x32xbf16> to vector<8x32xbf16>
    %cst_63 = arith.constant dense<0.000000e+00> : vector<8x32xf32>
    %93 = tpu.matmul %90, %92, %cst_63 {dimension_numbers = #tpu.dot_dimension_numbers<[1], [0], [0], [1], [0, 0, 1, 1], [], []>} : vector<8x8xbf16>, vector<8x32xbf16>, vector<8x32xf32> -> vector<8x32xf32>
    %94 = arith.addf %50, %93 : vector<8x32xf32>
    %c2 = arith.constant 2 : index
    %c0_64 = arith.constant 0 : index
    %c0_65 = arith.constant 0 : index
    %95 = vector.load %arg3[%c2, %c0_64, %c0_65] : memref<4x32x8xbf16, #tpu.memory_space<vmem>>, vector<1x32x8xbf16>
    %96 = vector.shape_cast %95 : vector<1x32x8xbf16> to vector<32x8xbf16>
    %cst_66 = arith.constant dense<0.000000e+00> : vector<8x8xf32>
    %97 = tpu.matmul %4, %96, %cst_66 {dimension_numbers = #tpu.dot_dimension_numbers<[1], [0], [0], [1], [0, 0, 1, 1], [], []>} : vector<8x32xbf16>, vector<32x8xbf16>, vector<8x8xf32> -> vector<8x8xf32>
    %c2_67 = arith.constant 2 : index
    %c0_68 = arith.constant 0 : index
    %c0_69 = arith.constant 0 : index
    %98 = vector.load %arg4[%c2_67, %c0_68, %c0_69] : memref<4x1x8xf32, #tpu.memory_space<vmem>>, vector<1x1x8xf32>
    %99 = vector.shape_cast %98 : vector<1x1x8xf32> to vector<1x8xf32>
    %100 = vector.broadcast %99 : vector<1x8xf32> to vector<8x8xf32>
    %101 = arith.addf %97, %100 : vector<8x8xf32>
    %c2_70 = arith.constant 2 : index
    %c0_71 = arith.constant 0 : index
    %c0_72 = arith.constant 0 : index
    %102 = vector.load %arg5[%c2_70, %c0_71, %c0_72] : memref<4x32x8xbf16, #tpu.memory_space<vmem>>, vector<1x32x8xbf16>
    %103 = vector.shape_cast %102 : vector<1x32x8xbf16> to vector<32x8xbf16>
    %cst_73 = arith.constant dense<0.000000e+00> : vector<8x8xf32>
    %104 = tpu.matmul %5, %103, %cst_73 {dimension_numbers = #tpu.dot_dimension_numbers<[1], [0], [0], [1], [0, 0, 1, 1], [], []>} : vector<8x32xbf16>, vector<32x8xbf16>, vector<8x8xf32> -> vector<8x8xf32>
    %c2_74 = arith.constant 2 : index
    %c0_75 = arith.constant 0 : index
    %c0_76 = arith.constant 0 : index
    %105 = vector.load %arg6[%c2_74, %c0_75, %c0_76] : memref<4x1x8xf32, #tpu.memory_space<vmem>>, vector<1x1x8xf32>
    %106 = vector.shape_cast %105 : vector<1x1x8xf32> to vector<1x8xf32>
    %107 = vector.broadcast %106 : vector<1x8xf32> to vector<8x8xf32>
    %108 = arith.addf %104, %107 : vector<8x8xf32>
    %c2_77 = arith.constant 2 : index
    %c0_78 = arith.constant 0 : index
    %c0_79 = arith.constant 0 : index
    %109 = vector.load %arg7[%c2_77, %c0_78, %c0_79] : memref<4x32x8xbf16, #tpu.memory_space<vmem>>, vector<1x32x8xbf16>
    %110 = vector.shape_cast %109 : vector<1x32x8xbf16> to vector<32x8xbf16>
    %cst_80 = arith.constant dense<0.000000e+00> : vector<8x8xf32>
    %111 = tpu.matmul %5, %110, %cst_80 {dimension_numbers = #tpu.dot_dimension_numbers<[1], [0], [0], [1], [0, 0, 1, 1], [], []>} : vector<8x32xbf16>, vector<32x8xbf16>, vector<8x8xf32> -> vector<8x8xf32>
    %c2_81 = arith.constant 2 : index
    %c0_82 = arith.constant 0 : index
    %c0_83 = arith.constant 0 : index
    %112 = vector.load %arg8[%c2_81, %c0_82, %c0_83] : memref<4x1x8xf32, #tpu.memory_space<vmem>>, vector<1x1x8xf32>
    %113 = vector.shape_cast %112 : vector<1x1x8xf32> to vector<1x8xf32>
    %114 = vector.broadcast %113 : vector<1x8xf32> to vector<8x8xf32>
    %115 = arith.addf %111, %114 : vector<8x8xf32>
    %116 = arith.truncf %101 : vector<8x8xf32> to vector<8x8xbf16>
    %117 = arith.truncf %108 : vector<8x8xf32> to vector<8x8xbf16>
    %cst_84 = arith.constant dense<0.000000e+00> : vector<8x8xf32>
    %118 = tpu.matmul %116, %117, %cst_84 {dimension_numbers = #tpu.dot_dimension_numbers<[1], [1], [0], [0], [0, 0, 1, 0], [], []>} : vector<8x8xbf16>, vector<8x8xbf16>, vector<8x8xf32> -> vector<8x8xf32>
    %cst_85 = arith.constant 0.353553385 : f32
    %119 = vector.broadcast %cst_85 : f32 to vector<8x8xf32>
    %120 = arith.mulf %118, %119 : vector<8x8xf32>
    %cst_86 = arith.constant dense<0xFF800000> : vector<8xf32>
    %121 = vector.multi_reduction <maximumf>, %120, %cst_86 [1] : vector<8x8xf32> to vector<8xf32>
    %122 = vector.shape_cast %121 : vector<8xf32> to vector<8x1xf32>
    %123 = vector.broadcast %122 : vector<8x1xf32> to vector<8x8xf32>
    %124 = arith.subf %120, %123 : vector<8x8xf32>
    %125 = math.exp %124 : vector<8x8xf32>
    %cst_87 = arith.constant dense<0.000000e+00> : vector<8xf32>
    %126 = vector.multi_reduction <add>, %125, %cst_87 [1] : vector<8x8xf32> to vector<8xf32>
    %127 = vector.shape_cast %126 : vector<8xf32> to vector<8x1xf32>
    %128 = tpu.reciprocal %127 {approx = true} : vector<8x1xf32> -> vector<8x1xf32>
    %129 = vector.broadcast %128 : vector<8x1xf32> to vector<8x8xf32>
    %130 = arith.mulf %125, %129 : vector<8x8xf32>
    %131 = arith.truncf %130 : vector<8x8xf32> to vector<8x8xbf16>
    %132 = arith.truncf %115 : vector<8x8xf32> to vector<8x8xbf16>
    %cst_88 = arith.constant dense<0.000000e+00> : vector<8x8xf32>
    %133 = tpu.matmul %131, %132, %cst_88 {dimension_numbers = #tpu.dot_dimension_numbers<[1], [0], [0], [1], [0, 0, 1, 1], [], []>} : vector<8x8xbf16>, vector<8x8xbf16>, vector<8x8xf32> -> vector<8x8xf32>
    %134 = arith.truncf %133 : vector<8x8xf32> to vector<8x8xbf16>
    %c2_89 = arith.constant 2 : index
    %c0_90 = arith.constant 0 : index
    %c0_91 = arith.constant 0 : index
    %135 = vector.load %arg9[%c2_89, %c0_90, %c0_91] : memref<4x8x32xbf16, #tpu.memory_space<vmem>>, vector<1x8x32xbf16>
    %136 = vector.shape_cast %135 : vector<1x8x32xbf16> to vector<8x32xbf16>
    %cst_92 = arith.constant dense<0.000000e+00> : vector<8x32xf32>
    %137 = tpu.matmul %134, %136, %cst_92 {dimension_numbers = #tpu.dot_dimension_numbers<[1], [0], [0], [1], [0, 0, 1, 1], [], []>} : vector<8x8xbf16>, vector<8x32xbf16>, vector<8x32xf32> -> vector<8x32xf32>
    %138 = arith.addf %94, %137 : vector<8x32xf32>
    %c3 = arith.constant 3 : index
    %c0_93 = arith.constant 0 : index
    %c0_94 = arith.constant 0 : index
    %139 = vector.load %arg3[%c3, %c0_93, %c0_94] : memref<4x32x8xbf16, #tpu.memory_space<vmem>>, vector<1x32x8xbf16>
    %140 = vector.shape_cast %139 : vector<1x32x8xbf16> to vector<32x8xbf16>
    %cst_95 = arith.constant dense<0.000000e+00> : vector<8x8xf32>
    %141 = tpu.matmul %4, %140, %cst_95 {dimension_numbers = #tpu.dot_dimension_numbers<[1], [0], [0], [1], [0, 0, 1, 1], [], []>} : vector<8x32xbf16>, vector<32x8xbf16>, vector<8x8xf32> -> vector<8x8xf32>
    %c3_96 = arith.constant 3 : index
    %c0_97 = arith.constant 0 : index
    %c0_98 = arith.constant 0 : index
    %142 = vector.load %arg4[%c3_96, %c0_97, %c0_98] : memref<4x1x8xf32, #tpu.memory_space<vmem>>, vector<1x1x8xf32>
    %143 = vector.shape_cast %142 : vector<1x1x8xf32> to vector<1x8xf32>
    %144 = vector.broadcast %143 : vector<1x8xf32> to vector<8x8xf32>
    %145 = arith.addf %141, %144 : vector<8x8xf32>
    %c3_99 = arith.constant 3 : index
    %c0_100 = arith.constant 0 : index
    %c0_101 = arith.constant 0 : index
    %146 = vector.load %arg5[%c3_99, %c0_100, %c0_101] : memref<4x32x8xbf16, #tpu.memory_space<vmem>>, vector<1x32x8xbf16>
    %147 = vector.shape_cast %146 : vector<1x32x8xbf16> to vector<32x8xbf16>
    %cst_102 = arith.constant dense<0.000000e+00> : vector<8x8xf32>
    %148 = tpu.matmul %5, %147, %cst_102 {dimension_numbers = #tpu.dot_dimension_numbers<[1], [0], [0], [1], [0, 0, 1, 1], [], []>} : vector<8x32xbf16>, vector<32x8xbf16>, vector<8x8xf32> -> vector<8x8xf32>
    %c3_103 = arith.constant 3 : index
    %c0_104 = arith.constant 0 : index
    %c0_105 = arith.constant 0 : index
    %149 = vector.load %arg6[%c3_103, %c0_104, %c0_105] : memref<4x1x8xf32, #tpu.memory_space<vmem>>, vector<1x1x8xf32>
    %150 = vector.shape_cast %149 : vector<1x1x8xf32> to vector<1x8xf32>
    %151 = vector.broadcast %150 : vector<1x8xf32> to vector<8x8xf32>
    %152 = arith.addf %148, %151 : vector<8x8xf32>
    %c3_106 = arith.constant 3 : index
    %c0_107 = arith.constant 0 : index
    %c0_108 = arith.constant 0 : index
    %153 = vector.load %arg7[%c3_106, %c0_107, %c0_108] : memref<4x32x8xbf16, #tpu.memory_space<vmem>>, vector<1x32x8xbf16>
    %154 = vector.shape_cast %153 : vector<1x32x8xbf16> to vector<32x8xbf16>
    %cst_109 = arith.constant dense<0.000000e+00> : vector<8x8xf32>
    %155 = tpu.matmul %5, %154, %cst_109 {dimension_numbers = #tpu.dot_dimension_numbers<[1], [0], [0], [1], [0, 0, 1, 1], [], []>} : vector<8x32xbf16>, vector<32x8xbf16>, vector<8x8xf32> -> vector<8x8xf32>
    %c3_110 = arith.constant 3 : index
    %c0_111 = arith.constant 0 : index
    %c0_112 = arith.constant 0 : index
    %156 = vector.load %arg8[%c3_110, %c0_111, %c0_112] : memref<4x1x8xf32, #tpu.memory_space<vmem>>, vector<1x1x8xf32>
    %157 = vector.shape_cast %156 : vector<1x1x8xf32> to vector<1x8xf32>
    %158 = vector.broadcast %157 : vector<1x8xf32> to vector<8x8xf32>
    %159 = arith.addf %155, %158 : vector<8x8xf32>
    %160 = arith.truncf %145 : vector<8x8xf32> to vector<8x8xbf16>
    %161 = arith.truncf %152 : vector<8x8xf32> to vector<8x8xbf16>
    %cst_113 = arith.constant dense<0.000000e+00> : vector<8x8xf32>
    %162 = tpu.matmul %160, %161, %cst_113 {dimension_numbers = #tpu.dot_dimension_numbers<[1], [1], [0], [0], [0, 0, 1, 0], [], []>} : vector<8x8xbf16>, vector<8x8xbf16>, vector<8x8xf32> -> vector<8x8xf32>
    %cst_114 = arith.constant 0.353553385 : f32
    %163 = vector.broadcast %cst_114 : f32 to vector<8x8xf32>
    %164 = arith.mulf %162, %163 : vector<8x8xf32>
    %cst_115 = arith.constant dense<0xFF800000> : vector<8xf32>
    %165 = vector.multi_reduction <maximumf>, %164, %cst_115 [1] : vector<8x8xf32> to vector<8xf32>
    %166 = vector.shape_cast %165 : vector<8xf32> to vector<8x1xf32>
    %167 = vector.broadcast %166 : vector<8x1xf32> to vector<8x8xf32>
    %168 = arith.subf %164, %167 : vector<8x8xf32>
    %169 = math.exp %168 : vector<8x8xf32>
    %cst_116 = arith.constant dense<0.000000e+00> : vector<8xf32>
    %170 = vector.multi_reduction <add>, %169, %cst_116 [1] : vector<8x8xf32> to vector<8xf32>
    %171 = vector.shape_cast %170 : vector<8xf32> to vector<8x1xf32>
    %172 = tpu.reciprocal %171 {approx = true} : vector<8x1xf32> -> vector<8x1xf32>
    %173 = vector.broadcast %172 : vector<8x1xf32> to vector<8x8xf32>
    %174 = arith.mulf %169, %173 : vector<8x8xf32>
    %175 = arith.truncf %174 : vector<8x8xf32> to vector<8x8xbf16>
    %176 = arith.truncf %159 : vector<8x8xf32> to vector<8x8xbf16>
    %cst_117 = arith.constant dense<0.000000e+00> : vector<8x8xf32>
    %177 = tpu.matmul %175, %176, %cst_117 {dimension_numbers = #tpu.dot_dimension_numbers<[1], [0], [0], [1], [0, 0, 1, 1], [], []>} : vector<8x8xbf16>, vector<8x8xbf16>, vector<8x8xf32> -> vector<8x8xf32>
    %178 = arith.truncf %177 : vector<8x8xf32> to vector<8x8xbf16>
    %c3_118 = arith.constant 3 : index
    %c0_119 = arith.constant 0 : index
    %c0_120 = arith.constant 0 : index
    %179 = vector.load %arg9[%c3_118, %c0_119, %c0_120] : memref<4x8x32xbf16, #tpu.memory_space<vmem>>, vector<1x8x32xbf16>
    %180 = vector.shape_cast %179 : vector<1x8x32xbf16> to vector<8x32xbf16>
    %cst_121 = arith.constant dense<0.000000e+00> : vector<8x32xf32>
    %181 = tpu.matmul %178, %180, %cst_121 {dimension_numbers = #tpu.dot_dimension_numbers<[1], [0], [0], [1], [0, 0, 1, 1], [], []>} : vector<8x8xbf16>, vector<8x32xbf16>, vector<8x32xf32> -> vector<8x32xf32>
    %182 = arith.addf %138, %181 : vector<8x32xf32>
    %183 = arith.addf %1, %182 : vector<8x32xf32>
    %c0_122 = arith.constant 0 : index
    %c0_123 = arith.constant 0 : index
    %184 = vector.load %arg10[%c0_122, %c0_123] : memref<1x32xf32, #tpu.memory_space<vmem>>, vector<1x32xf32>
    %185 = vector.broadcast %184 : vector<1x32xf32> to vector<8x32xf32>
    %186 = arith.addf %183, %185 : vector<8x32xf32>
    %cst_124 = arith.constant dense<0.000000e+00> : vector<8xf32>
    %187 = vector.multi_reduction <add>, %186, %cst_124 [1] : vector<8x32xf32> to vector<8xf32>
    %188 = vector.shape_cast %187 : vector<8xf32> to vector<8x1xf32>
    %cst_125 = arith.constant 3.200000e+01 : f32
    %189 = vector.broadcast %cst_125 : f32 to vector<8x1xf32>
    %190 = arith.divf %188, %189 : vector<8x1xf32>
    %191 = vector.broadcast %190 : vector<8x1xf32> to vector<8x32xf32>
    %192 = arith.subf %186, %191 : vector<8x32xf32>
    %193 = arith.mulf %192, %192 : vector<8x32xf32>
    %cst_126 = arith.constant dense<0.000000e+00> : vector<8xf32>
    %194 = vector.multi_reduction <add>, %193, %cst_126 [1] : vector<8x32xf32> to vector<8xf32>
    %195 = vector.shape_cast %194 : vector<8xf32> to vector<8x1xf32>
    %cst_127 = arith.constant 3.200000e+01 : f32
    %196 = vector.broadcast %cst_127 : f32 to vector<8x1xf32>
    %197 = arith.divf %195, %196 : vector<8x1xf32>
    %cst_128 = arith.constant 9.99999974E-6 : f32
    %198 = vector.broadcast %cst_128 : f32 to vector<8x1xf32>
    %199 = arith.addf %197, %198 : vector<8x1xf32>
    %200 = math.rsqrt %199 : vector<8x1xf32>
    %201 = vector.broadcast %200 : vector<8x1xf32> to vector<8x32xf32>
    %202 = arith.mulf %192, %201 : vector<8x32xf32>
    %c0_129 = arith.constant 0 : index
    %c0_130 = arith.constant 0 : index
    %203 = vector.load %arg11[%c0_129, %c0_130] : memref<1x32xf32, #tpu.memory_space<vmem>>, vector<1x32xf32>
    %204 = vector.broadcast %203 : vector<1x32xf32> to vector<8x32xf32>
    %205 = arith.mulf %202, %204 : vector<8x32xf32>
    %c0_131 = arith.constant 0 : index
    %c0_132 = arith.constant 0 : index
    %206 = vector.load %arg12[%c0_131, %c0_132] : memref<1x32xf32, #tpu.memory_space<vmem>>, vector<1x32xf32>
    %207 = vector.broadcast %206 : vector<1x32xf32> to vector<8x32xf32>
    %208 = arith.addf %205, %207 : vector<8x32xf32>
    %c0_133 = arith.constant 0 : index
    %c0_134 = arith.constant 0 : index
    %c0_135 = arith.constant 0 : index
    %209 = vector.load %arg13[%c0_133, %c0_134, %c0_135] : memref<1x8x32xf32, #tpu.memory_space<vmem>>, vector<1x8x32xf32>
    %210 = vector.shape_cast %209 : vector<1x8x32xf32> to vector<8x32xf32>
    %211 = vector.shape_cast %208 : vector<8x32xf32> to vector<1x8x32xf32>
    tpu.vector_store %arg13[%c0_133, %c0_134, %c0_135], %211 {strides = array<i32>} : memref<1x8x32xf32, #tpu.memory_space<vmem>>, vector<1x8x32xf32>,
    return
  }
  func.func @transform_0(%arg0: i32) -> (i32, i32, i32) {
    %c0_i32 = arith.constant 0 : i32
    %c0_i32_0 = arith.constant 0 : i32
    %c0_i32_1 = arith.constant 0 : i32
    return %arg0, %c0_i32, %c0_i32_0 : i32, i32, i32
  }
  func.func @transform_1(%arg0: i32) -> (i32, i32, i32) {
    %c0_i32 = arith.constant 0 : i32
    %c0_i32_0 = arith.constant 0 : i32
    %c0_i32_1 = arith.constant 0 : i32
    return %arg0, %c0_i32, %c0_i32_0 : i32, i32, i32
  }
  func.func @transform_2(%arg0: i32) -> (i32, i32, i32) {
    %c0_i32 = arith.constant 0 : i32
    %c0_i32_0 = arith.constant 0 : i32
    %c0_i32_1 = arith.constant 0 : i32
    %c0_i32_2 = arith.constant 0 : i32
    return %c0_i32, %c0_i32_0, %c0_i32_1 : i32, i32, i32
  }
  func.func @transform_3(%arg0: i32) -> (i32, i32, i32) {
    %c0_i32 = arith.constant 0 : i32
    %c0_i32_0 = arith.constant 0 : i32
    %c0_i32_1 = arith.constant 0 : i32
    %c0_i32_2 = arith.constant 0 : i32
    return %c0_i32, %c0_i32_0, %c0_i32_1 : i32, i32, i32
  }
  func.func @transform_4(%arg0: i32) -> (i32, i32, i32) {
    %c0_i32 = arith.constant 0 : i32
    %c0_i32_0 = arith.constant 0 : i32
    %c0_i32_1 = arith.constant 0 : i32
    %c0_i32_2 = arith.constant 0 : i32
    return %c0_i32, %c0_i32_0, %c0_i32_1 : i32, i32, i32
  }
  func.func @transform_5(%arg0: i32) -> (i32, i32, i32) {
    %c0_i32 = arith.constant 0 : i32
    %c0_i32_0 = arith.constant 0 : i32
    %c0_i32_1 = arith.constant 0 : i32
    %c0_i32_2 = arith.constant 0 : i32
    return %c0_i32, %c0_i32_0, %c0_i32_1 : i32, i32, i32
  }
  func.func @transform_6(%arg0: i32) -> (i32, i32, i32) {
    %c0_i32 = arith.constant 0 : i32
    %c0_i32_0 = arith.constant 0 : i32
    %c0_i32_1 = arith.constant 0 : i32
    %c0_i32_2 = arith.constant 0 : i32
    return %c0_i32, %c0_i32_0, %c0_i32_1 : i32, i32, i32
  }
  func.func @transform_7(%arg0: i32) -> (i32, i32, i32) {
    %c0_i32 = arith.constant 0 : i32
    %c0_i32_0 = arith.constant 0 : i32
    %c0_i32_1 = arith.constant 0 : i32
    %c0_i32_2 = arith.constant 0 : i32
    return %c0_i32, %c0_i32_0, %c0_i32_1 : i32, i32, i32
  }
  func.func @transform_8(%arg0: i32) -> (i32, i32, i32) {
    %c0_i32 = arith.constant 0 : i32
    %c0_i32_0 = arith.constant 0 : i32
    %c0_i32_1 = arith.constant 0 : i32
    %c0_i32_2 = arith.constant 0 : i32
    return %c0_i32, %c0_i32_0, %c0_i32_1 : i32, i32, i32
  }
  func.func @transform_9(%arg0: i32) -> (i32, i32) {
    %c0_i32 = arith.constant 0 : i32
    %c0_i32_0 = arith.constant 0 : i32
    %c0_i32_1 = arith.constant 0 : i32
    return %c0_i32, %c0_i32_0 : i32, i32
  }
  func.func @transform_10(%arg0: i32) -> (i32, i32) {
    %c0_i32 = arith.constant 0 : i32
    %c0_i32_0 = arith.constant 0 : i32
    %c0_i32_1 = arith.constant 0 : i32
    return %c0_i32, %c0_i32_0 : i32, i32
  }
  func.func @transform_11(%arg0: i32) -> (i32, i32) {
    %c0_i32 = arith.constant 0 : i32
    %c0_i32_0 = arith.constant 0 : i32
    %c0_i32_1 = arith.constant 0 : i32
    return %c0_i32, %c0_i32_0 : i32, i32
  }
  func.func @transform_12(%arg0: i32) -> (i32, i32, i32) {
    %c0_i32 = arith.constant 0 : i32
    %c0_i32_0 = arith.constant 0 : i32
    %c0_i32_1 = arith.constant 0 : i32
    return %arg0, %c0_i32, %c0_i32_0 : i32, i32, i32
  }
}

module attributes {stable_mosaic.version = 11 : i64} {
  func.func @_ffn_ln_kernel(%arg0: i32, %arg1: memref<16x32xf32, #tpu.memory_space<vmem>>, %arg2: memref<32x64xbf16, #tpu.memory_space<vmem>>, %arg3: memref<1x64xf32, #tpu.memory_space<vmem>>, %arg4: memref<64x32xbf16, #tpu.memory_space<vmem>>, %arg5: memref<1x32xf32, #tpu.memory_space<vmem>>, %arg6: memref<1x32xf32, #tpu.memory_space<vmem>>, %arg7: memref<1x32xf32, #tpu.memory_space<vmem>>, %arg8: memref<16x32xf32, #tpu.memory_space<vmem>>) attributes {dimension_semantics = [#tpu.dimension_semantics<parallel>], iteration_bounds = array<i64: 1>, scalar_prefetch = 0 : i64, scratch_operands = 0 : i64, tpu.core_type = #tpu.core_type<tc>, window_params = [{transform_indices = @transform_0, window_bounds = array<i64: 16, 32>}, {pipeline_mode = #tpu.pipeline_mode<synchronous>, transform_indices = @transform_1, window_bounds = array<i64: 32, 64>}, {pipeline_mode = #tpu.pipeline_mode<synchronous>, transform_indices = @transform_2, window_bounds = array<i64: 1, 64>}, {pipeline_mode = #tpu.pipeline_mode<synchronous>, transform_indices = @transform_3, window_bounds = array<i64: 64, 32>}, {pipeline_mode = #tpu.pipeline_mode<synchronous>, transform_indices = @transform_4, window_bounds = array<i64: 1, 32>}, {pipeline_mode = #tpu.pipeline_mode<synchronous>, transform_indices = @transform_5, window_bounds = array<i64: 1, 32>}, {pipeline_mode = #tpu.pipeline_mode<synchronous>, transform_indices = @transform_6, window_bounds = array<i64: 1, 32>}, {transform_indices = @transform_7, window_bounds = array<i64: 16, 32>}]} {
    %c0 = arith.constant 0 : index
    %c0_0 = arith.constant 0 : index
    %0 = vector.load %arg1[%c0, %c0_0] : memref<16x32xf32, #tpu.memory_space<vmem>>, vector<16x32xf32>
    %1 = arith.truncf %0 : vector<16x32xf32> to vector<16x32xbf16>
    %c0_1 = arith.constant 0 : index
    %c0_2 = arith.constant 0 : index
    %2 = vector.load %arg2[%c0_1, %c0_2] : memref<32x64xbf16, #tpu.memory_space<vmem>>, vector<32x64xbf16>
    %cst = arith.constant dense<0.000000e+00> : vector<16x64xf32>
    %3 = tpu.matmul %1, %2, %cst {dimension_numbers = #tpu.dot_dimension_numbers<[1], [0], [0], [1], [0, 0, 1, 1], [], []>} : vector<16x32xbf16>, vector<32x64xbf16>, vector<16x64xf32> -> vector<16x64xf32>
    %c0_3 = arith.constant 0 : index
    %c0_4 = arith.constant 0 : index
    %4 = vector.load %arg3[%c0_3, %c0_4] : memref<1x64xf32, #tpu.memory_space<vmem>>, vector<1x64xf32>
    %5 = vector.broadcast %4 : vector<1x64xf32> to vector<16x64xf32>
    %6 = arith.addf %3, %5 : vector<16x64xf32>
    %cst_5 = arith.constant 0.000000e+00 : f32
    %7 = vector.broadcast %cst_5 : f32 to vector<16x64xf32>
    %8 = arith.maximumf %6, %7 : vector<16x64xf32>
    %9 = arith.truncf %8 : vector<16x64xf32> to vector<16x64xbf16>
    %c0_6 = arith.constant 0 : index
    %c0_7 = arith.constant 0 : index
    %10 = vector.load %arg4[%c0_6, %c0_7] : memref<64x32xbf16, #tpu.memory_space<vmem>>, vector<64x32xbf16>
    %cst_8 = arith.constant dense<0.000000e+00> : vector<16x32xf32>
    %11 = tpu.matmul %9, %10, %cst_8 {dimension_numbers = #tpu.dot_dimension_numbers<[1], [0], [0], [1], [0, 0, 1, 1], [], []>} : vector<16x64xbf16>, vector<64x32xbf16>, vector<16x32xf32> -> vector<16x32xf32>
    %c0_9 = arith.constant 0 : index
    %c0_10 = arith.constant 0 : index
    %12 = vector.load %arg5[%c0_9, %c0_10] : memref<1x32xf32, #tpu.memory_space<vmem>>, vector<1x32xf32>
    %13 = vector.broadcast %12 : vector<1x32xf32> to vector<16x32xf32>
    %14 = arith.addf %11, %13 : vector<16x32xf32>
    %15 = arith.addf %0, %14 : vector<16x32xf32>
    %cst_11 = arith.constant dense<0.000000e+00> : vector<16xf32>
    %16 = vector.multi_reduction <add>, %15, %cst_11 [1] : vector<16x32xf32> to vector<16xf32>
    %17 = vector.shape_cast %16 : vector<16xf32> to vector<16x1xf32>
    %cst_12 = arith.constant 3.200000e+01 : f32
    %18 = vector.broadcast %cst_12 : f32 to vector<16x1xf32>
    %19 = arith.divf %17, %18 : vector<16x1xf32>
    %20 = vector.broadcast %19 : vector<16x1xf32> to vector<16x32xf32>
    %21 = arith.subf %15, %20 : vector<16x32xf32>
    %22 = arith.mulf %21, %21 : vector<16x32xf32>
    %cst_13 = arith.constant dense<0.000000e+00> : vector<16xf32>
    %23 = vector.multi_reduction <add>, %22, %cst_13 [1] : vector<16x32xf32> to vector<16xf32>
    %24 = vector.shape_cast %23 : vector<16xf32> to vector<16x1xf32>
    %cst_14 = arith.constant 3.200000e+01 : f32
    %25 = vector.broadcast %cst_14 : f32 to vector<16x1xf32>
    %26 = arith.divf %24, %25 : vector<16x1xf32>
    %cst_15 = arith.constant 9.99999974E-6 : f32
    %27 = vector.broadcast %cst_15 : f32 to vector<16x1xf32>
    %28 = arith.addf %26, %27 : vector<16x1xf32>
    %29 = math.rsqrt %28 : vector<16x1xf32>
    %30 = vector.broadcast %29 : vector<16x1xf32> to vector<16x32xf32>
    %31 = arith.mulf %21, %30 : vector<16x32xf32>
    %c0_16 = arith.constant 0 : index
    %c0_17 = arith.constant 0 : index
    %32 = vector.load %arg6[%c0_16, %c0_17] : memref<1x32xf32, #tpu.memory_space<vmem>>, vector<1x32xf32>
    %33 = vector.broadcast %32 : vector<1x32xf32> to vector<16x32xf32>
    %34 = arith.mulf %31, %33 : vector<16x32xf32>
    %c0_18 = arith.constant 0 : index
    %c0_19 = arith.constant 0 : index
    %35 = vector.load %arg7[%c0_18, %c0_19] : memref<1x32xf32, #tpu.memory_space<vmem>>, vector<1x32xf32>
    %36 = vector.broadcast %35 : vector<1x32xf32> to vector<16x32xf32>
    %37 = arith.addf %34, %36 : vector<16x32xf32>
    %c0_20 = arith.constant 0 : index
    %c0_21 = arith.constant 0 : index
    %38 = vector.load %arg8[%c0_20, %c0_21] : memref<16x32xf32, #tpu.memory_space<vmem>>, vector<16x32xf32>
    tpu.vector_store %arg8[%c0_20, %c0_21], %37 {strides = array<i32>} : memref<16x32xf32, #tpu.memory_space<vmem>>, vector<16x32xf32>,
    return
  }
  func.func @transform_0(%arg0: i32) -> (i32, i32) {
    %c0_i32 = arith.constant 0 : i32
    %c0_i32_0 = arith.constant 0 : i32
    return %arg0, %c0_i32 : i32, i32
  }
  func.func @transform_1(%arg0: i32) -> (i32, i32) {
    %c0_i32 = arith.constant 0 : i32
    %c0_i32_0 = arith.constant 0 : i32
    %c0_i32_1 = arith.constant 0 : i32
    return %c0_i32, %c0_i32_0 : i32, i32
  }
  func.func @transform_2(%arg0: i32) -> (i32, i32) {
    %c0_i32 = arith.constant 0 : i32
    %c0_i32_0 = arith.constant 0 : i32
    %c0_i32_1 = arith.constant 0 : i32
    return %c0_i32, %c0_i32_0 : i32, i32
  }
  func.func @transform_3(%arg0: i32) -> (i32, i32) {
    %c0_i32 = arith.constant 0 : i32
    %c0_i32_0 = arith.constant 0 : i32
    %c0_i32_1 = arith.constant 0 : i32
    return %c0_i32, %c0_i32_0 : i32, i32
  }
  func.func @transform_4(%arg0: i32) -> (i32, i32) {
    %c0_i32 = arith.constant 0 : i32
    %c0_i32_0 = arith.constant 0 : i32
    %c0_i32_1 = arith.constant 0 : i32
    return %c0_i32, %c0_i32_0 : i32, i32
  }
  func.func @transform_5(%arg0: i32) -> (i32, i32) {
    %c0_i32 = arith.constant 0 : i32
    %c0_i32_0 = arith.constant 0 : i32
    %c0_i32_1 = arith.constant 0 : i32
    return %c0_i32, %c0_i32_0 : i32, i32
  }
  func.func @transform_6(%arg0: i32) -> (i32, i32) {
    %c0_i32 = arith.constant 0 : i32
    %c0_i32_0 = arith.constant 0 : i32
    %c0_i32_1 = arith.constant 0 : i32
    return %c0_i32, %c0_i32_0 : i32, i32
  }
  func.func @transform_7(%arg0: i32) -> (i32, i32) {
    %c0_i32 = arith.constant 0 : i32
    %c0_i32_0 = arith.constant 0 : i32
    return %arg0, %c0_i32 : i32, i32
  }
}

module attributes {stable_mosaic.version = 11 : i64} {
  func.func @_linear_kernel(%arg0: i32, %arg1: memref<16x32xf32, #tpu.memory_space<vmem>>, %arg2: memref<32x128xbf16, #tpu.memory_space<vmem>>, %arg3: memref<1x128xf32, #tpu.memory_space<vmem>>, %arg4: memref<16x128xf32, #tpu.memory_space<vmem>>) attributes {dimension_semantics = [#tpu.dimension_semantics<parallel>], iteration_bounds = array<i64: 1>, scalar_prefetch = 0 : i64, scratch_operands = 0 : i64, tpu.core_type = #tpu.core_type<tc>, window_params = [{transform_indices = @transform_0, window_bounds = array<i64: 16, 32>}, {pipeline_mode = #tpu.pipeline_mode<synchronous>, transform_indices = @transform_1, window_bounds = array<i64: 32, 128>}, {pipeline_mode = #tpu.pipeline_mode<synchronous>, transform_indices = @transform_2, window_bounds = array<i64: 1, 128>}, {transform_indices = @transform_3, window_bounds = array<i64: 16, 128>}]} {
    %c0 = arith.constant 0 : index
    %c0_0 = arith.constant 0 : index
    %0 = vector.load %arg1[%c0, %c0_0] : memref<16x32xf32, #tpu.memory_space<vmem>>, vector<16x32xf32>
    %1 = arith.truncf %0 : vector<16x32xf32> to vector<16x32xbf16>
    %c0_1 = arith.constant 0 : index
    %c0_2 = arith.constant 0 : index
    %2 = vector.load %arg2[%c0_1, %c0_2] : memref<32x128xbf16, #tpu.memory_space<vmem>>, vector<32x128xbf16>
    %cst = arith.constant dense<0.000000e+00> : vector<16x128xf32>
    %3 = tpu.matmul %1, %2, %cst {dimension_numbers = #tpu.dot_dimension_numbers<[1], [0], [0], [1], [0, 0, 1, 1], [], []>} : vector<16x32xbf16>, vector<32x128xbf16>, vector<16x128xf32> -> vector<16x128xf32>
    %c0_3 = arith.constant 0 : index
    %c0_4 = arith.constant 0 : index
    %4 = vector.load %arg3[%c0_3, %c0_4] : memref<1x128xf32, #tpu.memory_space<vmem>>, vector<1x128xf32>
    %5 = vector.broadcast %4 : vector<1x128xf32> to vector<16x128xf32>
    %6 = arith.addf %3, %5 : vector<16x128xf32>
    %c0_5 = arith.constant 0 : index
    %c0_6 = arith.constant 0 : index
    %7 = vector.load %arg4[%c0_5, %c0_6] : memref<16x128xf32, #tpu.memory_space<vmem>>, vector<16x128xf32>
    tpu.vector_store %arg4[%c0_5, %c0_6], %6 {strides = array<i32>} : memref<16x128xf32, #tpu.memory_space<vmem>>, vector<16x128xf32>,
    return
  }
  func.func @transform_0(%arg0: i32) -> (i32, i32) {
    %c0_i32 = arith.constant 0 : i32
    %c0_i32_0 = arith.constant 0 : i32
    return %arg0, %c0_i32 : i32, i32
  }
  func.func @transform_1(%arg0: i32) -> (i32, i32) {
    %c0_i32 = arith.constant 0 : i32
    %c0_i32_0 = arith.constant 0 : i32
    %c0_i32_1 = arith.constant 0 : i32
    return %c0_i32, %c0_i32_0 : i32, i32
  }
  func.func @transform_2(%arg0: i32) -> (i32, i32) {
    %c0_i32 = arith.constant 0 : i32
    %c0_i32_0 = arith.constant 0 : i32
    %c0_i32_1 = arith.constant 0 : i32
    return %c0_i32, %c0_i32_0 : i32, i32
  }
  func.func @transform_3(%arg0: i32) -> (i32, i32) {
    %c0_i32 = arith.constant 0 : i32
    %c0_i32_0 = arith.constant 0 : i32
    return %arg0, %c0_i32 : i32, i32
  }
}

</mosaic_0001>

<llo_original>
// kernel: transformer_forward.14
$region0: #{transformer_forward.14}
  #allocation0 [shape = 'u32[]', space=smem, size = 0x4, offset = 0x4, fixed_abs, tag = 'smem constant byte address 0x4 - core index']
  #allocation1 [shape = 'u32[144,128]{1,0:T(1,128)}', space=vmem, size = 0x12000, scoped, tag = 'internal scratch']
  %s0 = inlined_call_operand.vmem [shape: f32[16,32], index: 0, kind: input, shape index: {}]
  %s1 = inlined_call_operand.vmem [shape: bf16[32,64], index: 1, kind: input, shape index: {}]
  %s2 = inlined_call_operand.vmem [shape: f32[1,64], index: 2, kind: input, shape index: {}]
  %s3 = inlined_call_operand.vmem [shape: bf16[64,32], index: 3, kind: input, shape index: {}]
  %s4 = inlined_call_operand.vmem [shape: f32[1,32], index: 4, kind: input, shape index: {}]
  %s5 = inlined_call_operand.vmem [shape: f32[1,32], index: 5, kind: input, shape index: {}]
  %s6 = inlined_call_operand.vmem [shape: f32[1,32], index: 6, kind: input, shape index: {}]
  %s7 = inlined_call_operand.vmem [shape: f32[16,32], index: 7, kind: output, shape index: {}]
  %s8 = sld [smem:[#allocation0]]
  $region38: #{transformer_forward.14} parent=0
    _
  %s10 = ssub.s32 1, %s8
  %s11 = scalar_select 0, %s10, %s8
  // Predicated region
  $region2: #{transformer_forward.14} parent=0 // pred_check
    _
  $region3: #{transformer_forward.14} parent=0 // pred_check_branch
    %13 = sbr.rel (0) target = $region5
  $region4: #{transformer_forward.14} parent=0 // pred_region
    _
  $region5: #{transformer_forward.14} parent=0 // pred_fallthru
    _
  // Predicated region
  $region6: #{transformer_forward.14} parent=0 // pred_check
    _
  $region7: #{transformer_forward.14} parent=0 // pred_check_branch
    %15 = sbr.rel (0) target = $region9
  $region8: #{transformer_forward.14} parent=0 // pred_region
    _
  $region9: #{transformer_forward.14} parent=0 // pred_fallthru
    _
  // Predicated region
  $region10: #{transformer_forward.14} parent=0 // pred_check
    _
  $region11: #{transformer_forward.14} parent=0 // pred_check_branch
    %17 = sbr.rel (0) target = $region13
  $region12: #{transformer_forward.14} parent=0 // pred_region
    _
  $region13: #{transformer_forward.14} parent=0 // pred_fallthru
    _
  // Predicated region
  $region14: #{transformer_forward.14} parent=0 // pred_check
    _
  $region15: #{transformer_forward.14} parent=0 // pred_check_branch
    %19 = sbr.rel (0) target = $region17
  $region16: #{transformer_forward.14} parent=0 // pred_region
    _
  $region17: #{transformer_forward.14} parent=0 // pred_fallthru
    _
  // Predicated region
  $region18: #{transformer_forward.14} parent=0 // pred_check
    _
  $region19: #{transformer_forward.14} parent=0 // pred_check_branch
    %21 = sbr.rel (0) target = $region21
  $region20: #{transformer_forward.14} parent=0 // pred_region
    _
  $region21: #{transformer_forward.14} parent=0 // pred_fallthru
    _
  // Predicated region
  $region22: #{transformer_forward.14} parent=0 // pred_check
    _
  $region23: #{transformer_forward.14} parent=0 // pred_check_branch
    %23 = sbr.rel (0) target = $region25
  $region24: #{transformer_forward.14} parent=0 // pred_region
    _
  $region25: #{transformer_forward.14} parent=0 // pred_fallthru
    _
  // Predicated region
  $region26: #{transformer_forward.14} parent=0 // pred_check
    _
  $region27: #{transformer_forward.14} parent=0 // pred_check_branch
    %25 = sbr.rel (0) target = $region29
  $region28: #{transformer_forward.14} parent=0 // pred_region
    _
  $region29: #{transformer_forward.14} parent=0 // pred_fallthru
    _
  %v27 = vld [vmem:[%s0] sm:$0xff]
  %v28 = vld [vmem:[%s0 + $0x8] sm:$0xff]
  %v29 = vpack.c.bf16 %v28, %v27
  %v30 = vld [vmem:[%s1] sm:$0xf]
  %v31 = vld [vmem:[%s1 + $0x4] sm:$0xf]
  %v32 = vld [vmem:[%s1 + $0x8] sm:$0xf]
  %v33 = vld [vmem:[%s1 + $0xc] sm:$0xf]
  %v34 = vld [vmem:[%s2] sm:$0x1]
  %v36 = vlaneseq
  %v37 = vshrl.u32 %v36, 7
  %v38 = vsub.s32 0, %v37
  %v39 = vrot.slane %v34, %v38
  %v45 = vunpack.c.l.b16 %v30
  %v46 = vunpack.c.l.b16 %v31
  %v47 = vunpack.c.l.b16 %v32
  %v48 = vunpack.c.l.b16 %v33
  %v49 = vpack.c.b16 %v46, %v45
  %v50 = vpack.c.b16 %v48, %v47
  %vm53 = vcmask 261120
  %v55 = vsel %vm53, %v29, 0
  %57 = vmatprep.subr.bf16.mxu0 0
  %58 = vmatpush1.bf16.msra.mxu0 0
  %59 = vmatprep.subr.bf16.mxu0 0
  %60 = vmatpush1.bf16.msra.mxu0 0
  %61 = vmatprep.subr.bf16.mxu0 0
  %62 = vmatpush1.bf16.msra.mxu0 0
  %63 = vmatprep.subr.bf16.mxu0 0
  %64 = vmatpush1.bf16.msra.mxu0 0
  %65 = vmatprep.subr.bf16.mxu0 0
  %66 = vmatpush1.bf16.msra.mxu0 0
  %67 = vmatprep.subr.bf16.mxu0 0
  %68 = vmatpush1.bf16.msra.mxu0 0
  %69 = vmatprep.subr.bf16.mxu0 0
  %70 = vmatpush1.bf16.msra.mxu0 %v50
  %71 = vmatprep.subr.bf16.mxu0 0
  %72 = vmatpush1.bf16.msra.mxu0 %v49
  %73 = vmatprep.subr.bf16.mxu0 0
  %74 = vmatpush2.bf16.msra.mxu0 0
  %75 = vmatprep.subr.bf16.mxu0 0
  %76 = vmatpush2.bf16.msra.mxu0 0
  %77 = vmatprep.subr.bf16.mxu0 0
  %78 = vmatpush2.bf16.msra.mxu0 0
  %79 = vmatprep.subr.bf16.mxu0 0
  %80 = vmatpush2.bf16.msra.mxu0 0
  %81 = vmatprep.subr.bf16.mxu0 0
  %82 = vmatpush2.bf16.msra.mxu0 0
  %83 = vmatprep.subr.bf16.mxu0 0
  %84 = vmatpush2.bf16.msra.mxu0 0
  %85 = vmatprep.subr.bf16.mxu0 0
  %86 = vmatpush2.bf16.msra.mxu0 0
  %87 = vmatprep.subr.bf16.mxu0 0
  %88 = vmatpush2.bf16.msra.mxu0 0
  %89 = vmatprep.mubr.bf16.mxu0 0
  %90 = vmatmul.mubr.bf16.gmra.mxu0 %v55
  %v91 = vpop.f32.mrf.mxu0
  %v92 = vadd.f32 %v39, %v91
  %v93 = vpop.f32.mrf.mxu0
  %v94 = vpop.f32.mrf.mxu0
  %v95 = vadd.f32 %v39, %v94
  %v96 = vpop.f32.mrf.mxu0
  %97 = vdwg.mxu0
  %v98 = vmax.f32 %v92, 0.0
  %v99 = vmax.f32 %v95, 0.0
  %v100 = vpack.c.bf16 %v99, %v98
  %v101 = vld [vmem:[%s3] sm:$0xf]
  %v102 = vld [vmem:[%s3 + $0x4] sm:$0xf]
  %v103 = vld [vmem:[%s3 + $0x8] sm:$0xf]
  %v104 = vld [vmem:[%s3 + $0xc] sm:$0xf]
  %v105 = vld [vmem:[%s3 + $0x10] sm:$0xf]
  %v106 = vld [vmem:[%s3 + $0x14] sm:$0xf]
  %v107 = vld [vmem:[%s3 + $0x18] sm:$0xf]
  %v108 = vld [vmem:[%s3 + $0x1c] sm:$0xf]
  %v109 = vld [vmem:[%s4] sm:$0x1]
  %v111 = vlaneseq
  %v112 = vshrl.u32 %v111, 7
  %v113 = vsub.s32 0, %v112
  %v114 = vrot.slane %v109, %v113
  %v124 = vunpack.c.l.b16 %v101
  %v125 = vunpack.c.l.b16 %v102
  %v126 = vunpack.c.l.b16 %v103
  %v127 = vunpack.c.l.b16 %v104
  %v128 = vunpack.c.l.b16 %v105
  %v129 = vunpack.c.l.b16 %v106
  %v130 = vunpack.c.l.b16 %v107
  %v131 = vunpack.c.l.b16 %v108
  %v132 = vpack.c.b16 %v125, %v124
  %v133 = vpack.c.b16 %v127, %v126
  %v134 = vpack.c.b16 %v129, %v128
  %v135 = vpack.c.b16 %v131, %v130
  %vm140 = vcmask 523264
  %v142 = vsel %vm140, %v100, 0
  %144 = vmatprep.subr.bf16.mxu0 0
  %145 = vmatpush1.bf16.msra.mxu0 0
  %146 = vmatprep.subr.bf16.mxu0 0
  %147 = vmatpush1.bf16.msra.mxu0 0
  %148 = vmatprep.subr.bf16.mxu0 0
  %149 = vmatpush1.bf16.msra.mxu0 0
  %150 = vmatprep.subr.bf16.mxu0 0
  %151 = vmatpush1.bf16.msra.mxu0 0
  %152 = vmatprep.subr.bf16.mxu0 0
  %153 = vmatpush1.bf16.msra.mxu0 %v135
  %154 = vmatprep.subr.bf16.mxu0 0
  %155 = vmatpush1.bf16.msra.mxu0 %v134
  %156 = vmatprep.subr.bf16.mxu0 0
  %157 = vmatpush1.bf16.msra.mxu0 %v133
  %158 = vmatprep.subr.bf16.mxu0 0
  %159 = vmatpush1.bf16.msra.mxu0 %v132
  %160 = vmatprep.subr.bf16.mxu0 0
  %161 = vmatpush2.bf16.msra.mxu0 0
  %162 = vmatprep.subr.bf16.mxu0 0
  %163 = vmatpush2.bf16.msra.mxu0 0
  %164 = vmatprep.subr.bf16.mxu0 0
  %165 = vmatpush2.bf16.msra.mxu0 0
  %166 = vmatprep.subr.bf16.mxu0 0
  %167 = vmatpush2.bf16.msra.mxu0 0
  %168 = vmatprep.subr.bf16.mxu0 0
  %169 = vmatpush2.bf16.msra.mxu0 0
  %170 = vmatprep.subr.bf16.mxu0 0
  %171 = vmatpush2.bf16.msra.mxu0 0
  %172 = vmatprep.subr.bf16.mxu0 0
  %173 = vmatpush2.bf16.msra.mxu0 0
  %174 = vmatprep.subr.bf16.mxu0 0
  %175 = vmatpush2.bf16.msra.mxu0 0
  %176 = vmatprep.mubr.bf16.mxu0 0
  %177 = vmatmul.mubr.bf16.gmra.mxu0 %v142
  %v178 = vpop.f32.mrf.mxu0
  %v179 = vadd.f32 %v114, %v178
  %v180 = vpop.f32.mrf.mxu0
  %v181 = vpop.f32.mrf.mxu0
  %v182 = vadd.f32 %v114, %v181
  %v183 = vpop.f32.mrf.mxu0
  %184 = vdwg.mxu0
  %v185 = vadd.f32 %v27, %v179
  %v186 = vadd.f32 %v28, %v182
  %v187 = vsel %vm53, %v185, 0.0
  %188 = vadd.xlane.f32.xlu0 %v187
  %v189 = vpop.xlane.xlu0 %188
  %v190 = vsel %vm53, %v186, 0.0
  %191 = vadd.xlane.f32.xlu0 %v190
  %v192 = vpop.xlane.xlu0 %191
  %v193 = vrcp.pop 32.0
  %v194 = vmul.f32 %v189, %v193
  %v195 = vmul.f32 %v192, %v193
  %v196 = vsub.f32 %v185, %v194
  %v197 = vsub.f32 %v186, %v195
  %v198 = vmul.f32 %v196, %v196
  %v199 = vmul.f32 %v197, %v197
  %v200 = vsel %vm53, %v198, 0.0
  %201 = vadd.xlane.f32.xlu0 %v200
  %v202 = vpop.xlane.xlu0 %201
  %v203 = vsel %vm53, %v199, 0.0
  %204 = vadd.xlane.f32.xlu0 %v203
  %v205 = vpop.xlane.xlu0 %204
  %v206 = vmul.f32 %v202, %v193
  %v207 = vmul.f32 %v205, %v193
  %v208 = vadd.f32 %v206, 1e-05
  %v209 = vadd.f32 %v207, 1e-05
  %v210 = vrsqrt.pop %v208
  %v211 = vrsqrt.pop %v209
  %v212 = vmul.f32 %v196, %v210
  %v213 = vmul.f32 %v197, %v211
  %v214 = vld [vmem:[%s5] sm:$0x1]
  %v216 = vlaneseq
  %v217 = vshrl.u32 %v216, 7
  %v218 = vsub.s32 0, %v217
  %v219 = vrot.slane %v214, %v218
  %v221 = vmul.f32 %v212, %v219
  %v222 = vmul.f32 %v213, %v219
  %v223 = vld [vmem:[%s6] sm:$0x1]
  %v225 = vlaneseq
  %v226 = vshrl.u32 %v225, 7
  %v227 = vsub.s32 0, %v226
  %v228 = vrot.slane %v223, %v227
  %v230 = vadd.f32 %v221, %v228
  %v231 = vadd.f32 %v222, %v228
  %232 = vst.msk [vmem:[%s7] sm:$0xff] %vm53, %v230
  %233 = vst.msk [vmem:[%s7 + $0x8] sm:$0xff] %vm53, %v231
  // Predicated region
  $region30: #{transformer_forward.14} parent=0 // pred_check
    _
  $region31: #{transformer_forward.14} parent=0 // pred_check_branch
    %235 = sbr.rel (0) target = $region33
  $region32: #{transformer_forward.14} parent=0 // pred_region
    _
  $region33: #{transformer_forward.14} parent=0 // pred_fallthru
    _
  // Predicated region
  $region34: #{transformer_forward.14} parent=0 // pred_check
    _
  $region35: #{transformer_forward.14} parent=0 // pred_check_branch
    %237 = sbr.rel (0) target = $region37
  $region36: #{transformer_forward.14} parent=0 // pred_region
    _
  $region37: #{transformer_forward.14} parent=0 // pred_fallthru
    _

// kernel: transformer_forward.17
$region0: #{transformer_forward.17}
  #allocation0 [shape = 'u32[]', space=smem, size = 0x4, offset = 0x4, fixed_abs, tag = 'smem constant byte address 0x4 - core index']
  #allocation1 [shape = 'u32[144,128]{1,0:T(1,128)}', space=vmem, size = 0x12000, scoped, tag = 'internal scratch']
  %s0 = inlined_call_operand.vmem [shape: f32[16,32], index: 0, kind: input, shape index: {}]
  %s1 = inlined_call_operand.vmem [shape: f32[1,32], index: 1, kind: input, shape index: {}]
  %s2 = inlined_call_operand.vmem [shape: f32[1,32], index: 2, kind: input, shape index: {}]
  %s3 = inlined_call_operand.vmem [shape: f32[16,32], index: 3, kind: output, shape index: {}]
  %s4 = sld [smem:[#allocation0]]
  $region22: #{transformer_forward.17} parent=0
    _
  %s6 = ssub.s32 1, %s4
  %s7 = scalar_select 0, %s6, %s4
  // Predicated region
  $region2: #{transformer_forward.17} parent=0 // pred_check
    _
  $region3: #{transformer_forward.17} parent=0 // pred_check_branch
    %9 = sbr.rel (0) target = $region5
  $region4: #{transformer_forward.17} parent=0 // pred_region
    _
  $region5: #{transformer_forward.17} parent=0 // pred_fallthru
    _
  // Predicated region
  $region6: #{transformer_forward.17} parent=0 // pred_check
    _
  $region7: #{transformer_forward.17} parent=0 // pred_check_branch
    %11 = sbr.rel (0) target = $region9
  $region8: #{transformer_forward.17} parent=0 // pred_region
    _
  $region9: #{transformer_forward.17} parent=0 // pred_fallthru
    _
  // Predicated region
  $region10: #{transformer_forward.17} parent=0 // pred_check
    _
  $region11: #{transformer_forward.17} parent=0 // pred_check_branch
    %13 = sbr.rel (0) target = $region13
  $region12: #{transformer_forward.17} parent=0 // pred_region
    _
  $region13: #{transformer_forward.17} parent=0 // pred_fallthru
    _
  %v14 = vld [vmem:[%s0] sm:$0xff]
  %v15 = vld [vmem:[%s0 + $0x8] sm:$0xff]
  %vm16 = vcmask 261120
  %v17 = vsel %vm16, %v14, 0.0
  %18 = vadd.xlane.f32.xlu0 %v17
  %v19 = vpop.xlane.xlu0 %18
  %v20 = vsel %vm16, %v15, 0.0
  %21 = vadd.xlane.f32.xlu0 %v20
  %v22 = vpop.xlane.xlu0 %21
  %v23 = vrcp.pop 32.0
  %v24 = vmul.f32 %v19, %v23
  %v25 = vmul.f32 %v22, %v23
  %v26 = vsub.f32 %v14, %v24
  %v27 = vsub.f32 %v15, %v25
  %v28 = vmul.f32 %v26, %v26
  %v29 = vmul.f32 %v27, %v27
  %v30 = vsel %vm16, %v28, 0.0
  %31 = vadd.xlane.f32.xlu0 %v30
  %v32 = vpop.xlane.xlu0 %31
  %v33 = vsel %vm16, %v29, 0.0
  %34 = vadd.xlane.f32.xlu0 %v33
  %v35 = vpop.xlane.xlu0 %34
  %v36 = vmul.f32 %v32, %v23
  %v37 = vmul.f32 %v35, %v23
  %v38 = vadd.f32 %v36, 1e-05
  %v39 = vadd.f32 %v37, 1e-05
  %v40 = vrsqrt.pop %v38
  %v41 = vrsqrt.pop %v39
  %v42 = vmul.f32 %v26, %v40
  %v43 = vmul.f32 %v27, %v41
  %v44 = vld [vmem:[%s1] sm:$0x1]
  %v46 = vlaneseq
  %v47 = vshrl.u32 %v46, 7
  %v48 = vsub.s32 0, %v47
  %v49 = vrot.slane %v44, %v48
  %v51 = vmul.f32 %v42, %v49
  %v52 = vmul.f32 %v43, %v49
  %v53 = vld [vmem:[%s2] sm:$0x1]
  %v55 = vlaneseq
  %v56 = vshrl.u32 %v55, 7
  %v57 = vsub.s32 0, %v56
  %v58 = vrot.slane %v53, %v57
  %v60 = vadd.f32 %v51, %v58
  %v61 = vadd.f32 %v52, %v58
  %62 = vst.msk [vmem:[%s3] sm:$0xff] %vm16, %v60
  %63 = vst.msk [vmem:[%s3 + $0x8] sm:$0xff] %vm16, %v61
  // Predicated region
  $region14: #{transformer_forward.17} parent=0 // pred_check
    _
  $region15: #{transformer_forward.17} parent=0 // pred_check_branch
    %65 = sbr.rel (0) target = $region17
  $region16: #{transformer_forward.17} parent=0 // pred_region
    _
  $region17: #{transformer_forward.17} parent=0 // pred_fallthru
    _
  // Predicated region
  $region18: #{transformer_forward.17} parent=0 // pred_check
    _
  $region19: #{transformer_forward.17} parent=0 // pred_check_branch
    %67 = sbr.rel (0) target = $region21
  $region20: #{transformer_forward.17} parent=0 // pred_region
    _
  $region21: #{transformer_forward.17} parent=0 // pred_fallthru
    _

// kernel: transformer_forward.25
$region0: #{transformer_forward.25}
  #allocation0 [shape = 'u32[]', space=smem, size = 0x4, offset = 0x4, fixed_abs, tag = 'smem constant byte address 0x4 - core index']
  #allocation1 [shape = 'u32[144,128]{1,0:T(1,128)}', space=vmem, size = 0x12000, scoped, tag = 'internal scratch']
  %s0 = inlined_call_operand.vmem [shape: f32[16,32], index: 0, kind: input, shape index: {}]
  %s1 = inlined_call_operand.vmem [shape: bf16[32,128], index: 1, kind: input, shape index: {}]
  %s2 = inlined_call_operand.vmem [shape: f32[1,128], index: 2, kind: input, shape index: {}]
  %s3 = inlined_call_operand.vmem [shape: f32[16,128], index: 3, kind: output, shape index: {}]
  %s4 = sld [smem:[#allocation0]]
  $region22: #{transformer_forward.25} parent=0
    _
  %s6 = ssub.s32 1, %s4
  %s7 = scalar_select 0, %s6, %s4
  // Predicated region
  $region2: #{transformer_forward.25} parent=0 // pred_check
    _
  $region3: #{transformer_forward.25} parent=0 // pred_check_branch
    %9 = sbr.rel (0) target = $region5
  $region4: #{transformer_forward.25} parent=0 // pred_region
    _
  $region5: #{transformer_forward.25} parent=0 // pred_fallthru
    _
  // Predicated region
  $region6: #{transformer_forward.25} parent=0 // pred_check
    _
  $region7: #{transformer_forward.25} parent=0 // pred_check_branch
    %11 = sbr.rel (0) target = $region9
  $region8: #{transformer_forward.25} parent=0 // pred_region
    _
  $region9: #{transformer_forward.25} parent=0 // pred_fallthru
    _
  // Predicated region
  $region10: #{transformer_forward.25} parent=0 // pred_check
    _
  $region11: #{transformer_forward.25} parent=0 // pred_check_branch
    %13 = sbr.rel (0) target = $region13
  $region12: #{transformer_forward.25} parent=0 // pred_region
    _
  $region13: #{transformer_forward.25} parent=0 // pred_fallthru
    _
  %v15 = vld [vmem:[%s0] sm:$0xff]
  %v16 = vld [vmem:[%s0 + $0x8] sm:$0xff]
  %v17 = vpack.c.bf16 %v16, %v15
  %v18 = vld [vmem:[%s1] sm:$0xf]
  %v19 = vld [vmem:[%s1 + $0x4] sm:$0xf]
  %v20 = vld [vmem:[%s1 + $0x8] sm:$0xf]
  %v21 = vld [vmem:[%s1 + $0xc] sm:$0xf]
  %v22 = vld [vmem:[%s2] sm:$0x1]
  %v24 = vlaneseq
  %v25 = vshrl.u32 %v24, 7
  %v26 = vsub.s32 0, %v25
  %v27 = vrot.slane %v22, %v26
  %v33 = vunpack.c.l.b16 %v18
  %v34 = vunpack.c.l.b16 %v19
  %v35 = vunpack.c.l.b16 %v20
  %v36 = vunpack.c.l.b16 %v21
  %v37 = vpack.c.b16 %v34, %v33
  %v38 = vpack.c.b16 %v36, %v35
  %vm41 = vcmask 261120
  %v43 = vsel %vm41, %v17, 0
  %45 = vmatprep.subr.bf16.mxu0 0
  %46 = vmatpush1.bf16.msra.mxu0 0
  %47 = vmatprep.subr.bf16.mxu0 0
  %48 = vmatpush1.bf16.msra.mxu0 0
  %49 = vmatprep.subr.bf16.mxu0 0
  %50 = vmatpush1.bf16.msra.mxu0 0
  %51 = vmatprep.subr.bf16.mxu0 0
  %52 = vmatpush1.bf16.msra.mxu0 0
  %53 = vmatprep.subr.bf16.mxu0 0
  %54 = vmatpush1.bf16.msra.mxu0 0
  %55 = vmatprep.subr.bf16.mxu0 0
  %56 = vmatpush1.bf16.msra.mxu0 0
  %57 = vmatprep.subr.bf16.mxu0 0
  %58 = vmatpush1.bf16.msra.mxu0 %v38
  %59 = vmatprep.subr.bf16.mxu0 0
  %60 = vmatpush1.bf16.msra.mxu0 %v37
  %61 = vmatprep.subr.bf16.mxu0 0
  %62 = vmatpush2.bf16.msra.mxu0 0
  %63 = vmatprep.subr.bf16.mxu0 0
  %64 = vmatpush2.bf16.msra.mxu0 0
  %65 = vmatprep.subr.bf16.mxu0 0
  %66 = vmatpush2.bf16.msra.mxu0 0
  %67 = vmatprep.subr.bf16.mxu0 0
  %68 = vmatpush2.bf16.msra.mxu0 0
  %69 = vmatprep.subr.bf16.mxu0 0
  %70 = vmatpush2.bf16.msra.mxu0 0
  %71 = vmatprep.subr.bf16.mxu0 0
  %72 = vmatpush2.bf16.msra.mxu0 0
  %73 = vmatprep.subr.bf16.mxu0 0
  %74 = vmatpush2.bf16.msra.mxu0 0
  %75 = vmatprep.subr.bf16.mxu0 0
  %76 = vmatpush2.bf16.msra.mxu0 0
  %77 = vmatprep.mubr.bf16.mxu0 0
  %78 = vmatmul.mubr.bf16.gmra.mxu0 %v43
  %v79 = vpop.f32.mrf.mxu0
  %v80 = vadd.f32 %v27, %v79
  %v81 = vpop.f32.mrf.mxu0
  %v82 = vpop.f32.mrf.mxu0
  %v83 = vadd.f32 %v27, %v82
  %v84 = vpop.f32.mrf.mxu0
  %85 = vdwg.mxu0
  %86 = vst [vmem:[%s3] sm:$0xff] %v80
  %87 = vst [vmem:[%s3 + $0x8] sm:$0xff] %v83
  // Predicated region
  $region14: #{transformer_forward.25} parent=0 // pred_check
    _
  $region15: #{transformer_forward.25} parent=0 // pred_check_branch
    %89 = sbr.rel (0) target = $region17
  $region16: #{transformer_forward.25} parent=0 // pred_region
    _
  $region17: #{transformer_forward.25} parent=0 // pred_fallthru
    _
  // Predicated region
  $region18: #{transformer_forward.25} parent=0 // pred_check
    _
  $region19: #{transformer_forward.25} parent=0 // pred_check_branch
    %91 = sbr.rel (0) target = $region21
  $region20: #{transformer_forward.25} parent=0 // pred_region
    _
  $region21: #{transformer_forward.25} parent=0 // pred_fallthru
    _

// kernel: transformer_forward.18
$region0: #{transformer_forward.18}
  #allocation0 [shape = 'u32[]', space=smem, size = 0x4, offset = 0x4, fixed_abs, tag = 'smem constant byte address 0x4 - core index']
  #allocation1 [shape = 'u32[144,128]{1,0:T(1,128)}', space=vmem, size = 0x12000, scoped, tag = 'internal scratch']
  %s0 = inlined_call_operand.vmem [shape: f32[2,8,32], index: 0, kind: input, shape index: {}, may-alias: {0,1}]
  %s1 = inlined_call_operand.vmem [shape: f32[2,8,32], index: 1, kind: input, shape index: {}, may-alias: {0,1}]
  %s2 = inlined_call_operand.vmem [shape: bf16[4,32,8], index: 2, kind: input, shape index: {}]
  %s3 = inlined_call_operand.vmem [shape: f32[4,1,8], index: 3, kind: input, shape index: {}]
  %s4 = inlined_call_operand.vmem [shape: bf16[4,32,8], index: 4, kind: input, shape index: {}]
  %s5 = inlined_call_operand.vmem [shape: f32[4,1,8], index: 5, kind: input, shape index: {}]
  %s6 = inlined_call_operand.vmem [shape: bf16[4,32,8], index: 6, kind: input, shape index: {}]
  %s7 = inlined_call_operand.vmem [shape: f32[4,1,8], index: 7, kind: input, shape index: {}]
  %s8 = inlined_call_operand.vmem [shape: bf16[4,8,32], index: 8, kind: input, shape index: {}]
  %s9 = inlined_call_operand.vmem [shape: f32[1,32], index: 9, kind: input, shape index: {}]
  %s10 = inlined_call_operand.vmem [shape: f32[1,32], index: 10, kind: input, shape index: {}]
  %s11 = inlined_call_operand.vmem [shape: f32[1,32], index: 11, kind: input, shape index: {}]
  %s12 = inlined_call_operand.vmem [shape: f32[8,8], index: 12, kind: input, shape index: {}]
  %s13 = inlined_call_operand.vmem [shape: f32[2,8,32], index: 13, kind: output, shape index: {}]
  %s14 = sld [smem:[#allocation0]]
  $region85: #{transformer_forward.18} parent=0
    _
  %s16 = ssub.s32 1, %s14
  %s17 = scalar_select 0, %s16, %s14
  loop: start=0, step=1, limit=4
  $region2: #{transformer_forward.18} parent=0 // loop_pre_header
    _
  $region3: #{transformer_forward.18} parent=0 // loop_header
    %s19 = sphi 0, %s23
    %p20 = scmp.ge.s32.totalorder %s19, 4
    %s29 = sphi 0, %s31
    %s32 = sphi 0, %s29
    %s33 = sphi 0, %s32
    %s49 = sphi 0, %s33
    %s55 = sphi 0, %s57
    %s58 = sphi 0, %s55
    %s59 = sphi 0, %s58
    %s75 = sphi 0, %s59
    %s79 = sphi 0, %s79
    %s81 = sphi 0, %s79
    %s82 = sphi 0, %s81
    %s96 = sphi 0, %s82
    %s100 = sphi 0, %s100
    %s102 = sphi 0, %s100
    %s103 = sphi 0, %s102
    %s117 = sphi 0, %s103
    %s121 = sphi 0, %s121
    %s123 = sphi 0, %s121
    %s124 = sphi 0, %s123
    %s138 = sphi 0, %s124
    %s142 = sphi 0, %s142
    %s144 = sphi 0, %s142
    %s145 = sphi 0, %s144
    %s159 = sphi 0, %s145
    %s163 = sphi 0, %s163
    %s165 = sphi 0, %s163
    %s166 = sphi 0, %s165
    %s180 = sphi 0, %s166
    %s184 = sphi 0, %s184
    %s186 = sphi 0, %s184
    %s187 = sphi 0, %s186
    %s201 = sphi 0, %s187
    %s205 = sphi 0, %s205
    %s207 = sphi 0, %s205
    %s208 = sphi 0, %s207
    %s222 = sphi 0, %s208
    %s226 = sphi 0, %s226
    %s228 = sphi 0, %s226
    %s229 = sphi 0, %s228
    %s243 = sphi 0, %s229
    %s247 = sphi 0, %s247
    %s249 = sphi 0, %s247
    %s250 = sphi 0, %s249
    %s264 = sphi 0, %s250
    %s268 = sphi 0, %s268
    %s270 = sphi 0, %s268
    %s271 = sphi 0, %s270
    %s285 = sphi 0, %s271
    %s289 = sphi 0, %s289
    %s291 = sphi 0, %s289
    %s292 = sphi 0, %s291
    %s306 = sphi 0, %s292
    %s312 = sphi 0, %s314
    %s315 = sphi 0, %s312
    %s316 = sphi 0, %s315
    %s332 = sphi 0, %s316
  $region4: #{transformer_forward.18} parent=0 // loop_header_branch
    %22 = sbr.rel (%p20) target = $region8
  $region5: #{transformer_forward.18} parent=0 // loop_body
    %s24 = ssub.s32 %s19, 1
    %s25 = ssub.s32 %s19, 2
    %s26 = sadd.s32 %s19, 1
    %s27 = ssub.s32 %s19, %s26
    %p28 = scmp.eq.s32.totalorder %s27, 0
    %s30 = sadd.s32 %s29, 1
    %s31 = scalar_select %p28, %s29, %s30
    %p34 = pneg %p28
    %p35 = scmp.eq.s32.totalorder %s19, 1
    %p36 = por %p34, %p35
    %p37 = scmp.ne.s32.totalorder %s29, %s32
    %p38 = scmp.eq.s32.totalorder %s19, 0
    %p39 = por %p37, %p38
    %p40 = scmp.ne.s32.totalorder %s29, %s32
    %p41 = scmp.eq.s32.totalorder %s24, 1
    %p42 = por %p40, %p41
    %p43 = scmp.ne.s32.totalorder %s32, %s33
    %p44 = scmp.eq.s32.totalorder %s24, 0
    %p45 = por %p43, %p44
    %p46 = scmp.ne.s32.totalorder %s32, %s33
    %p47 = scmp.eq.s32.totalorder %s25, 1
    %p48 = por %p46, %p47
    %p50 = scmp.ne.s32.totalorder %s33, %s49
    %p51 = scmp.eq.s32.totalorder %s25, 0
    %p52 = por %p50, %p51
    %s53 = ssub.s32 %s19, %s26
    %p54 = scmp.eq.s32.totalorder %s53, 0
    %s56 = sadd.s32 %s55, 1
    %s57 = scalar_select %p54, %s55, %s56
    %p60 = pneg %p54
    %p61 = scmp.eq.s32.totalorder %s19, 1
    %p62 = por %p60, %p61
    %p63 = scmp.ne.s32.totalorder %s55, %s58
    %p64 = scmp.eq.s32.totalorder %s19, 0
    %p65 = por %p63, %p64
    %p66 = scmp.ne.s32.totalorder %s55, %s58
    %p67 = scmp.eq.s32.totalorder %s24, 1
    %p68 = por %p66, %p67
    %p69 = scmp.ne.s32.totalorder %s58, %s59
    %p70 = scmp.eq.s32.totalorder %s24, 0
    %p71 = por %p69, %p70
    %p72 = scmp.ne.s32.totalorder %s58, %s59
    %p73 = scmp.eq.s32.totalorder %s25, 1
    %p74 = por %p72, %p73
    %p76 = scmp.ne.s32.totalorder %s59, %s75
    %p77 = scmp.eq.s32.totalorder %s25, 0
    %p78 = por %p76, %p77
    %s80 = sadd.s32 %s79, 1
    %p83 = scmp.eq.s32.totalorder %s19, 1
    %p84 = scmp.ne.s32.totalorder %s79, %s81
    %p85 = scmp.eq.s32.totalorder %s19, 0
    %p86 = por %p84, %p85
    %p87 = scmp.ne.s32.totalorder %s79, %s81
    %p88 = scmp.eq.s32.totalorder %s24, 1
    %p89 = por %p87, %p88
    %p90 = scmp.ne.s32.totalorder %s81, %s82
    %p91 = scmp.eq.s32.totalorder %s24, 0
    %p92 = por %p90, %p91
    %p93 = scmp.ne.s32.totalorder %s81, %s82
    %p94 = scmp.eq.s32.totalorder %s25, 1
    %p95 = por %p93, %p94
    %p97 = scmp.ne.s32.totalorder %s82, %s96
    %p98 = scmp.eq.s32.totalorder %s25, 0
    %p99 = por %p97, %p98
    %s101 = sadd.s32 %s100, 1
    %p104 = scmp.eq.s32.totalorder %s19, 1
    %p105 = scmp.ne.s32.totalorder %s100, %s102
    %p106 = scmp.eq.s32.totalorder %s19, 0
    %p107 = por %p105, %p106
    %p108 = scmp.ne.s32.totalorder %s100, %s102
    %p109 = scmp.eq.s32.totalorder %s24, 1
    %p110 = por %p108, %p109
    %p111 = scmp.ne.s32.totalorder %s102, %s103
    %p112 = scmp.eq.s32.totalorder %s24, 0
    %p113 = por %p111, %p112
    %p114 = scmp.ne.s32.totalorder %s102, %s103
    %p115 = scmp.eq.s32.totalorder %s25, 1
    %p116 = por %p114, %p115
    %p118 = scmp.ne.s32.totalorder %s103, %s117
    %p119 = scmp.eq.s32.totalorder %s25, 0
    %p120 = por %p118, %p119
    %s122 = sadd.s32 %s121, 1
    %p125 = scmp.eq.s32.totalorder %s19, 1
    %p126 = scmp.ne.s32.totalorder %s121, %s123
    %p127 = scmp.eq.s32.totalorder %s19, 0
    %p128 = por %p126, %p127
    %p129 = scmp.ne.s32.totalorder %s121, %s123
    %p130 = scmp.eq.s32.totalorder %s24, 1
    %p131 = por %p129, %p130
    %p132 = scmp.ne.s32.totalorder %s123, %s124
    %p133 = scmp.eq.s32.totalorder %s24, 0
    %p134 = por %p132, %p133
    %p135 = scmp.ne.s32.totalorder %s123, %s124
    %p136 = scmp.eq.s32.totalorder %s25, 1
    %p137 = por %p135, %p136
    %p139 = scmp.ne.s32.totalorder %s124, %s138
    %p140 = scmp.eq.s32.totalorder %s25, 0
    %p141 = por %p139, %p140
    %s143 = sadd.s32 %s142, 1
    %p146 = scmp.eq.s32.totalorder %s19, 1
    %p147 = scmp.ne.s32.totalorder %s142, %s144
    %p148 = scmp.eq.s32.totalorder %s19, 0
    %p149 = por %p147, %p148
    %p150 = scmp.ne.s32.totalorder %s142, %s144
    %p151 = scmp.eq.s32.totalorder %s24, 1
    %p152 = por %p150, %p151
    %p153 = scmp.ne.s32.totalorder %s144, %s145
    %p154 = scmp.eq.s32.totalorder %s24, 0
    %p155 = por %p153, %p154
    %p156 = scmp.ne.s32.totalorder %s144, %s145
    %p157 = scmp.eq.s32.totalorder %s25, 1
    %p158 = por %p156, %p157
    %p160 = scmp.ne.s32.totalorder %s145, %s159
    %p161 = scmp.eq.s32.totalorder %s25, 0
    %p162 = por %p160, %p161
    %s164 = sadd.s32 %s163, 1
    %p167 = scmp.eq.s32.totalorder %s19, 1
    %p168 = scmp.ne.s32.totalorder %s163, %s165
    %p169 = scmp.eq.s32.totalorder %s19, 0
    %p170 = por %p168, %p169
    %p171 = scmp.ne.s32.totalorder %s163, %s165
    %p172 = scmp.eq.s32.totalorder %s24, 1
    %p173 = por %p171, %p172
    %p174 = scmp.ne.s32.totalorder %s165, %s166
    %p175 = scmp.eq.s32.totalorder %s24, 0
    %p176 = por %p174, %p175
    %p177 = scmp.ne.s32.totalorder %s165, %s166
    %p178 = scmp.eq.s32.totalorder %s25, 1
    %p179 = por %p177, %p178
    %p181 = scmp.ne.s32.totalorder %s166, %s180
    %p182 = scmp.eq.s32.totalorder %s25, 0
    %p183 = por %p181, %p182
    %s185 = sadd.s32 %s184, 1
    %p188 = scmp.eq.s32.totalorder %s19, 1
    %p189 = scmp.ne.s32.totalorder %s184, %s186
    %p190 = scmp.eq.s32.totalorder %s19, 0
    %p191 = por %p189, %p190
    %p192 = scmp.ne.s32.totalorder %s184, %s186
    %p193 = scmp.eq.s32.totalorder %s24, 1
    %p194 = por %p192, %p193
    %p195 = scmp.ne.s32.totalorder %s186, %s187
    %p196 = scmp.eq.s32.totalorder %s24, 0
    %p197 = por %p195, %p196
    %p198 = scmp.ne.s32.totalorder %s186, %s187
    %p199 = scmp.eq.s32.totalorder %s25, 1
    %p200 = por %p198, %p199
    %p202 = scmp.ne.s32.totalorder %s187, %s201
    %p203 = scmp.eq.s32.totalorder %s25, 0
    %p204 = por %p202, %p203
    %s206 = sadd.s32 %s205, 1
    %p209 = scmp.eq.s32.totalorder %s19, 1
    %p210 = scmp.ne.s32.totalorder %s205, %s207
    %p211 = scmp.eq.s32.totalorder %s19, 0
    %p212 = por %p210, %p211
    %p213 = scmp.ne.s32.totalorder %s205, %s207
    %p214 = scmp.eq.s32.totalorder %s24, 1
    %p215 = por %p213, %p214
    %p216 = scmp.ne.s32.totalorder %s207, %s208
    %p217 = scmp.eq.s32.totalorder %s24, 0
    %p218 = por %p216, %p217
    %p219 = scmp.ne.s32.totalorder %s207, %s208
    %p220 = scmp.eq.s32.totalorder %s25, 1
    %p221 = por %p219, %p220
    %p223 = scmp.ne.s32.totalorder %s208, %s222
    %p224 = scmp.eq.s32.totalorder %s25, 0
    %p225 = por %p223, %p224
    %s227 = sadd.s32 %s226, 1
    %p230 = scmp.eq.s32.totalorder %s19, 1
    %p231 = scmp.ne.s32.totalorder %s226, %s228
    %p232 = scmp.eq.s32.totalorder %s19, 0
    %p233 = por %p231, %p232
    %p234 = scmp.ne.s32.totalorder %s226, %s228
    %p235 = scmp.eq.s32.totalorder %s24, 1
    %p236 = por %p234, %p235
    %p237 = scmp.ne.s32.totalorder %s228, %s229
    %p238 = scmp.eq.s32.totalorder %s24, 0
    %p239 = por %p237, %p238
    %p240 = scmp.ne.s32.totalorder %s228, %s229
    %p241 = scmp.eq.s32.totalorder %s25, 1
    %p242 = por %p240, %p241
    %p244 = scmp.ne.s32.totalorder %s229, %s243
    %p245 = scmp.eq.s32.totalorder %s25, 0
    %p246 = por %p244, %p245
    %s248 = sadd.s32 %s247, 1
    %p251 = scmp.eq.s32.totalorder %s19, 1
    %p252 = scmp.ne.s32.totalorder %s247, %s249
    %p253 = scmp.eq.s32.totalorder %s19, 0
    %p254 = por %p252, %p253
    %p255 = scmp.ne.s32.totalorder %s247, %s249
    %p256 = scmp.eq.s32.totalorder %s24, 1
    %p257 = por %p255, %p256
    %p258 = scmp.ne.s32.totalorder %s249, %s250
    %p259 = scmp.eq.s32.totalorder %s24, 0
    %p260 = por %p258, %p259
    %p261 = scmp.ne.s32.totalorder %s249, %s250
    %p262 = scmp.eq.s32.totalorder %s25, 1
    %p263 = por %p261, %p262
    %p265 = scmp.ne.s32.totalorder %s250, %s264
    %p266 = scmp.eq.s32.totalorder %s25, 0
    %p267 = por %p265, %p266
    %s269 = sadd.s32 %s268, 1
    %p272 = scmp.eq.s32.totalorder %s19, 1
    %p273 = scmp.ne.s32.totalorder %s268, %s270
    %p274 = scmp.eq.s32.totalorder %s19, 0
    %p275 = por %p273, %p274
    %p276 = scmp.ne.s32.totalorder %s268, %s270
    %p277 = scmp.eq.s32.totalorder %s24, 1
    %p278 = por %p276, %p277
    %p279 = scmp.ne.s32.totalorder %s270, %s271
    %p280 = scmp.eq.s32.totalorder %s24, 0
    %p281 = por %p279, %p280
    %p282 = scmp.ne.s32.totalorder %s270, %s271
    %p283 = scmp.eq.s32.totalorder %s25, 1
    %p284 = por %p282, %p283
    %p286 = scmp.ne.s32.totalorder %s271, %s285
    %p287 = scmp.eq.s32.totalorder %s25, 0
    %p288 = por %p286, %p287
    %s290 = sadd.s32 %s289, 1
    %p293 = scmp.eq.s32.totalorder %s19, 1
    %p294 = scmp.ne.s32.totalorder %s289, %s291
    %p295 = scmp.eq.s32.totalorder %s19, 0
    %p296 = por %p294, %p295
    %p297 = scmp.ne.s32.totalorder %s289, %s291
    %p298 = scmp.eq.s32.totalorder %s24, 1
    %p299 = por %p297, %p298
    %p300 = scmp.ne.s32.totalorder %s291, %s292
    %p301 = scmp.eq.s32.totalorder %s24, 0
    %p302 = por %p300, %p301
    %p303 = scmp.ne.s32.totalorder %s291, %s292
    %p304 = scmp.eq.s32.totalorder %s25, 1
    %p305 = por %p303, %p304
    %p307 = scmp.ne.s32.totalorder %s292, %s306
    %p308 = scmp.eq.s32.totalorder %s25, 0
    %p309 = por %p307, %p308
    %s310 = ssub.s32 %s19, %s26
    %p311 = scmp.eq.s32.totalorder %s310, 0
    %s313 = sadd.s32 %s312, 1
    %s314 = scalar_select %p311, %s312, %s313
    %p317 = pneg %p311
    %p318 = scmp.eq.s32.totalorder %s19, 1
    %p319 = por %p317, %p318
    %p320 = scmp.ne.s32.totalorder %s312, %s315
    %p321 = scmp.eq.s32.totalorder %s19, 0
    %p322 = por %p320, %p321
    %p323 = scmp.ne.s32.totalorder %s312, %s315
    %p324 = scmp.eq.s32.totalorder %s24, 1
    %p325 = por %p323, %p324
    %p326 = scmp.ne.s32.totalorder %s315, %s316
    %p327 = scmp.eq.s32.totalorder %s24, 0
    %p328 = por %p326, %p327
    %p329 = scmp.ne.s32.totalorder %s315, %s316
    %p330 = scmp.eq.s32.totalorder %s25, 1
    %p331 = por %p329, %p330
    %p333 = scmp.ne.s32.totalorder %s316, %s332
    %p334 = scmp.eq.s32.totalorder %s25, 0
    %p335 = por %p333, %p334
    %p336 = scmp.le.s32.totalorder 1, %s19
    %p337 = scmp.lt.s32.totalorder %s19, 3
    %p338 = pnand %p336, %p337
    %p339 = pneg %p338
    // Predicated region
    $region9: #{transformer_forward.18} parent=5 // pred_check
      _
    $region10: #{transformer_forward.18} parent=5 // pred_check_branch
      %341 = sbr.rel (%p338) target = $region12
    $region11: #{transformer_forward.18} parent=5 // pred_region
      %s342 = ssub.s32 %s19, 1
      // Predicated region
      $region13: #{transformer_forward.18} parent=11 // pred_check
        %p343 = pneg %p92
      $region14: #{transformer_forward.18} parent=11 // pred_check_branch
        %345 = sbr.rel (%p343) target = $region16
      $region15: #{transformer_forward.18} parent=11 // pred_region
        _
      $region16: #{transformer_forward.18} parent=11 // pred_fallthru
        _
      // Predicated region
      $region17: #{transformer_forward.18} parent=11 // pred_check
        %p346 = pneg %p113
      $region18: #{transformer_forward.18} parent=11 // pred_check_branch
        %348 = sbr.rel (%p346) target = $region20
      $region19: #{transformer_forward.18} parent=11 // pred_region
        _
      $region20: #{transformer_forward.18} parent=11 // pred_fallthru
        _
      // Predicated region
      $region21: #{transformer_forward.18} parent=11 // pred_check
        %p349 = pneg %p134
      $region22: #{transformer_forward.18} parent=11 // pred_check_branch
        %351 = sbr.rel (%p349) target = $region24
      $region23: #{transformer_forward.18} parent=11 // pred_region
        _
      $region24: #{transformer_forward.18} parent=11 // pred_fallthru
        _
      // Predicated region
      $region25: #{transformer_forward.18} parent=11 // pred_check
        %p352 = pneg %p155
      $region26: #{transformer_forward.18} parent=11 // pred_check_branch
        %354 = sbr.rel (%p352) target = $region28
      $region27: #{transformer_forward.18} parent=11 // pred_region
        _
      $region28: #{transformer_forward.18} parent=11 // pred_fallthru
        _
      // Predicated region
      $region29: #{transformer_forward.18} parent=11 // pred_check
        %p355 = pneg %p176
      $region30: #{transformer_forward.18} parent=11 // pred_check_branch
        %357 = sbr.rel (%p355) target = $region32
      $region31: #{transformer_forward.18} parent=11 // pred_region
        _
      $region32: #{transformer_forward.18} parent=11 // pred_fallthru
        _
      // Predicated region
      $region33: #{transformer_forward.18} parent=11 // pred_check
        %p358 = pneg %p197
      $region34: #{transformer_forward.18} parent=11 // pred_check_branch
        %360 = sbr.rel (%p358) target = $region36
      $region35: #{transformer_forward.18} parent=11 // pred_region
        _
      $region36: #{transformer_forward.18} parent=11 // pred_fallthru
        _
      // Predicated region
      $region37: #{transformer_forward.18} parent=11 // pred_check
        %p361 = pneg %p218
      $region38: #{transformer_forward.18} parent=11 // pred_check_branch
        %363 = sbr.rel (%p361) target = $region40
      $region39: #{transformer_forward.18} parent=11 // pred_region
        _
      $region40: #{transformer_forward.18} parent=11 // pred_fallthru
        _
      // Predicated region
      $region41: #{transformer_forward.18} parent=11 // pred_check
        %p364 = pneg %p239
      $region42: #{transformer_forward.18} parent=11 // pred_check_branch
        %366 = sbr.rel (%p364) target = $region44
      $region43: #{transformer_forward.18} parent=11 // pred_region
        _
      $region44: #{transformer_forward.18} parent=11 // pred_fallthru
        _
      // Predicated region
      $region45: #{transformer_forward.18} parent=11 // pred_check
        %p367 = pneg %p260
      $region46: #{transformer_forward.18} parent=11 // pred_check_branch
        %369 = sbr.rel (%p367) target = $region48
      $region47: #{transformer_forward.18} parent=11 // pred_region
        _
      $region48: #{transformer_forward.18} parent=11 // pred_fallthru
        _
      // Predicated region
      $region49: #{transformer_forward.18} parent=11 // pred_check
        %p370 = pneg %p281
      $region50: #{transformer_forward.18} parent=11 // pred_check_branch
        %372 = sbr.rel (%p370) target = $region52
      $region51: #{transformer_forward.18} parent=11 // pred_region
        _
      $region52: #{transformer_forward.18} parent=11 // pred_fallthru
        _
      // Predicated region
      $region53: #{transformer_forward.18} parent=11 // pred_check
        %p373 = pneg %p302
      $region54: #{transformer_forward.18} parent=11 // pred_check_branch
        %375 = sbr.rel (%p373) target = $region56
      $region55: #{transformer_forward.18} parent=11 // pred_region
        _
      $region56: #{transformer_forward.18} parent=11 // pred_fallthru
        _
    $region12: #{transformer_forward.18} parent=5 // pred_fallthru
      _
    %p376 = scmp.lt.s32.totalorder %s19, 2
    // Predicated region
    $region57: #{transformer_forward.18} parent=5 // pred_check
      %p377 = pneg %p376
    $region58: #{transformer_forward.18} parent=5 // pred_check_branch
      %379 = sbr.rel (%p377) target = $region60
    $region59: #{transformer_forward.18} parent=5 // pred_region
      // Predicated region
      $region61: #{transformer_forward.18} parent=59 // pred_check
        %p380 = pneg %p39
      $region62: #{transformer_forward.18} parent=59 // pred_check_branch
        %382 = sbr.rel (%p380) target = $region64
      $region63: #{transformer_forward.18} parent=59 // pred_region
        %p383 = scmp.lt.s32.totalorder %s19, 1
        %s384 = scalar_select %p383, %s19, 1
        %s385 = smul.addr %s384, 8
        %s386 = scalar_lea.vmem %s0, %s385
      $region64: #{transformer_forward.18} parent=59 // pred_fallthru
        _
      // Predicated region
      $region65: #{transformer_forward.18} parent=59 // pred_check
        %p387 = pneg %p65
      $region66: #{transformer_forward.18} parent=59 // pred_check_branch
        %389 = sbr.rel (%p387) target = $region68
      $region67: #{transformer_forward.18} parent=59 // pred_region
        %p390 = scmp.lt.s32.totalorder %s19, 1
        %s391 = scalar_select %p390, %s19, 1
        %s392 = smul.addr %s391, 8
        %s393 = scalar_lea.vmem %s1, %s392
      $region68: #{transformer_forward.18} parent=59 // pred_fallthru
        _
    $region60: #{transformer_forward.18} parent=5 // pred_fallthru
      _
    %p394 = scmp.le.s32.totalorder 1, %s19
    %p395 = scmp.lt.s32.totalorder %s19, 3
    %p396 = pnand %p394, %p395
    %p397 = pneg %p396
    // Predicated region
    $region69: #{transformer_forward.18} parent=5 // pred_check
      _
    $region70: #{transformer_forward.18} parent=5 // pred_check_branch
      %399 = sbr.rel (%p396) target = $region72
    $region71: #{transformer_forward.18} parent=5 // pred_region
      %s400 = ssub.s32 %s19, 1
      %p401 = scmp.lt.s32.totalorder %s24, 1
      %s402 = scalar_select %p401, %s24, 1
      %s403 = smul.addr %s402, 8
      %s404 = scalar_lea.vmem %s0, %s403
      %p405 = pneg %p45
      %p406 = pneg %p42
      %p407 = scmp.lt.s32.totalorder %s24, 1
      %s408 = scalar_select %p407, %s24, 1
      %s409 = smul.addr %s408, 8
      %s410 = scalar_lea.vmem %s1, %s409
      %p411 = pneg %p71
      %p412 = pneg %p68
      %p413 = pneg %p92
      %p414 = pneg %p89
      %p415 = pneg %p113
      %p416 = pneg %p110
      %p417 = pneg %p134
      %p418 = pneg %p131
      %p419 = pneg %p155
      %p420 = pneg %p152
      %p421 = pneg %p176
      %p422 = pneg %p173
      %p423 = pneg %p197
      %p424 = pneg %p194
      %p425 = pneg %p218
      %p426 = pneg %p215
      %p427 = pneg %p239
      %p428 = pneg %p236
      %p429 = pneg %p260
      %p430 = pneg %p257
      %p431 = pneg %p281
      %p432 = pneg %p278
      %p433 = pneg %p302
      %p434 = pneg %p299
      %p435 = pneg %p328
      %p436 = pneg %p325
      %p437 = scmp.lt.s32.totalorder %s24, 1
      %s438 = scalar_select %p437, %s24, 1
      %s439 = smul.addr %s438, 8
      %s440 = scalar_lea.vmem %s13, %s439
      %p441 = scmp.lt.s32.totalorder %s24, 1
      %s442 = scalar_select %p441, %s24, 1
      %s443 = smul.addr %s442, 8
      %s444 = scalar_lea.vmem %s0, %s443
      %p445 = scmp.lt.s32.totalorder %s24, 1
      %s446 = scalar_select %p445, %s24, 1
      %s447 = smul.addr %s446, 8
      %s448 = scalar_lea.vmem %s1, %s447
      %p449 = scmp.lt.s32.totalorder %s24, 1
      %s450 = scalar_select %p449, %s24, 1
      %s451 = smul.addr %s450, 8
      %s452 = scalar_lea.vmem %s13, %s451
      %v454 = vld [vmem:[%s444] sm:$0xff]
      %v455 = vld [vmem:[%s448] sm:$0xff]
      %v456 = vpack.c.bf16 %v454, %v454
      %v457 = vpack.c.bf16 %v455, %v455
      %v458 = vld [vmem:[%s12] sm:$0xff]
      %v459 = vld [vmem:[%s2] sm:$0xf]
      %v460 = vld [vmem:[%s2 + $0x4] sm:$0xf]
      %v461 = vld [vmem:[%s2 + $0x8] sm:$0xf]
      %v462 = vld [vmem:[%s2 + $0xc] sm:$0xf]
      %v463 = vld [vmem:[%s3] sm:$0x1]
      %v465 = vlaneseq
      %v466 = vshrl.u32 %v465, 7
      %v467 = vsub.s32 0, %v466
      %v468 = vrot.slane %v463, %v467
      %v474 = vunpack.c.l.b16 %v459
      %v475 = vunpack.c.l.b16 %v460
      %v476 = vunpack.c.l.b16 %v461
      %v477 = vunpack.c.l.b16 %v462
      %v478 = vpack.c.b16 %v475, %v474
      %v479 = vpack.c.b16 %v477, %v476
      %vm482 = vcmask 261120
      %v484 = vsel %vm482, %v456, 0
      %486 = vmatprep.subr.bf16.mxu0 0
      %487 = vmatpush1.bf16.msra.mxu0 0
      %488 = vmatprep.subr.bf16.mxu0 0
      %489 = vmatpush1.bf16.msra.mxu0 0
      %490 = vmatprep.subr.bf16.mxu0 0
      %491 = vmatpush1.bf16.msra.mxu0 0
      %492 = vmatprep.subr.bf16.mxu0 0
      %493 = vmatpush1.bf16.msra.mxu0 0
      %494 = vmatprep.subr.bf16.mxu0 0
      %495 = vmatpush1.bf16.msra.mxu0 0
      %496 = vmatprep.subr.bf16.mxu0 0
      %497 = vmatpush1.bf16.msra.mxu0 0
      %498 = vmatprep.subr.bf16.mxu0 0
      %499 = vmatpush1.bf16.msra.mxu0 %v479
      %500 = vmatprep.subr.bf16.mxu0 0
      %501 = vmatpush1.bf16.msra.mxu0 %v478
      %502 = vmatprep.subr.bf16.mxu0 0
      %503 = vmatpush2.bf16.msra.mxu0 0
      %504 = vmatprep.subr.bf16.mxu0 0
      %505 = vmatpush2.bf16.msra.mxu0 0
      %506 = vmatprep.subr.bf16.mxu0 0
      %507 = vmatpush2.bf16.msra.mxu0 0
      %508 = vmatprep.subr.bf16.mxu0 0
      %509 = vmatpush2.bf16.msra.mxu0 0
      %510 = vmatprep.subr.bf16.mxu0 0
      %511 = vmatpush2.bf16.msra.mxu0 0
      %512 = vmatprep.subr.bf16.mxu0 0
      %513 = vmatpush2.bf16.msra.mxu0 0
      %514 = vmatprep.subr.bf16.mxu0 0
      %515 = vmatpush2.bf16.msra.mxu0 0
      %516 = vmatprep.subr.bf16.mxu0 0
      %517 = vmatpush2.bf16.msra.mxu0 0
      %518 = vmatprep.mubr.bf16.mxu0 0
      %519 = vmatmul.mubr.bf16.gmra.mxu0 %v484
      %v520 = vpop.f32.mrf.mxu0
      %v521 = vadd.f32 %v468, %v520
      %v522 = vpop.f32.mrf.mxu0
      %v523 = vpop.f32.mrf.mxu0
      %v524 = vpop.f32.mrf.mxu0
      %525 = vdwg.mxu0
      %v526 = vld [vmem:[%s4] sm:$0xf]
      %v527 = vld [vmem:[%s4 + $0x4] sm:$0xf]
      %v528 = vld [vmem:[%s4 + $0x8] sm:$0xf]
      %v529 = vld [vmem:[%s4 + $0xc] sm:$0xf]
      %v530 = vld [vmem:[%s5] sm:$0x1]
      %v532 = vlaneseq
      %v533 = vshrl.u32 %v532, 7
      %v534 = vsub.s32 0, %v533
      %v535 = vrot.slane %v530, %v534
      %v541 = vunpack.c.l.b16 %v526
      %v542 = vunpack.c.l.b16 %v527
      %v543 = vunpack.c.l.b16 %v528
      %v544 = vunpack.c.l.b16 %v529
      %v545 = vpack.c.b16 %v542, %v541
      %v546 = vpack.c.b16 %v544, %v543
      %v550 = vsel %vm482, %v457, 0
      %552 = vmatprep.subr.bf16.mxu0 0
      %553 = vmatpush1.bf16.msra.mxu0 0
      %554 = vmatprep.subr.bf16.mxu0 0
      %555 = vmatpush1.bf16.msra.mxu0 0
      %556 = vmatprep.subr.bf16.mxu0 0
      %557 = vmatpush1.bf16.msra.mxu0 0
      %558 = vmatprep.subr.bf16.mxu0 0
      %559 = vmatpush1.bf16.msra.mxu0 0
      %560 = vmatprep.subr.bf16.mxu0 0
      %561 = vmatpush1.bf16.msra.mxu0 0
      %562 = vmatprep.subr.bf16.mxu0 0
      %563 = vmatpush1.bf16.msra.mxu0 0
      %564 = vmatprep.subr.bf16.mxu0 0
      %565 = vmatpush1.bf16.msra.mxu0 %v546
      %566 = vmatprep.subr.bf16.mxu0 0
      %567 = vmatpush1.bf16.msra.mxu0 %v545
      %568 = vmatprep.subr.bf16.mxu0 0
      %569 = vmatpush2.bf16.msra.mxu0 0
      %570 = vmatprep.subr.bf16.mxu0 0
      %571 = vmatpush2.bf16.msra.mxu0 0
      %572 = vmatprep.subr.bf16.mxu0 0
      %573 = vmatpush2.bf16.msra.mxu0 0
      %574 = vmatprep.subr.bf16.mxu0 0
      %575 = vmatpush2.bf16.msra.mxu0 0
      %576 = vmatprep.subr.bf16.mxu0 0
      %577 = vmatpush2.bf16.msra.mxu0 0
      %578 = vmatprep.subr.bf16.mxu0 0
      %579 = vmatpush2.bf16.msra.mxu0 0
      %580 = vmatprep.subr.bf16.mxu0 0
      %581 = vmatpush2.bf16.msra.mxu0 0
      %582 = vmatprep.subr.bf16.mxu0 0
      %583 = vmatpush2.bf16.msra.mxu0 0
      %584 = vmatprep.mubr.bf16.mxu0 0
      %585 = vmatmul.mubr.bf16.gmra.mxu0 %v550
      %v586 = vpop.f32.mrf.mxu0
      %v587 = vadd.f32 %v535, %v586
      %v588 = vpop.f32.mrf.mxu0
      %v589 = vpop.f32.mrf.mxu0
      %v590 = vpop.f32.mrf.mxu0
      %591 = vdwg.mxu0
      %v592 = vld [vmem:[%s6] sm:$0xf]
      %v593 = vld [vmem:[%s6 + $0x4] sm:$0xf]
      %v594 = vld [vmem:[%s6 + $0x8] sm:$0xf]
      %v595 = vld [vmem:[%s6 + $0xc] sm:$0xf]
      %v596 = vld [vmem:[%s7] sm:$0x1]
      %v598 = vlaneseq
      %v599 = vshrl.u32 %v598, 7
      %v600 = vsub.s32 0, %v599
      %v601 = vrot.slane %v596, %v600
      %v607 = vunpack.c.l.b16 %v592
      %v608 = vunpack.c.l.b16 %v593
      %v609 = vunpack.c.l.b16 %v594
      %v610 = vunpack.c.l.b16 %v595
      %v611 = vpack.c.b16 %v608, %v607
      %v612 = vpack.c.b16 %v610, %v609
      %615 = vmatprep.subr.bf16.mxu0 0
      %616 = vmatpush1.bf16.msra.mxu0 0
      %617 = vmatprep.subr.bf16.mxu0 0
      %618 = vmatpush1.bf16.msra.mxu0 0
      %619 = vmatprep.subr.bf16.mxu0 0
      %620 = vmatpush1.bf16.msra.mxu0 0
      %621 = vmatprep.subr.bf16.mxu0 0
      %622 = vmatpush1.bf16.msra.mxu0 0
      %623 = vmatprep.subr.bf16.mxu0 0
      %624 = vmatpush1.bf16.msra.mxu0 0
      %625 = vmatprep.subr.bf16.mxu0 0
      %626 = vmatpush1.bf16.msra.mxu0 0
      %627 = vmatprep.subr.bf16.mxu0 0
      %628 = vmatpush1.bf16.msra.mxu0 %v612
      %629 = vmatprep.subr.bf16.mxu0 0
      %630 = vmatpush1.bf16.msra.mxu0 %v611
      %631 = vmatprep.subr.bf16.mxu0 0
      %632 = vmatpush2.bf16.msra.mxu0 0
      %633 = vmatprep.subr.bf16.mxu0 0
      %634 = vmatpush2.bf16.msra.mxu0 0
      %635 = vmatprep.subr.bf16.mxu0 0
      %636 = vmatpush2.bf16.msra.mxu0 0
      %637 = vmatprep.subr.bf16.mxu0 0
      %638 = vmatpush2.bf16.msra.mxu0 0
      %639 = vmatprep.subr.bf16.mxu0 0
      %640 = vmatpush2.bf16.msra.mxu0 0
      %641 = vmatprep.subr.bf16.mxu0 0
      %642 = vmatpush2.bf16.msra.mxu0 0
      %643 = vmatprep.subr.bf16.mxu0 0
      %644 = vmatpush2.bf16.msra.mxu0 0
      %645 = vmatprep.subr.bf16.mxu0 0
      %646 = vmatpush2.bf16.msra.mxu0 0
      %647 = vmatprep.mubr.bf16.mxu0 0
      %648 = vmatmul.mubr.bf16.gmra.mxu0 %v550
      %v649 = vpop.f32.mrf.mxu0
      %v650 = vadd.f32 %v601, %v649
      %v651 = vpop.f32.mrf.mxu0
      %v652 = vpop.f32.mrf.mxu0
      %v653 = vpop.f32.mrf.mxu0
      %654 = vdwg.mxu0
      %v655 = vpack.c.bf16 %v521, %v521
      %v656 = vpack.c.bf16 %v587, %v587
      %vm657 = vcmask 64512
      %v659 = vsel %vm657, %v655, 0
      %v662 = vsel %vm657, %v656, 0
      %664 = vmatprep.subr.bf16.mxu0 0
      %665 = vmatpush1.bf16.xpose.msra.mxu0 0
      %666 = vmatprep.subr.bf16.mxu0 0
      %667 = vmatpush1.bf16.xpose.msra.mxu0 0
      %668 = vmatprep.subr.bf16.mxu0 0
      %669 = vmatpush1.bf16.xpose.msra.mxu0 0
      %670 = vmatprep.subr.bf16.mxu0 0
      %671 = vmatpush1.bf16.xpose.msra.mxu0 0
      %672 = vmatprep.subr.bf16.mxu0 0
      %673 = vmatpush1.bf16.xpose.msra.mxu0 0
      %674 = vmatprep.subr.bf16.mxu0 0
      %675 = vmatpush1.bf16.xpose.msra.mxu0 0
      %676 = vmatprep.subr.bf16.mxu0 0
      %677 = vmatpush1.bf16.xpose.msra.mxu0 0
      %678 = vmatprep.subr.bf16.mxu0 0
      %679 = vmatpush1.bf16.xpose.msra.mxu0 %v662
      %680 = vmatprep.subr.bf16.mxu0 0
      %681 = vmatpush2.bf16.xpose.msra.mxu0 0
      %682 = vmatprep.subr.bf16.mxu0 0
      %683 = vmatpush2.bf16.xpose.msra.mxu0 0
      %684 = vmatprep.subr.bf16.mxu0 0
      %685 = vmatpush2.bf16.xpose.msra.mxu0 0
      %686 = vmatprep.subr.bf16.mxu0 0
      %687 = vmatpush2.bf16.xpose.msra.mxu0 0
      %688 = vmatprep.subr.bf16.mxu0 0
      %689 = vmatpush2.bf16.xpose.msra.mxu0 0
      %690 = vmatprep.subr.bf16.mxu0 0
      %691 = vmatpush2.bf16.xpose.msra.mxu0 0
      %692 = vmatprep.subr.bf16.mxu0 0
      %693 = vmatpush2.bf16.xpose.msra.mxu0 0
      %694 = vmatprep.subr.bf16.mxu0 0
      %695 = vmatpush2.bf16.xpose.msra.mxu0 0
      %696 = vmatprep.mubr.bf16.mxu0 0
      %697 = vmatmul.mubr.bf16.gmra.mxu0 %v659
      %v698 = vpop.f32.mrf.mxu0
      %v699 = vadd.f32 0.0, %v698
      %v700 = vpop.f32.mrf.mxu0
      %v701 = vpop.f32.mrf.mxu0
      %v702 = vpop.f32.mrf.mxu0
      %703 = vdwg.mxu0
      %v704 = vmul.f32 %v699, 0.35355338
      %v705 = vadd.f32 %v704, %v458
      %v706 = vsel %vm657, %v705, -inf
      %707 = vmax.xlane.f32.xlu0 %v706
      %v708 = vpop.xlane.xlu0 %707
      %v709 = vsub.f32 %v705, %v708
      %v710 = vmul.f32 %v709, 1.442695
      %v711 = vpow.pop %v710
      %v712 = vsel %vm657, %v711, 0.0
      %713 = vadd.xlane.f32.xlu0 %v712
      %v714 = vpop.xlane.xlu0 %713
      %v715 = vrcp.pop %v714
      %v716 = vmul.f32 %v711, %v715
      %v717 = vpack.c.bf16 %v716, %v716
      %v718 = vpack.c.bf16 %v650, %v650
      %v720 = vsel %vm657, %v717, 0
      %vm722 = vcmask 1043456
      %v724 = vsel %vm722, %v718, 0
      %726 = vmatprep.subr.bf16.mxu0 0
      %727 = vmatpush1.bf16.msra.mxu0 0
      %728 = vmatprep.subr.bf16.mxu0 0
      %729 = vmatpush1.bf16.msra.mxu0 0
      %730 = vmatprep.subr.bf16.mxu0 0
      %731 = vmatpush1.bf16.msra.mxu0 0
      %732 = vmatprep.subr.bf16.mxu0 0
      %733 = vmatpush1.bf16.msra.mxu0 0
      %734 = vmatprep.subr.bf16.mxu0 0
      %735 = vmatpush1.bf16.msra.mxu0 0
      %736 = vmatprep.subr.bf16.mxu0 0
      %737 = vmatpush1.bf16.msra.mxu0 0
      %738 = vmatprep.subr.bf16.mxu0 0
      %739 = vmatpush1.bf16.msra.mxu0 0
      %740 = vmatprep.subr.bf16.mxu0 0
      %741 = vmatpush1.bf16.msra.mxu0 %v724
      %742 = vmatprep.subr.bf16.mxu0 0
      %743 = vmatpush2.bf16.msra.mxu0 0
      %744 = vmatprep.subr.bf16.mxu0 0
      %745 = vmatpush2.bf16.msra.mxu0 0
      %746 = vmatprep.subr.bf16.mxu0 0
      %747 = vmatpush2.bf16.msra.mxu0 0
      %748 = vmatprep.subr.bf16.mxu0 0
      %749 = vmatpush2.bf16.msra.mxu0 0
      %750 = vmatprep.subr.bf16.mxu0 0
      %751 = vmatpush2.bf16.msra.mxu0 0
      %752 = vmatprep.subr.bf16.mxu0 0
      %753 = vmatpush2.bf16.msra.mxu0 0
      %754 = vmatprep.subr.bf16.mxu0 0
      %755 = vmatpush2.bf16.msra.mxu0 0
      %756 = vmatprep.subr.bf16.mxu0 0
      %757 = vmatpush2.bf16.msra.mxu0 0
      %758 = vmatprep.mubr.bf16.mxu0 0
      %759 = vmatmul.mubr.bf16.gmra.mxu0 %v720
      %v760 = vpop.f32.mrf.mxu0
      %v761 = vadd.f32 0.0, %v760
      %v762 = vpop.f32.mrf.mxu0
      %v763 = vpop.f32.mrf.mxu0
      %v764 = vpop.f32.mrf.mxu0
      %765 = vdwg.mxu0
      %v766 = vpack.c.bf16 %v761, %v761
      %v767 = vld [vmem:[%s8] sm:$0xf]
      %s768 = scalar_lea.vmem %s2, 16
      %v769 = vld [vmem:[%s768] sm:$0xf]
      %v770 = vld [vmem:[%s768 + $0x4] sm:$0xf]
      %v771 = vld [vmem:[%s768 + $0x8] sm:$0xf]
      %v772 = vld [vmem:[%s768 + $0xc] sm:$0xf]
      %s773 = scalar_lea.vmem %s3, 1
      %v774 = vld [vmem:[%s773] sm:$0x1]
      %v776 = vlaneseq
      %v777 = vshrl.u32 %v776, 7
      %v778 = vsub.s32 0, %v777
      %v779 = vrot.slane %v774, %v778
      %v785 = vunpack.c.l.b16 %v769
      %v786 = vunpack.c.l.b16 %v770
      %v787 = vunpack.c.l.b16 %v771
      %v788 = vunpack.c.l.b16 %v772
      %v789 = vpack.c.b16 %v786, %v785
      %v790 = vpack.c.b16 %v788, %v787
      %793 = vmatprep.subr.bf16.mxu0 0
      %794 = vmatpush1.bf16.msra.mxu0 0
      %795 = vmatprep.subr.bf16.mxu0 0
      %796 = vmatpush1.bf16.msra.mxu0 0
      %797 = vmatprep.subr.bf16.mxu0 0
      %798 = vmatpush1.bf16.msra.mxu0 0
      %799 = vmatprep.subr.bf16.mxu0 0
      %800 = vmatpush1.bf16.msra.mxu0 0
      %801 = vmatprep.subr.bf16.mxu0 0
      %802 = vmatpush1.bf16.msra.mxu0 0
      %803 = vmatprep.subr.bf16.mxu0 0
      %804 = vmatpush1.bf16.msra.mxu0 0
      %805 = vmatprep.subr.bf16.mxu0 0
      %806 = vmatpush1.bf16.msra.mxu0 %v790
      %807 = vmatprep.subr.bf16.mxu0 0
      %808 = vmatpush1.bf16.msra.mxu0 %v789
      %809 = vmatprep.subr.bf16.mxu0 0
      %810 = vmatpush2.bf16.msra.mxu0 0
      %811 = vmatprep.subr.bf16.mxu0 0
      %812 = vmatpush2.bf16.msra.mxu0 0
      %813 = vmatprep.subr.bf16.mxu0 0
      %814 = vmatpush2.bf16.msra.mxu0 0
      %815 = vmatprep.subr.bf16.mxu0 0
      %816 = vmatpush2.bf16.msra.mxu0 0
      %817 = vmatprep.subr.bf16.mxu0 0
      %818 = vmatpush2.bf16.msra.mxu0 0
      %819 = vmatprep.subr.bf16.mxu0 0
      %820 = vmatpush2.bf16.msra.mxu0 0
      %821 = vmatprep.subr.bf16.mxu0 0
      %822 = vmatpush2.bf16.msra.mxu0 0
      %823 = vmatprep.subr.bf16.mxu0 0
      %824 = vmatpush2.bf16.msra.mxu0 0
      %825 = vmatprep.mubr.bf16.mxu0 0
      %826 = vmatmul.mubr.bf16.gmra.mxu0 %v484
      %v827 = vpop.f32.mrf.mxu0
      %v828 = vadd.f32 %v779, %v827
      %v829 = vpop.f32.mrf.mxu0
      %v830 = vpop.f32.mrf.mxu0
      %v831 = vpop.f32.mrf.mxu0
      %832 = vdwg.mxu0
      %s833 = scalar_lea.vmem %s4, 16
      %v834 = vld [vmem:[%s833] sm:$0xf]
      %v835 = vld [vmem:[%s833 + $0x4] sm:$0xf]
      %v836 = vld [vmem:[%s833 + $0x8] sm:$0xf]
      %v837 = vld [vmem:[%s833 + $0xc] sm:$0xf]
      %s838 = scalar_lea.vmem %s5, 1
      %v839 = vld [vmem:[%s838] sm:$0x1]
      %v841 = vlaneseq
      %v842 = vshrl.u32 %v841, 7
      %v843 = vsub.s32 0, %v842
      %v844 = vrot.slane %v839, %v843
      %v850 = vunpack.c.l.b16 %v834
      %v851 = vunpack.c.l.b16 %v835
      %v852 = vunpack.c.l.b16 %v836
      %v853 = vunpack.c.l.b16 %v837
      %v854 = vpack.c.b16 %v851, %v850
      %v855 = vpack.c.b16 %v853, %v852
      %858 = vmatprep.subr.bf16.mxu0 0
      %859 = vmatpush1.bf16.msra.mxu0 0
      %860 = vmatprep.subr.bf16.mxu0 0
      %861 = vmatpush1.bf16.msra.mxu0 0
      %862 = vmatprep.subr.bf16.mxu0 0
      %863 = vmatpush1.bf16.msra.mxu0 0
      %864 = vmatprep.subr.bf16.mxu0 0
      %865 = vmatpush1.bf16.msra.mxu0 0
      %866 = vmatprep.subr.bf16.mxu0 0
      %867 = vmatpush1.bf16.msra.mxu0 0
      %868 = vmatprep.subr.bf16.mxu0 0
      %869 = vmatpush1.bf16.msra.mxu0 0
      %870 = vmatprep.subr.bf16.mxu0 0
      %871 = vmatpush1.bf16.msra.mxu0 %v855
      %872 = vmatprep.subr.bf16.mxu0 0
      %873 = vmatpush1.bf16.msra.mxu0 %v854
      %874 = vmatprep.subr.bf16.mxu0 0
      %875 = vmatpush2.bf16.msra.mxu0 0
      %876 = vmatprep.subr.bf16.mxu0 0
      %877 = vmatpush2.bf16.msra.mxu0 0
      %878 = vmatprep.subr.bf16.mxu0 0
      %879 = vmatpush2.bf16.msra.mxu0 0
      %880 = vmatprep.subr.bf16.mxu0 0
      %881 = vmatpush2.bf16.msra.mxu0 0
      %882 = vmatprep.subr.bf16.mxu0 0
      %883 = vmatpush2.bf16.msra.mxu0 0
      %884 = vmatprep.subr.bf16.mxu0 0
      %885 = vmatpush2.bf16.msra.mxu0 0
      %886 = vmatprep.subr.bf16.mxu0 0
      %887 = vmatpush2.bf16.msra.mxu0 0
      %888 = vmatprep.subr.bf16.mxu0 0
      %889 = vmatpush2.bf16.msra.mxu0 0
      %890 = vmatprep.mubr.bf16.mxu0 0
      %891 = vmatmul.mubr.bf16.gmra.mxu0 %v550
      %v892 = vpop.f32.mrf.mxu0
      %v893 = vadd.f32 %v844, %v892
      %v894 = vpop.f32.mrf.mxu0
      %v895 = vpop.f32.mrf.mxu0
      %v896 = vpop.f32.mrf.mxu0
      %897 = vdwg.mxu0
      %s898 = scalar_lea.vmem %s6, 16
      %v899 = vld [vmem:[%s898] sm:$0xf]
      %v900 = vld [vmem:[%s898 + $0x4] sm:$0xf]
      %v901 = vld [vmem:[%s898 + $0x8] sm:$0xf]
      %v902 = vld [vmem:[%s898 + $0xc] sm:$0xf]
      %s903 = scalar_lea.vmem %s7, 1
      %v904 = vld [vmem:[%s903] sm:$0x1]
      %v906 = vlaneseq
      %v907 = vshrl.u32 %v906, 7
      %v908 = vsub.s32 0, %v907
      %v909 = vrot.slane %v904, %v908
      %v915 = vunpack.c.l.b16 %v899
      %v916 = vunpack.c.l.b16 %v900
      %v917 = vunpack.c.l.b16 %v901
      %v918 = vunpack.c.l.b16 %v902
      %v919 = vpack.c.b16 %v916, %v915
      %v920 = vpack.c.b16 %v918, %v917
      %923 = vmatprep.subr.bf16.mxu0 0
      %924 = vmatpush1.bf16.msra.mxu0 0
      %925 = vmatprep.subr.bf16.mxu0 0
      %926 = vmatpush1.bf16.msra.mxu0 0
      %927 = vmatprep.subr.bf16.mxu0 0
      %928 = vmatpush1.bf16.msra.mxu0 0
      %929 = vmatprep.subr.bf16.mxu0 0
      %930 = vmatpush1.bf16.msra.mxu0 0
      %931 = vmatprep.subr.bf16.mxu0 0
      %932 = vmatpush1.bf16.msra.mxu0 0
      %933 = vmatprep.subr.bf16.mxu0 0
      %934 = vmatpush1.bf16.msra.mxu0 0
      %935 = vmatprep.subr.bf16.mxu0 0
      %936 = vmatpush1.bf16.msra.mxu0 %v920
      %937 = vmatprep.subr.bf16.mxu0 0
      %938 = vmatpush1.bf16.msra.mxu0 %v919
      %939 = vmatprep.subr.bf16.mxu0 0
      %940 = vmatpush2.bf16.msra.mxu0 0
      %941 = vmatprep.subr.bf16.mxu0 0
      %942 = vmatpush2.bf16.msra.mxu0 0
      %943 = vmatprep.subr.bf16.mxu0 0
      %944 = vmatpush2.bf16.msra.mxu0 0
      %945 = vmatprep.subr.bf16.mxu0 0
      %946 = vmatpush2.bf16.msra.mxu0 0
      %947 = vmatprep.subr.bf16.mxu0 0
      %948 = vmatpush2.bf16.msra.mxu0 0
      %949 = vmatprep.subr.bf16.mxu0 0
      %950 = vmatpush2.bf16.msra.mxu0 0
      %951 = vmatprep.subr.bf16.mxu0 0
      %952 = vmatpush2.bf16.msra.mxu0 0
      %953 = vmatprep.subr.bf16.mxu0 0
      %954 = vmatpush2.bf16.msra.mxu0 0
      %955 = vmatprep.mubr.bf16.mxu0 0
      %956 = vmatmul.mubr.bf16.gmra.mxu0 %v550
      %v957 = vpop.f32.mrf.mxu0
      %v958 = vadd.f32 %v909, %v957
      %v959 = vpop.f32.mrf.mxu0
      %v960 = vpop.f32.mrf.mxu0
      %v961 = vpop.f32.mrf.mxu0
      %962 = vdwg.mxu0
      %v963 = vpack.c.bf16 %v828, %v828
      %v964 = vpack.c.bf16 %v893, %v893
      %v966 = vsel %vm657, %v963, 0
      %v969 = vsel %vm657, %v964, 0
      %971 = vmatprep.subr.bf16.mxu0 0
      %972 = vmatpush1.bf16.xpose.msra.mxu0 0
      %973 = vmatprep.subr.bf16.mxu0 0
      %974 = vmatpush1.bf16.xpose.msra.mxu0 0
      %975 = vmatprep.subr.bf16.mxu0 0
      %976 = vmatpush1.bf16.xpose.msra.mxu0 0
      %977 = vmatprep.subr.bf16.mxu0 0
      %978 = vmatpush1.bf16.xpose.msra.mxu0 0
      %979 = vmatprep.subr.bf16.mxu0 0
      %980 = vmatpush1.bf16.xpose.msra.mxu0 0
      %981 = vmatprep.subr.bf16.mxu0 0
      %982 = vmatpush1.bf16.xpose.msra.mxu0 0
      %983 = vmatprep.subr.bf16.mxu0 0
      %984 = vmatpush1.bf16.xpose.msra.mxu0 0
      %985 = vmatprep.subr.bf16.mxu0 0
      %986 = vmatpush1.bf16.xpose.msra.mxu0 %v969
      %987 = vmatprep.subr.bf16.mxu0 0
      %988 = vmatpush2.bf16.xpose.msra.mxu0 0
      %989 = vmatprep.subr.bf16.mxu0 0
      %990 = vmatpush2.bf16.xpose.msra.mxu0 0
      %991 = vmatprep.subr.bf16.mxu0 0
      %992 = vmatpush2.bf16.xpose.msra.mxu0 0
      %993 = vmatprep.subr.bf16.mxu0 0
      %994 = vmatpush2.bf16.xpose.msra.mxu0 0
      %995 = vmatprep.subr.bf16.mxu0 0
      %996 = vmatpush2.bf16.xpose.msra.mxu0 0
      %997 = vmatprep.subr.bf16.mxu0 0
      %998 = vmatpush2.bf16.xpose.msra.mxu0 0
      %999 = vmatprep.subr.bf16.mxu0 0
      %1000 = vmatpush2.bf16.xpose.msra.mxu0 0
      %1001 = vmatprep.subr.bf16.mxu0 0
      %1002 = vmatpush2.bf16.xpose.msra.mxu0 0
      %1003 = vmatprep.mubr.bf16.mxu0 0
      %1004 = vmatmul.mubr.bf16.gmra.mxu0 %v966
      %v1005 = vpop.f32.mrf.mxu0
      %v1006 = vadd.f32 0.0, %v1005
      %v1007 = vpop.f32.mrf.mxu0
      %v1008 = vpop.f32.mrf.mxu0
      %v1009 = vpop.f32.mrf.mxu0
      %1010 = vdwg.mxu0
      %v1011 = vmul.f32 %v1006, 0.35355338
      %v1012 = vadd.f32 %v1011, %v458
      %v1013 = vsel %vm657, %v1012, -inf
      %1014 = vmax.xlane.f32.xlu0 %v1013
      %v1015 = vpop.xlane.xlu0 %1014
      %v1016 = vsub.f32 %v1012, %v1015
      %v1017 = vmul.f32 %v1016, 1.442695
      %v1018 = vpow.pop %v1017
      %v1019 = vsel %vm657, %v1018, 0.0
      %1020 = vadd.xlane.f32.xlu0 %v1019
      %v1021 = vpop.xlane.xlu0 %1020
      %v1022 = vrcp.pop %v1021
      %v1023 = vmul.f32 %v1018, %v1022
      %v1024 = vpack.c.bf16 %v1023, %v1023
      %v1025 = vpack.c.bf16 %v958, %v958
      %v1027 = vsel %vm657, %v1024, 0
      %v1030 = vsel %vm722, %v1025, 0
      %1032 = vmatprep.subr.bf16.mxu0 0
      %1033 = vmatpush1.bf16.msra.mxu0 0
      %1034 = vmatprep.subr.bf16.mxu0 0
      %1035 = vmatpush1.bf16.msra.mxu0 0
      %1036 = vmatprep.subr.bf16.mxu0 0
      %1037 = vmatpush1.bf16.msra.mxu0 0
      %1038 = vmatprep.subr.bf16.mxu0 0
      %1039 = vmatpush1.bf16.msra.mxu0 0
      %1040 = vmatprep.subr.bf16.mxu0 0
      %1041 = vmatpush1.bf16.msra.mxu0 0
      %1042 = vmatprep.subr.bf16.mxu0 0
      %1043 = vmatpush1.bf16.msra.mxu0 0
      %1044 = vmatprep.subr.bf16.mxu0 0
      %1045 = vmatpush1.bf16.msra.mxu0 0
      %1046 = vmatprep.subr.bf16.mxu0 0
      %1047 = vmatpush1.bf16.msra.mxu0 %v1030
      %1048 = vmatprep.subr.bf16.mxu0 0
      %1049 = vmatpush2.bf16.msra.mxu0 0
      %1050 = vmatprep.subr.bf16.mxu0 0
      %1051 = vmatpush2.bf16.msra.mxu0 0
      %1052 = vmatprep.subr.bf16.mxu0 0
      %1053 = vmatpush2.bf16.msra.mxu0 0
      %1054 = vmatprep.subr.bf16.mxu0 0
      %1055 = vmatpush2.bf16.msra.mxu0 0
      %1056 = vmatprep.subr.bf16.mxu0 0
      %1057 = vmatpush2.bf16.msra.mxu0 0
      %1058 = vmatprep.subr.bf16.mxu0 0
      %1059 = vmatpush2.bf16.msra.mxu0 0
      %1060 = vmatprep.subr.bf16.mxu0 0
      %1061 = vmatpush2.bf16.msra.mxu0 0
      %1062 = vmatprep.subr.bf16.mxu0 0
      %1063 = vmatpush2.bf16.msra.mxu0 0
      %1064 = vmatprep.mubr.bf16.mxu0 0
      %1065 = vmatmul.mubr.bf16.gmra.mxu0 %v1027
      %v1066 = vpop.f32.mrf.mxu0
      %v1067 = vadd.f32 0.0, %v1066
      %v1068 = vpop.f32.mrf.mxu0
      %v1069 = vpop.f32.mrf.mxu0
      %v1070 = vpop.f32.mrf.mxu0
      %1071 = vdwg.mxu0
      %v1072 = vpack.c.bf16 %v1067, %v1067
      %s1073 = scalar_lea.vmem %s8, 4
      %v1074 = vld [vmem:[%s1073] sm:$0xf]
      %v1076 = vsel %vm657, %v1072, 0
      %v1079 = vsel %vm722, %v1074, 0
      %1081 = vmatprep.subr.bf16.mxu0 0
      %1082 = vmatpush1.bf16.msra.mxu0 0
      %1083 = vmatprep.subr.bf16.mxu0 0
      %1084 = vmatpush1.bf16.msra.mxu0 0
      %1085 = vmatprep.subr.bf16.mxu0 0
      %1086 = vmatpush1.bf16.msra.mxu0 0
      %1087 = vmatprep.subr.bf16.mxu0 0
      %1088 = vmatpush1.bf16.msra.mxu0 0
      %1089 = vmatprep.subr.bf16.mxu0 0
      %1090 = vmatpush1.bf16.msra.mxu0 0
      %1091 = vmatprep.subr.bf16.mxu0 0
      %1092 = vmatpush1.bf16.msra.mxu0 0
      %1093 = vmatprep.subr.bf16.mxu0 0
      %1094 = vmatpush1.bf16.msra.mxu0 0
      %1095 = vmatprep.subr.bf16.mxu0 0
      %1096 = vmatpush1.bf16.msra.mxu0 %v1079
      %1097 = vmatprep.subr.bf16.mxu0 0
      %1098 = vmatpush2.bf16.msra.mxu0 0
      %1099 = vmatprep.subr.bf16.mxu0 0
      %1100 = vmatpush2.bf16.msra.mxu0 0
      %1101 = vmatprep.subr.bf16.mxu0 0
      %1102 = vmatpush2.bf16.msra.mxu0 0
      %1103 = vmatprep.subr.bf16.mxu0 0
      %1104 = vmatpush2.bf16.msra.mxu0 0
      %1105 = vmatprep.subr.bf16.mxu0 0
      %1106 = vmatpush2.bf16.msra.mxu0 0
      %1107 = vmatprep.subr.bf16.mxu0 0
      %1108 = vmatpush2.bf16.msra.mxu0 0
      %1109 = vmatprep.subr.bf16.mxu0 0
      %1110 = vmatpush2.bf16.msra.mxu0 0
      %1111 = vmatprep.subr.bf16.mxu0 0
      %1112 = vmatpush2.bf16.msra.mxu0 0
      %1113 = vmatprep.mubr.bf16.mxu0 0
      %1114 = vmatmul.mubr.bf16.gmra.mxu0 %v1076
      %v1115 = vpop.f32.mrf.mxu0
      %v1116 = vadd.f32 0.0, %v1115
      %v1117 = vpop.f32.mrf.mxu0
      %v1118 = vpop.f32.mrf.mxu0
      %v1119 = vpop.f32.mrf.mxu0
      %1120 = vdwg.mxu0
      %v1122 = vsel %vm657, %v766, 0
      %v1125 = vsel %vm722, %v767, 0
      %1127 = vmatprep.subr.bf16.mxu0 0
      %1128 = vmatpush1.bf16.msra.mxu0 0
      %1129 = vmatprep.subr.bf16.mxu0 0
      %1130 = vmatpush1.bf16.msra.mxu0 0
      %1131 = vmatprep.subr.bf16.mxu0 0
      %1132 = vmatpush1.bf16.msra.mxu0 0
      %1133 = vmatprep.subr.bf16.mxu0 0
      %1134 = vmatpush1.bf16.msra.mxu0 0
      %1135 = vmatprep.subr.bf16.mxu0 0
      %1136 = vmatpush1.bf16.msra.mxu0 0
      %1137 = vmatprep.subr.bf16.mxu0 0
      %1138 = vmatpush1.bf16.msra.mxu0 0
      %1139 = vmatprep.subr.bf16.mxu0 0
      %1140 = vmatpush1.bf16.msra.mxu0 0
      %1141 = vmatprep.subr.bf16.mxu0 0
      %1142 = vmatpush1.bf16.msra.mxu0 %v1125
      %1143 = vmatprep.subr.bf16.mxu0 0
      %1144 = vmatpush2.bf16.msra.mxu0 0
      %1145 = vmatprep.subr.bf16.mxu0 0
      %1146 = vmatpush2.bf16.msra.mxu0 0
      %1147 = vmatprep.subr.bf16.mxu0 0
      %1148 = vmatpush2.bf16.msra.mxu0 0
      %1149 = vmatprep.subr.bf16.mxu0 0
      %1150 = vmatpush2.bf16.msra.mxu0 0
      %1151 = vmatprep.subr.bf16.mxu0 0
      %1152 = vmatpush2.bf16.msra.mxu0 0
      %1153 = vmatprep.subr.bf16.mxu0 0
      %1154 = vmatpush2.bf16.msra.mxu0 0
      %1155 = vmatprep.subr.bf16.mxu0 0
      %1156 = vmatpush2.bf16.msra.mxu0 0
      %1157 = vmatprep.subr.bf16.mxu0 0
      %1158 = vmatpush2.bf16.msra.mxu0 0
      %1159 = vmatprep.mubr.bf16.mxu0 0
      %1160 = vmatmul.mubr.bf16.gmra.mxu0 %v1122
      %v1161 = vpop.f32.mrf.mxu0
      %v1162 = vadd.f32 %v1116, %v1161
      %v1163 = vpop.f32.mrf.mxu0
      %v1164 = vpop.f32.mrf.mxu0
      %v1165 = vpop.f32.mrf.mxu0
      %1166 = vdwg.mxu0
      %s1167 = scalar_lea.vmem %s2, 32
      %v1168 = vld [vmem:[%s1167] sm:$0xf]
      %v1169 = vld [vmem:[%s1167 + $0x4] sm:$0xf]
      %v1170 = vld [vmem:[%s1167 + $0x8] sm:$0xf]
      %v1171 = vld [vmem:[%s1167 + $0xc] sm:$0xf]
      %s1172 = scalar_lea.vmem %s3, 2
      %v1173 = vld [vmem:[%s1172] sm:$0x1]
      %v1175 = vlaneseq
      %v1176 = vshrl.u32 %v1175, 7
      %v1177 = vsub.s32 0, %v1176
      %v1178 = vrot.slane %v1173, %v1177
      %v1184 = vunpack.c.l.b16 %v1168
      %v1185 = vunpack.c.l.b16 %v1169
      %v1186 = vunpack.c.l.b16 %v1170
      %v1187 = vunpack.c.l.b16 %v1171
      %v1188 = vpack.c.b16 %v1185, %v1184
      %v1189 = vpack.c.b16 %v1187, %v1186
      %1192 = vmatprep.subr.bf16.mxu0 0
      %1193 = vmatpush1.bf16.msra.mxu0 0
      %1194 = vmatprep.subr.bf16.mxu0 0
      %1195 = vmatpush1.bf16.msra.mxu0 0
      %1196 = vmatprep.subr.bf16.mxu0 0
      %1197 = vmatpush1.bf16.msra.mxu0 0
      %1198 = vmatprep.subr.bf16.mxu0 0
      %1199 = vmatpush1.bf16.msra.mxu0 0
      %1200 = vmatprep.subr.bf16.mxu0 0
      %1201 = vmatpush1.bf16.msra.mxu0 0
      %1202 = vmatprep.subr.bf16.mxu0 0
      %1203 = vmatpush1.bf16.msra.mxu0 0
      %1204 = vmatprep.subr.bf16.mxu0 0
      %1205 = vmatpush1.bf16.msra.mxu0 %v1189
      %1206 = vmatprep.subr.bf16.mxu0 0
      %1207 = vmatpush1.bf16.msra.mxu0 %v1188
      %1208 = vmatprep.subr.bf16.mxu0 0
      %1209 = vmatpush2.bf16.msra.mxu0 0
      %1210 = vmatprep.subr.bf16.mxu0 0
      %1211 = vmatpush2.bf16.msra.mxu0 0
      %1212 = vmatprep.subr.bf16.mxu0 0
      %1213 = vmatpush2.bf16.msra.mxu0 0
      %1214 = vmatprep.subr.bf16.mxu0 0
      %1215 = vmatpush2.bf16.msra.mxu0 0
      %1216 = vmatprep.subr.bf16.mxu0 0
      %1217 = vmatpush2.bf16.msra.mxu0 0
      %1218 = vmatprep.subr.bf16.mxu0 0
      %1219 = vmatpush2.bf16.msra.mxu0 0
      %1220 = vmatprep.subr.bf16.mxu0 0
      %1221 = vmatpush2.bf16.msra.mxu0 0
      %1222 = vmatprep.subr.bf16.mxu0 0
      %1223 = vmatpush2.bf16.msra.mxu0 0
      %1224 = vmatprep.mubr.bf16.mxu0 0
      %1225 = vmatmul.mubr.bf16.gmra.mxu0 %v484
      %v1226 = vpop.f32.mrf.mxu0
      %v1227 = vadd.f32 %v1178, %v1226
      %v1228 = vpop.f32.mrf.mxu0
      %v1229 = vpop.f32.mrf.mxu0
      %v1230 = vpop.f32.mrf.mxu0
      %1231 = vdwg.mxu0
      %s1232 = scalar_lea.vmem %s4, 32
      %v1233 = vld [vmem:[%s1232] sm:$0xf]
      %v1234 = vld [vmem:[%s1232 + $0x4] sm:$0xf]
      %v1235 = vld [vmem:[%s1232 + $0x8] sm:$0xf]
      %v1236 = vld [vmem:[%s1232 + $0xc] sm:$0xf]
      %s1237 = scalar_lea.vmem %s5, 2
      %v1238 = vld [vmem:[%s1237] sm:$0x1]
      %v1240 = vlaneseq
      %v1241 = vshrl.u32 %v1240, 7
      %v1242 = vsub.s32 0, %v1241
      %v1243 = vrot.slane %v1238, %v1242
      %v1249 = vunpack.c.l.b16 %v1233
      %v1250 = vunpack.c.l.b16 %v1234
      %v1251 = vunpack.c.l.b16 %v1235
      %v1252 = vunpack.c.l.b16 %v1236
      %v1253 = vpack.c.b16 %v1250, %v1249
      %v1254 = vpack.c.b16 %v1252, %v1251
      %1257 = vmatprep.subr.bf16.mxu0 0
      %1258 = vmatpush1.bf16.msra.mxu0 0
      %1259 = vmatprep.subr.bf16.mxu0 0
      %1260 = vmatpush1.bf16.msra.mxu0 0
      %1261 = vmatprep.subr.bf16.mxu0 0
      %1262 = vmatpush1.bf16.msra.mxu0 0
      %1263 = vmatprep.subr.bf16.mxu0 0
      %1264 = vmatpush1.bf16.msra.mxu0 0
      %1265 = vmatprep.subr.bf16.mxu0 0
      %1266 = vmatpush1.bf16.msra.mxu0 0
      %1267 = vmatprep.subr.bf16.mxu0 0
      %1268 = vmatpush1.bf16.msra.mxu0 0
      %1269 = vmatprep.subr.bf16.mxu0 0
      %1270 = vmatpush1.bf16.msra.mxu0 %v1254
      %1271 = vmatprep.subr.bf16.mxu0 0
      %1272 = vmatpush1.bf16.msra.mxu0 %v1253
      %1273 = vmatprep.subr.bf16.mxu0 0
      %1274 = vmatpush2.bf16.msra.mxu0 0
      %1275 = vmatprep.subr.bf16.mxu0 0
      %1276 = vmatpush2.bf16.msra.mxu0 0
      %1277 = vmatprep.subr.bf16.mxu0 0
      %1278 = vmatpush2.bf16.msra.mxu0 0
      %1279 = vmatprep.subr.bf16.mxu0 0
      %1280 = vmatpush2.bf16.msra.mxu0 0
      %1281 = vmatprep.subr.bf16.mxu0 0
      %1282 = vmatpush2.bf16.msra.mxu0 0
      %1283 = vmatprep.subr.bf16.mxu0 0
      %1284 = vmatpush2.bf16.msra.mxu0 0
      %1285 = vmatprep.subr.bf16.mxu0 0
      %1286 = vmatpush2.bf16.msra.mxu0 0
      %1287 = vmatprep.subr.bf16.mxu0 0
      %1288 = vmatpush2.bf16.msra.mxu0 0
      %1289 = vmatprep.mubr.bf16.mxu0 0
      %1290 = vmatmul.mubr.bf16.gmra.mxu0 %v550
      %v1291 = vpop.f32.mrf.mxu0
      %v1292 = vadd.f32 %v1243, %v1291
      %v1293 = vpop.f32.mrf.mxu0
      %v1294 = vpop.f32.mrf.mxu0
      %v1295 = vpop.f32.mrf.mxu0
      %1296 = vdwg.mxu0
      %s1297 = scalar_lea.vmem %s6, 32
      %v1298 = vld [vmem:[%s1297] sm:$0xf]
      %v1299 = vld [vmem:[%s1297 + $0x4] sm:$0xf]
      %v1300 = vld [vmem:[%s1297 + $0x8] sm:$0xf]
      %v1301 = vld [vmem:[%s1297 + $0xc] sm:$0xf]
      %s1302 = scalar_lea.vmem %s7, 2
      %v1303 = vld [vmem:[%s1302] sm:$0x1]
      %v1305 = vlaneseq
      %v1306 = vshrl.u32 %v1305, 7
      %v1307 = vsub.s32 0, %v1306
      %v1308 = vrot.slane %v1303, %v1307
      %v1314 = vunpack.c.l.b16 %v1298
      %v1315 = vunpack.c.l.b16 %v1299
      %v1316 = vunpack.c.l.b16 %v1300
      %v1317 = vunpack.c.l.b16 %v1301
      %v1318 = vpack.c.b16 %v1315, %v1314
      %v1319 = vpack.c.b16 %v1317, %v1316
      %1322 = vmatprep.subr.bf16.mxu0 0
      %1323 = vmatpush1.bf16.msra.mxu0 0
      %1324 = vmatprep.subr.bf16.mxu0 0
      %1325 = vmatpush1.bf16.msra.mxu0 0
      %1326 = vmatprep.subr.bf16.mxu0 0
      %1327 = vmatpush1.bf16.msra.mxu0 0
      %1328 = vmatprep.subr.bf16.mxu0 0
      %1329 = vmatpush1.bf16.msra.mxu0 0
      %1330 = vmatprep.subr.bf16.mxu0 0
      %1331 = vmatpush1.bf16.msra.mxu0 0
      %1332 = vmatprep.subr.bf16.mxu0 0
      %1333 = vmatpush1.bf16.msra.mxu0 0
      %1334 = vmatprep.subr.bf16.mxu0 0
      %1335 = vmatpush1.bf16.msra.mxu0 %v1319
      %1336 = vmatprep.subr.bf16.mxu0 0
      %1337 = vmatpush1.bf16.msra.mxu0 %v1318
      %1338 = vmatprep.subr.bf16.mxu0 0
      %1339 = vmatpush2.bf16.msra.mxu0 0
      %1340 = vmatprep.subr.bf16.mxu0 0
      %1341 = vmatpush2.bf16.msra.mxu0 0
      %1342 = vmatprep.subr.bf16.mxu0 0
      %1343 = vmatpush2.bf16.msra.mxu0 0
      %1344 = vmatprep.subr.bf16.mxu0 0
      %1345 = vmatpush2.bf16.msra.mxu0 0
      %1346 = vmatprep.subr.bf16.mxu0 0
      %1347 = vmatpush2.bf16.msra.mxu0 0
      %1348 = vmatprep.subr.bf16.mxu0 0
      %1349 = vmatpush2.bf16.msra.mxu0 0
      %1350 = vmatprep.subr.bf16.mxu0 0
      %1351 = vmatpush2.bf16.msra.mxu0 0
      %1352 = vmatprep.subr.bf16.mxu0 0
      %1353 = vmatpush2.bf16.msra.mxu0 0
      %1354 = vmatprep.mubr.bf16.mxu0 0
      %1355 = vmatmul.mubr.bf16.gmra.mxu0 %v550
      %v1356 = vpop.f32.mrf.mxu0
      %v1357 = vadd.f32 %v1308, %v1356
      %v1358 = vpop.f32.mrf.mxu0
      %v1359 = vpop.f32.mrf.mxu0
      %v1360 = vpop.f32.mrf.mxu0
      %1361 = vdwg.mxu0
      %v1362 = vpack.c.bf16 %v1227, %v1227
      %v1363 = vpack.c.bf16 %v1292, %v1292
      %v1365 = vsel %vm657, %v1362, 0
      %v1368 = vsel %vm657, %v1363, 0
      %1370 = vmatprep.subr.bf16.mxu0 0
      %1371 = vmatpush1.bf16.xpose.msra.mxu0 0
      %1372 = vmatprep.subr.bf16.mxu0 0
      %1373 = vmatpush1.bf16.xpose.msra.mxu0 0
      %1374 = vmatprep.subr.bf16.mxu0 0
      %1375 = vmatpush1.bf16.xpose.msra.mxu0 0
      %1376 = vmatprep.subr.bf16.mxu0 0
      %1377 = vmatpush1.bf16.xpose.msra.mxu0 0
      %1378 = vmatprep.subr.bf16.mxu0 0
      %1379 = vmatpush1.bf16.xpose.msra.mxu0 0
      %1380 = vmatprep.subr.bf16.mxu0 0
      %1381 = vmatpush1.bf16.xpose.msra.mxu0 0
      %1382 = vmatprep.subr.bf16.mxu0 0
      %1383 = vmatpush1.bf16.xpose.msra.mxu0 0
      %1384 = vmatprep.subr.bf16.mxu0 0
      %1385 = vmatpush1.bf16.xpose.msra.mxu0 %v1368
      %1386 = vmatprep.subr.bf16.mxu0 0
      %1387 = vmatpush2.bf16.xpose.msra.mxu0 0
      %1388 = vmatprep.subr.bf16.mxu0 0
      %1389 = vmatpush2.bf16.xpose.msra.mxu0 0
      %1390 = vmatprep.subr.bf16.mxu0 0
      %1391 = vmatpush2.bf16.xpose.msra.mxu0 0
      %1392 = vmatprep.subr.bf16.mxu0 0
      %1393 = vmatpush2.bf16.xpose.msra.mxu0 0
      %1394 = vmatprep.subr.bf16.mxu0 0
      %1395 = vmatpush2.bf16.xpose.msra.mxu0 0
      %1396 = vmatprep.subr.bf16.mxu0 0
      %1397 = vmatpush2.bf16.xpose.msra.mxu0 0
      %1398 = vmatprep.subr.bf16.mxu0 0
      %1399 = vmatpush2.bf16.xpose.msra.mxu0 0
      %1400 = vmatprep.subr.bf16.mxu0 0
      %1401 = vmatpush2.bf16.xpose.msra.mxu0 0
      %1402 = vmatprep.mubr.bf16.mxu0 0
      %1403 = vmatmul.mubr.bf16.gmra.mxu0 %v1365
      %v1404 = vpop.f32.mrf.mxu0
      %v1405 = vadd.f32 0.0, %v1404
      %v1406 = vpop.f32.mrf.mxu0
      %v1407 = vpop.f32.mrf.mxu0
      %v1408 = vpop.f32.mrf.mxu0
      %1409 = vdwg.mxu0
      %v1410 = vmul.f32 %v1405, 0.35355338
      %v1411 = vadd.f32 %v1410, %v458
      %v1412 = vsel %vm657, %v1411, -inf
      %1413 = vmax.xlane.f32.xlu0 %v1412
      %v1414 = vpop.xlane.xlu0 %1413
      %v1415 = vsub.f32 %v1411, %v1414
      %v1416 = vmul.f32 %v1415, 1.442695
      %v1417 = vpow.pop %v1416
      %v1418 = vsel %vm657, %v1417, 0.0
      %1419 = vadd.xlane.f32.xlu0 %v1418
      %v1420 = vpop.xlane.xlu0 %1419
      %v1421 = vrcp.pop %v1420
      %v1422 = vmul.f32 %v1417, %v1421
      %v1423 = vpack.c.bf16 %v1422, %v1422
      %v1424 = vpack.c.bf16 %v1357, %v1357
      %v1426 = vsel %vm657, %v1423, 0
      %v1429 = vsel %vm722, %v1424, 0
      %1431 = vmatprep.subr.bf16.mxu0 0
      %1432 = vmatpush1.bf16.msra.mxu0 0
      %1433 = vmatprep.subr.bf16.mxu0 0
      %1434 = vmatpush1.bf16.msra.mxu0 0
      %1435 = vmatprep.subr.bf16.mxu0 0
      %1436 = vmatpush1.bf16.msra.mxu0 0
      %1437 = vmatprep.subr.bf16.mxu0 0
      %1438 = vmatpush1.bf16.msra.mxu0 0
      %1439 = vmatprep.subr.bf16.mxu0 0
      %1440 = vmatpush1.bf16.msra.mxu0 0
      %1441 = vmatprep.subr.bf16.mxu0 0
      %1442 = vmatpush1.bf16.msra.mxu0 0
      %1443 = vmatprep.subr.bf16.mxu0 0
      %1444 = vmatpush1.bf16.msra.mxu0 0
      %1445 = vmatprep.subr.bf16.mxu0 0
      %1446 = vmatpush1.bf16.msra.mxu0 %v1429
      %1447 = vmatprep.subr.bf16.mxu0 0
      %1448 = vmatpush2.bf16.msra.mxu0 0
      %1449 = vmatprep.subr.bf16.mxu0 0
      %1450 = vmatpush2.bf16.msra.mxu0 0
      %1451 = vmatprep.subr.bf16.mxu0 0
      %1452 = vmatpush2.bf16.msra.mxu0 0
      %1453 = vmatprep.subr.bf16.mxu0 0
      %1454 = vmatpush2.bf16.msra.mxu0 0
      %1455 = vmatprep.subr.bf16.mxu0 0
      %1456 = vmatpush2.bf16.msra.mxu0 0
      %1457 = vmatprep.subr.bf16.mxu0 0
      %1458 = vmatpush2.bf16.msra.mxu0 0
      %1459 = vmatprep.subr.bf16.mxu0 0
      %1460 = vmatpush2.bf16.msra.mxu0 0
      %1461 = vmatprep.subr.bf16.mxu0 0
      %1462 = vmatpush2.bf16.msra.mxu0 0
      %1463 = vmatprep.mubr.bf16.mxu0 0
      %1464 = vmatmul.mubr.bf16.gmra.mxu0 %v1426
      %v1465 = vpop.f32.mrf.mxu0
      %v1466 = vadd.f32 0.0, %v1465
      %v1467 = vpop.f32.mrf.mxu0
      %v1468 = vpop.f32.mrf.mxu0
      %v1469 = vpop.f32.mrf.mxu0
      %1470 = vdwg.mxu0
      %v1471 = vpack.c.bf16 %v1466, %v1466
      %s1472 = scalar_lea.vmem %s8, 8
      %v1473 = vld [vmem:[%s1472] sm:$0xf]
      %v1475 = vsel %vm657, %v1471, 0
      %v1478 = vsel %vm722, %v1473, 0
      %1480 = vmatprep.subr.bf16.mxu0 0
      %1481 = vmatpush1.bf16.msra.mxu0 0
      %1482 = vmatprep.subr.bf16.mxu0 0
      %1483 = vmatpush1.bf16.msra.mxu0 0
      %1484 = vmatprep.subr.bf16.mxu0 0
      %1485 = vmatpush1.bf16.msra.mxu0 0
      %1486 = vmatprep.subr.bf16.mxu0 0
      %1487 = vmatpush1.bf16.msra.mxu0 0
      %1488 = vmatprep.subr.bf16.mxu0 0
      %1489 = vmatpush1.bf16.msra.mxu0 0
      %1490 = vmatprep.subr.bf16.mxu0 0
      %1491 = vmatpush1.bf16.msra.mxu0 0
      %1492 = vmatprep.subr.bf16.mxu0 0
      %1493 = vmatpush1.bf16.msra.mxu0 0
      %1494 = vmatprep.subr.bf16.mxu0 0
      %1495 = vmatpush1.bf16.msra.mxu0 %v1478
      %1496 = vmatprep.subr.bf16.mxu0 0
      %1497 = vmatpush2.bf16.msra.mxu0 0
      %1498 = vmatprep.subr.bf16.mxu0 0
      %1499 = vmatpush2.bf16.msra.mxu0 0
      %1500 = vmatprep.subr.bf16.mxu0 0
      %1501 = vmatpush2.bf16.msra.mxu0 0
      %1502 = vmatprep.subr.bf16.mxu0 0
      %1503 = vmatpush2.bf16.msra.mxu0 0
      %1504 = vmatprep.subr.bf16.mxu0 0
      %1505 = vmatpush2.bf16.msra.mxu0 0
      %1506 = vmatprep.subr.bf16.mxu0 0
      %1507 = vmatpush2.bf16.msra.mxu0 0
      %1508 = vmatprep.subr.bf16.mxu0 0
      %1509 = vmatpush2.bf16.msra.mxu0 0
      %1510 = vmatprep.subr.bf16.mxu0 0
      %1511 = vmatpush2.bf16.msra.mxu0 0
      %1512 = vmatprep.mubr.bf16.mxu0 0
      %1513 = vmatmul.mubr.bf16.gmra.mxu0 %v1475
      %v1514 = vpop.f32.mrf.mxu0
      %v1515 = vadd.f32 0.0, %v1514
      %v1516 = vpop.f32.mrf.mxu0
      %v1517 = vpop.f32.mrf.mxu0
      %v1518 = vpop.f32.mrf.mxu0
      %1519 = vdwg.mxu0
      %v1520 = vadd.f32 %v1162, %v1515
      %s1521 = scalar_lea.vmem %s2, 48
      %v1522 = vld [vmem:[%s1521] sm:$0xf]
      %v1523 = vld [vmem:[%s1521 + $0x4] sm:$0xf]
      %v1524 = vld [vmem:[%s1521 + $0x8] sm:$0xf]
      %v1525 = vld [vmem:[%s1521 + $0xc] sm:$0xf]
      %s1526 = scalar_lea.vmem %s3, 3
      %v1527 = vld [vmem:[%s1526] sm:$0x1]
      %v1529 = vlaneseq
      %v1530 = vshrl.u32 %v1529, 7
      %v1531 = vsub.s32 0, %v1530
      %v1532 = vrot.slane %v1527, %v1531
      %v1538 = vunpack.c.l.b16 %v1522
      %v1539 = vunpack.c.l.b16 %v1523
      %v1540 = vunpack.c.l.b16 %v1524
      %v1541 = vunpack.c.l.b16 %v1525
      %v1542 = vpack.c.b16 %v1539, %v1538
      %v1543 = vpack.c.b16 %v1541, %v1540
      %1546 = vmatprep.subr.bf16.mxu0 0
      %1547 = vmatpush1.bf16.msra.mxu0 0
      %1548 = vmatprep.subr.bf16.mxu0 0
      %1549 = vmatpush1.bf16.msra.mxu0 0
      %1550 = vmatprep.subr.bf16.mxu0 0
      %1551 = vmatpush1.bf16.msra.mxu0 0
      %1552 = vmatprep.subr.bf16.mxu0 0
      %1553 = vmatpush1.bf16.msra.mxu0 0
      %1554 = vmatprep.subr.bf16.mxu0 0
      %1555 = vmatpush1.bf16.msra.mxu0 0
      %1556 = vmatprep.subr.bf16.mxu0 0
      %1557 = vmatpush1.bf16.msra.mxu0 0
      %1558 = vmatprep.subr.bf16.mxu0 0
      %1559 = vmatpush1.bf16.msra.mxu0 %v1543
      %1560 = vmatprep.subr.bf16.mxu0 0
      %1561 = vmatpush1.bf16.msra.mxu0 %v1542
      %1562 = vmatprep.subr.bf16.mxu0 0
      %1563 = vmatpush2.bf16.msra.mxu0 0
      %1564 = vmatprep.subr.bf16.mxu0 0
      %1565 = vmatpush2.bf16.msra.mxu0 0
      %1566 = vmatprep.subr.bf16.mxu0 0
      %1567 = vmatpush2.bf16.msra.mxu0 0
      %1568 = vmatprep.subr.bf16.mxu0 0
      %1569 = vmatpush2.bf16.msra.mxu0 0
      %1570 = vmatprep.subr.bf16.mxu0 0
      %1571 = vmatpush2.bf16.msra.mxu0 0
      %1572 = vmatprep.subr.bf16.mxu0 0
      %1573 = vmatpush2.bf16.msra.mxu0 0
      %1574 = vmatprep.subr.bf16.mxu0 0
      %1575 = vmatpush2.bf16.msra.mxu0 0
      %1576 = vmatprep.subr.bf16.mxu0 0
      %1577 = vmatpush2.bf16.msra.mxu0 0
      %1578 = vmatprep.mubr.bf16.mxu0 0
      %1579 = vmatmul.mubr.bf16.gmra.mxu0 %v484
      %v1580 = vpop.f32.mrf.mxu0
      %v1581 = vadd.f32 %v1532, %v1580
      %v1582 = vpop.f32.mrf.mxu0
      %v1583 = vpop.f32.mrf.mxu0
      %v1584 = vpop.f32.mrf.mxu0
      %1585 = vdwg.mxu0
      %s1586 = scalar_lea.vmem %s4, 48
      %v1587 = vld [vmem:[%s1586] sm:$0xf]
      %v1588 = vld [vmem:[%s1586 + $0x4] sm:$0xf]
      %v1589 = vld [vmem:[%s1586 + $0x8] sm:$0xf]
      %v1590 = vld [vmem:[%s1586 + $0xc] sm:$0xf]
      %s1591 = scalar_lea.vmem %s5, 3
      %v1592 = vld [vmem:[%s1591] sm:$0x1]
      %v1594 = vlaneseq
      %v1595 = vshrl.u32 %v1594, 7
      %v1596 = vsub.s32 0, %v1595
      %v1597 = vrot.slane %v1592, %v1596
      %v1603 = vunpack.c.l.b16 %v1587
      %v1604 = vunpack.c.l.b16 %v1588
      %v1605 = vunpack.c.l.b16 %v1589
      %v1606 = vunpack.c.l.b16 %v1590
      %v1607 = vpack.c.b16 %v1604, %v1603
      %v1608 = vpack.c.b16 %v1606, %v1605
      %1611 = vmatprep.subr.bf16.mxu0 0
      %1612 = vmatpush1.bf16.msra.mxu0 0
      %1613 = vmatprep.subr.bf16.mxu0 0
      %1614 = vmatpush1.bf16.msra.mxu0 0
      %1615 = vmatprep.subr.bf16.mxu0 0
      %1616 = vmatpush1.bf16.msra.mxu0 0
      %1617 = vmatprep.subr.bf16.mxu0 0
      %1618 = vmatpush1.bf16.msra.mxu0 0
      %1619 = vmatprep.subr.bf16.mxu0 0
      %1620 = vmatpush1.bf16.msra.mxu0 0
      %1621 = vmatprep.subr.bf16.mxu0 0
      %1622 = vmatpush1.bf16.msra.mxu0 0
      %1623 = vmatprep.subr.bf16.mxu0 0
      %1624 = vmatpush1.bf16.msra.mxu0 %v1608
      %1625 = vmatprep.subr.bf16.mxu0 0
      %1626 = vmatpush1.bf16.msra.mxu0 %v1607
      %1627 = vmatprep.subr.bf16.mxu0 0
      %1628 = vmatpush2.bf16.msra.mxu0 0
      %1629 = vmatprep.subr.bf16.mxu0 0
      %1630 = vmatpush2.bf16.msra.mxu0 0
      %1631 = vmatprep.subr.bf16.mxu0 0
      %1632 = vmatpush2.bf16.msra.mxu0 0
      %1633 = vmatprep.subr.bf16.mxu0 0
      %1634 = vmatpush2.bf16.msra.mxu0 0
      %1635 = vmatprep.subr.bf16.mxu0 0
      %1636 = vmatpush2.bf16.msra.mxu0 0
      %1637 = vmatprep.subr.bf16.mxu0 0
      %1638 = vmatpush2.bf16.msra.mxu0 0
      %1639 = vmatprep.subr.bf16.mxu0 0
      %1640 = vmatpush2.bf16.msra.mxu0 0
      %1641 = vmatprep.subr.bf16.mxu0 0
      %1642 = vmatpush2.bf16.msra.mxu0 0
      %1643 = vmatprep.mubr.bf16.mxu0 0
      %1644 = vmatmul.mubr.bf16.gmra.mxu0 %v550
      %v1645 = vpop.f32.mrf.mxu0
      %v1646 = vadd.f32 %v1597, %v1645
      %v1647 = vpop.f32.mrf.mxu0
      %v1648 = vpop.f32.mrf.mxu0
      %v1649 = vpop.f32.mrf.mxu0
      %1650 = vdwg.mxu0
      %s1651 = scalar_lea.vmem %s6, 48
      %v1652 = vld [vmem:[%s1651] sm:$0xf]
      %v1653 = vld [vmem:[%s1651 + $0x4] sm:$0xf]
      %v1654 = vld [vmem:[%s1651 + $0x8] sm:$0xf]
      %v1655 = vld [vmem:[%s1651 + $0xc] sm:$0xf]
      %s1656 = scalar_lea.vmem %s7, 3
      %v1657 = vld [vmem:[%s1656] sm:$0x1]
      %v1659 = vlaneseq
      %v1660 = vshrl.u32 %v1659, 7
      %v1661 = vsub.s32 0, %v1660
      %v1662 = vrot.slane %v1657, %v1661
      %v1668 = vunpack.c.l.b16 %v1652
      %v1669 = vunpack.c.l.b16 %v1653
      %v1670 = vunpack.c.l.b16 %v1654
      %v1671 = vunpack.c.l.b16 %v1655
      %v1672 = vpack.c.b16 %v1669, %v1668
      %v1673 = vpack.c.b16 %v1671, %v1670
      %1676 = vmatprep.subr.bf16.mxu0 0
      %1677 = vmatpush1.bf16.msra.mxu0 0
      %1678 = vmatprep.subr.bf16.mxu0 0
      %1679 = vmatpush1.bf16.msra.mxu0 0
      %1680 = vmatprep.subr.bf16.mxu0 0
      %1681 = vmatpush1.bf16.msra.mxu0 0
      %1682 = vmatprep.subr.bf16.mxu0 0
      %1683 = vmatpush1.bf16.msra.mxu0 0
      %1684 = vmatprep.subr.bf16.mxu0 0
      %1685 = vmatpush1.bf16.msra.mxu0 0
      %1686 = vmatprep.subr.bf16.mxu0 0
      %1687 = vmatpush1.bf16.msra.mxu0 0
      %1688 = vmatprep.subr.bf16.mxu0 0
      %1689 = vmatpush1.bf16.msra.mxu0 %v1673
      %1690 = vmatprep.subr.bf16.mxu0 0
      %1691 = vmatpush1.bf16.msra.mxu0 %v1672
      %1692 = vmatprep.subr.bf16.mxu0 0
      %1693 = vmatpush2.bf16.msra.mxu0 0
      %1694 = vmatprep.subr.bf16.mxu0 0
      %1695 = vmatpush2.bf16.msra.mxu0 0
      %1696 = vmatprep.subr.bf16.mxu0 0
      %1697 = vmatpush2.bf16.msra.mxu0 0
      %1698 = vmatprep.subr.bf16.mxu0 0
      %1699 = vmatpush2.bf16.msra.mxu0 0
      %1700 = vmatprep.subr.bf16.mxu0 0
      %1701 = vmatpush2.bf16.msra.mxu0 0
      %1702 = vmatprep.subr.bf16.mxu0 0
      %1703 = vmatpush2.bf16.msra.mxu0 0
      %1704 = vmatprep.subr.bf16.mxu0 0
      %1705 = vmatpush2.bf16.msra.mxu0 0
      %1706 = vmatprep.subr.bf16.mxu0 0
      %1707 = vmatpush2.bf16.msra.mxu0 0
      %1708 = vmatprep.mubr.bf16.mxu0 0
      %1709 = vmatmul.mubr.bf16.gmra.mxu0 %v550
      %v1710 = vpop.f32.mrf.mxu0
      %v1711 = vadd.f32 %v1662, %v1710
      %v1712 = vpop.f32.mrf.mxu0
      %v1713 = vpop.f32.mrf.mxu0
      %v1714 = vpop.f32.mrf.mxu0
      %1715 = vdwg.mxu0
      %v1716 = vpack.c.bf16 %v1581, %v1581
      %v1717 = vpack.c.bf16 %v1646, %v1646
      %v1719 = vsel %vm657, %v1716, 0
      %v1722 = vsel %vm657, %v1717, 0
      %1724 = vmatprep.subr.bf16.mxu0 0
      %1725 = vmatpush1.bf16.xpose.msra.mxu0 0
      %1726 = vmatprep.subr.bf16.mxu0 0
      %1727 = vmatpush1.bf16.xpose.msra.mxu0 0
      %1728 = vmatprep.subr.bf16.mxu0 0
      %1729 = vmatpush1.bf16.xpose.msra.mxu0 0
      %1730 = vmatprep.subr.bf16.mxu0 0
      %1731 = vmatpush1.bf16.xpose.msra.mxu0 0
      %1732 = vmatprep.subr.bf16.mxu0 0
      %1733 = vmatpush1.bf16.xpose.msra.mxu0 0
      %1734 = vmatprep.subr.bf16.mxu0 0
      %1735 = vmatpush1.bf16.xpose.msra.mxu0 0
      %1736 = vmatprep.subr.bf16.mxu0 0
      %1737 = vmatpush1.bf16.xpose.msra.mxu0 0
      %1738 = vmatprep.subr.bf16.mxu0 0
      %1739 = vmatpush1.bf16.xpose.msra.mxu0 %v1722
      %1740 = vmatprep.subr.bf16.mxu0 0
      %1741 = vmatpush2.bf16.xpose.msra.mxu0 0
      %1742 = vmatprep.subr.bf16.mxu0 0
      %1743 = vmatpush2.bf16.xpose.msra.mxu0 0
      %1744 = vmatprep.subr.bf16.mxu0 0
      %1745 = vmatpush2.bf16.xpose.msra.mxu0 0
      %1746 = vmatprep.subr.bf16.mxu0 0
      %1747 = vmatpush2.bf16.xpose.msra.mxu0 0
      %1748 = vmatprep.subr.bf16.mxu0 0
      %1749 = vmatpush2.bf16.xpose.msra.mxu0 0
      %1750 = vmatprep.subr.bf16.mxu0 0
      %1751 = vmatpush2.bf16.xpose.msra.mxu0 0
      %1752 = vmatprep.subr.bf16.mxu0 0
      %1753 = vmatpush2.bf16.xpose.msra.mxu0 0
      %1754 = vmatprep.subr.bf16.mxu0 0
      %1755 = vmatpush2.bf16.xpose.msra.mxu0 0
      %1756 = vmatprep.mubr.bf16.mxu0 0
      %1757 = vmatmul.mubr.bf16.gmra.mxu0 %v1719
      %v1758 = vpop.f32.mrf.mxu0
      %v1759 = vadd.f32 0.0, %v1758
      %v1760 = vpop.f32.mrf.mxu0
      %v1761 = vpop.f32.mrf.mxu0
      %v1762 = vpop.f32.mrf.mxu0
      %1763 = vdwg.mxu0
      %v1764 = vmul.f32 %v1759, 0.35355338
      %v1765 = vadd.f32 %v1764, %v458
      %v1766 = vsel %vm657, %v1765, -inf
      %1767 = vmax.xlane.f32.xlu0 %v1766
      %v1768 = vpop.xlane.xlu0 %1767
      %v1769 = vsub.f32 %v1765, %v1768
      %v1770 = vmul.f32 %v1769, 1.442695
      %v1771 = vpow.pop %v1770
      %v1772 = vsel %vm657, %v1771, 0.0
      %1773 = vadd.xlane.f32.xlu0 %v1772
      %v1774 = vpop.xlane.xlu0 %1773
      %v1775 = vrcp.pop %v1774
      %v1776 = vmul.f32 %v1771, %v1775
      %v1777 = vpack.c.bf16 %v1776, %v1776
      %v1778 = vpack.c.bf16 %v1711, %v1711
      %v1780 = vsel %vm657, %v1777, 0
      %v1783 = vsel %vm722, %v1778, 0
      %1785 = vmatprep.subr.bf16.mxu0 0
      %1786 = vmatpush1.bf16.msra.mxu0 0
      %1787 = vmatprep.subr.bf16.mxu0 0
      %1788 = vmatpush1.bf16.msra.mxu0 0
      %1789 = vmatprep.subr.bf16.mxu0 0
      %1790 = vmatpush1.bf16.msra.mxu0 0
      %1791 = vmatprep.subr.bf16.mxu0 0
      %1792 = vmatpush1.bf16.msra.mxu0 0
      %1793 = vmatprep.subr.bf16.mxu0 0
      %1794 = vmatpush1.bf16.msra.mxu0 0
      %1795 = vmatprep.subr.bf16.mxu0 0
      %1796 = vmatpush1.bf16.msra.mxu0 0
      %1797 = vmatprep.subr.bf16.mxu0 0
      %1798 = vmatpush1.bf16.msra.mxu0 0
      %1799 = vmatprep.subr.bf16.mxu0 0
      %1800 = vmatpush1.bf16.msra.mxu0 %v1783
      %1801 = vmatprep.subr.bf16.mxu0 0
      %1802 = vmatpush2.bf16.msra.mxu0 0
      %1803 = vmatprep.subr.bf16.mxu0 0
      %1804 = vmatpush2.bf16.msra.mxu0 0
      %1805 = vmatprep.subr.bf16.mxu0 0
      %1806 = vmatpush2.bf16.msra.mxu0 0
      %1807 = vmatprep.subr.bf16.mxu0 0
      %1808 = vmatpush2.bf16.msra.mxu0 0
      %1809 = vmatprep.subr.bf16.mxu0 0
      %1810 = vmatpush2.bf16.msra.mxu0 0
      %1811 = vmatprep.subr.bf16.mxu0 0
      %1812 = vmatpush2.bf16.msra.mxu0 0
      %1813 = vmatprep.subr.bf16.mxu0 0
      %1814 = vmatpush2.bf16.msra.mxu0 0
      %1815 = vmatprep.subr.bf16.mxu0 0
      %1816 = vmatpush2.bf16.msra.mxu0 0
      %1817 = vmatprep.mubr.bf16.mxu0 0
      %1818 = vmatmul.mubr.bf16.gmra.mxu0 %v1780
      %v1819 = vpop.f32.mrf.mxu0
      %v1820 = vadd.f32 0.0, %v1819
      %v1821 = vpop.f32.mrf.mxu0
      %v1822 = vpop.f32.mrf.mxu0
      %v1823 = vpop.f32.mrf.mxu0
      %1824 = vdwg.mxu0
      %v1825 = vpack.c.bf16 %v1820, %v1820
      %s1826 = scalar_lea.vmem %s8, 12
      %v1827 = vld [vmem:[%s1826] sm:$0xf]
      %v1829 = vsel %vm657, %v1825, 0
      %v1832 = vsel %vm722, %v1827, 0
      %1834 = vmatprep.subr.bf16.mxu0 0
      %1835 = vmatpush1.bf16.msra.mxu0 0
      %1836 = vmatprep.subr.bf16.mxu0 0
      %1837 = vmatpush1.bf16.msra.mxu0 0
      %1838 = vmatprep.subr.bf16.mxu0 0
      %1839 = vmatpush1.bf16.msra.mxu0 0
      %1840 = vmatprep.subr.bf16.mxu0 0
      %1841 = vmatpush1.bf16.msra.mxu0 0
      %1842 = vmatprep.subr.bf16.mxu0 0
      %1843 = vmatpush1.bf16.msra.mxu0 0
      %1844 = vmatprep.subr.bf16.mxu0 0
      %1845 = vmatpush1.bf16.msra.mxu0 0
      %1846 = vmatprep.subr.bf16.mxu0 0
      %1847 = vmatpush1.bf16.msra.mxu0 0
      %1848 = vmatprep.subr.bf16.mxu0 0
      %1849 = vmatpush1.bf16.msra.mxu0 %v1832
      %1850 = vmatprep.subr.bf16.mxu0 0
      %1851 = vmatpush2.bf16.msra.mxu0 0
      %1852 = vmatprep.subr.bf16.mxu0 0
      %1853 = vmatpush2.bf16.msra.mxu0 0
      %1854 = vmatprep.subr.bf16.mxu0 0
      %1855 = vmatpush2.bf16.msra.mxu0 0
      %1856 = vmatprep.subr.bf16.mxu0 0
      %1857 = vmatpush2.bf16.msra.mxu0 0
      %1858 = vmatprep.subr.bf16.mxu0 0
      %1859 = vmatpush2.bf16.msra.mxu0 0
      %1860 = vmatprep.subr.bf16.mxu0 0
      %1861 = vmatpush2.bf16.msra.mxu0 0
      %1862 = vmatprep.subr.bf16.mxu0 0
      %1863 = vmatpush2.bf16.msra.mxu0 0
      %1864 = vmatprep.subr.bf16.mxu0 0
      %1865 = vmatpush2.bf16.msra.mxu0 0
      %1866 = vmatprep.mubr.bf16.mxu0 0
      %1867 = vmatmul.mubr.bf16.gmra.mxu0 %v1829
      %v1868 = vpop.f32.mrf.mxu0
      %v1869 = vadd.f32 0.0, %v1868
      %v1870 = vpop.f32.mrf.mxu0
      %v1871 = vpop.f32.mrf.mxu0
      %v1872 = vpop.f32.mrf.mxu0
      %1873 = vdwg.mxu0
      %v1874 = vadd.f32 %v1520, %v1869
      %v1875 = vadd.f32 %v454, %v1874
      %v1876 = vld [vmem:[%s9] sm:$0x1]
      %v1878 = vlaneseq
      %v1879 = vshrl.u32 %v1878, 7
      %v1880 = vsub.s32 0, %v1879
      %v1881 = vrot.slane %v1876, %v1880
      %v1883 = vadd.f32 %v1875, %v1881
      %v1884 = vsel %vm482, %v1883, 0.0
      %1885 = vadd.xlane.f32.xlu0 %v1884
      %v1886 = vpop.xlane.xlu0 %1885
      %v1887 = vrcp.pop 32.0
      %v1888 = vmul.f32 %v1886, %v1887
      %v1889 = vsub.f32 %v1883, %v1888
      %v1890 = vmul.f32 %v1889, %v1889
      %v1891 = vsel %vm482, %v1890, 0.0
      %1892 = vadd.xlane.f32.xlu0 %v1891
      %v1893 = vpop.xlane.xlu0 %1892
      %v1894 = vmul.f32 %v1893, %v1887
      %v1895 = vadd.f32 %v1894, 1e-05
      %v1896 = vrsqrt.pop %v1895
      %v1897 = vmul.f32 %v1889, %v1896
      %v1898 = vld [vmem:[%s10] sm:$0x1]
      %v1900 = vlaneseq
      %v1901 = vshrl.u32 %v1900, 7
      %v1902 = vsub.s32 0, %v1901
      %v1903 = vrot.slane %v1898, %v1902
      %v1905 = vmul.f32 %v1897, %v1903
      %v1906 = vld [vmem:[%s11] sm:$0x1]
      %v1908 = vlaneseq
      %v1909 = vshrl.u32 %v1908, 7
      %v1910 = vsub.s32 0, %v1909
      %v1911 = vrot.slane %v1906, %v1910
      %v1913 = vadd.f32 %v1905, %v1911
      %1914 = vst.msk [vmem:[%s452] sm:$0xff] %vm482, %v1913
      %p1915 = scmp.lt.s32.totalorder %s24, 1
      %s1916 = scalar_select %p1915, %s24, 1
      %s1917 = smul.addr %s1916, 8
      %s1918 = scalar_lea.vmem %s13, %s1917
      // Predicated region
      $region73: #{transformer_forward.18} parent=71 // pred_check
        %p1919 = pneg %p325
      $region74: #{transformer_forward.18} parent=71 // pred_check_branch
        %1921 = sbr.rel (%p1919) target = $region76
      $region75: #{transformer_forward.18} parent=71 // pred_region
        _
      $region76: #{transformer_forward.18} parent=71 // pred_fallthru
        _
    $region72: #{transformer_forward.18} parent=5 // pred_fallthru
      _
    %p1922 = scmp.le.s32.totalorder 2, %s19
    // Predicated region
    $region77: #{transformer_forward.18} parent=5 // pred_check
      %p1923 = pneg %p1922
    $region78: #{transformer_forward.18} parent=5 // pred_check_branch
      %1925 = sbr.rel (%p1923) target = $region80
    $region79: #{transformer_forward.18} parent=5 // pred_region
      %s1926 = ssub.s32 %s19, 2
      // Predicated region
      $region81: #{transformer_forward.18} parent=79 // pred_check
        %p1927 = pneg %p331
      $region82: #{transformer_forward.18} parent=79 // pred_check_branch
        %1929 = sbr.rel (%p1927) target = $region84
      $region83: #{transformer_forward.18} parent=79 // pred_region
        %p1930 = scmp.lt.s32.totalorder %s25, 1
        %s1931 = scalar_select %p1930, %s25, 1
        %s1932 = smul.addr %s1931, 8
        %s1933 = scalar_lea.vmem %s13, %s1932
      $region84: #{transformer_forward.18} parent=79 // pred_fallthru
        _
    $region80: #{transformer_forward.18} parent=5 // pred_fallthru
      _
  $region6: #{transformer_forward.18} parent=0 // loop_footer
    %s23 = sadd.s32 1, %s19
  $region7: #{transformer_forward.18} parent=0 // loop_footer_branch
    %18 = sbr.rel target = $region3
  $region8: #{transformer_forward.18} parent=0 // loop_exit
    _

// kernel: transformer_forward.13
$region0: #{transformer_forward.13}
  #allocation0 [shape = 'u32[]', space=smem, size = 0x4, offset = 0x4, fixed_abs, tag = 'smem constant byte address 0x4 - core index']
  #allocation1 [shape = 'u32[144,128]{1,0:T(1,128)}', space=vmem, size = 0x12000, scoped, tag = 'internal scratch']
  %s0 = inlined_call_operand.vmem [shape: f32[2,8,32], index: 0, kind: input, shape index: {}, may-alias: {0,1}]
  %s1 = inlined_call_operand.vmem [shape: f32[2,8,32], index: 1, kind: input, shape index: {}, may-alias: {0,1}]
  %s2 = inlined_call_operand.vmem [shape: bf16[4,32,8], index: 2, kind: input, shape index: {}]
  %s3 = inlined_call_operand.vmem [shape: f32[4,1,8], index: 3, kind: input, shape index: {}]
  %s4 = inlined_call_operand.vmem [shape: bf16[4,32,8], index: 4, kind: input, shape index: {}]
  %s5 = inlined_call_operand.vmem [shape: f32[4,1,8], index: 5, kind: input, shape index: {}]
  %s6 = inlined_call_operand.vmem [shape: bf16[4,32,8], index: 6, kind: input, shape index: {}]
  %s7 = inlined_call_operand.vmem [shape: f32[4,1,8], index: 7, kind: input, shape index: {}]
  %s8 = inlined_call_operand.vmem [shape: bf16[4,8,32], index: 8, kind: input, shape index: {}]
  %s9 = inlined_call_operand.vmem [shape: f32[1,32], index: 9, kind: input, shape index: {}]
  %s10 = inlined_call_operand.vmem [shape: f32[1,32], index: 10, kind: input, shape index: {}]
  %s11 = inlined_call_operand.vmem [shape: f32[1,32], index: 11, kind: input, shape index: {}]
  %s12 = inlined_call_operand.vmem [shape: f32[2,8,32], index: 12, kind: output, shape index: {}]
  %s13 = sld [smem:[#allocation0]]
  $region81: #{transformer_forward.13} parent=0
    _
  %s15 = ssub.s32 1, %s13
  %s16 = scalar_select 0, %s15, %s13
  loop: start=0, step=1, limit=4
  $region2: #{transformer_forward.13} parent=0 // loop_pre_header
    _
  $region3: #{transformer_forward.13} parent=0 // loop_header
    %s18 = sphi 0, %s22
    %p19 = scmp.ge.s32.totalorder %s18, 4
    %s28 = sphi 0, %s30
    %s31 = sphi 0, %s28
    %s32 = sphi 0, %s31
    %s48 = sphi 0, %s32
    %s54 = sphi 0, %s56
    %s57 = sphi 0, %s54
    %s58 = sphi 0, %s57
    %s74 = sphi 0, %s58
    %s78 = sphi 0, %s78
    %s80 = sphi 0, %s78
    %s81 = sphi 0, %s80
    %s95 = sphi 0, %s81
    %s99 = sphi 0, %s99
    %s101 = sphi 0, %s99
    %s102 = sphi 0, %s101
    %s116 = sphi 0, %s102
    %s120 = sphi 0, %s120
    %s122 = sphi 0, %s120
    %s123 = sphi 0, %s122
    %s137 = sphi 0, %s123
    %s141 = sphi 0, %s141
    %s143 = sphi 0, %s141
    %s144 = sphi 0, %s143
    %s158 = sphi 0, %s144
    %s162 = sphi 0, %s162
    %s164 = sphi 0, %s162
    %s165 = sphi 0, %s164
    %s179 = sphi 0, %s165
    %s183 = sphi 0, %s183
    %s185 = sphi 0, %s183
    %s186 = sphi 0, %s185
    %s200 = sphi 0, %s186
    %s204 = sphi 0, %s204
    %s206 = sphi 0, %s204
    %s207 = sphi 0, %s206
    %s221 = sphi 0, %s207
    %s225 = sphi 0, %s225
    %s227 = sphi 0, %s225
    %s228 = sphi 0, %s227
    %s242 = sphi 0, %s228
    %s246 = sphi 0, %s246
    %s248 = sphi 0, %s246
    %s249 = sphi 0, %s248
    %s263 = sphi 0, %s249
    %s267 = sphi 0, %s267
    %s269 = sphi 0, %s267
    %s270 = sphi 0, %s269
    %s284 = sphi 0, %s270
    %s290 = sphi 0, %s292
    %s293 = sphi 0, %s290
    %s294 = sphi 0, %s293
    %s310 = sphi 0, %s294
  $region4: #{transformer_forward.13} parent=0 // loop_header_branch
    %21 = sbr.rel (%p19) target = $region8
  $region5: #{transformer_forward.13} parent=0 // loop_body
    %s23 = ssub.s32 %s18, 1
    %s24 = ssub.s32 %s18, 2
    %s25 = sadd.s32 %s18, 1
    %s26 = ssub.s32 %s18, %s25
    %p27 = scmp.eq.s32.totalorder %s26, 0
    %s29 = sadd.s32 %s28, 1
    %s30 = scalar_select %p27, %s28, %s29
    %p33 = pneg %p27
    %p34 = scmp.eq.s32.totalorder %s18, 1
    %p35 = por %p33, %p34
    %p36 = scmp.ne.s32.totalorder %s28, %s31
    %p37 = scmp.eq.s32.totalorder %s18, 0
    %p38 = por %p36, %p37
    %p39 = scmp.ne.s32.totalorder %s28, %s31
    %p40 = scmp.eq.s32.totalorder %s23, 1
    %p41 = por %p39, %p40
    %p42 = scmp.ne.s32.totalorder %s31, %s32
    %p43 = scmp.eq.s32.totalorder %s23, 0
    %p44 = por %p42, %p43
    %p45 = scmp.ne.s32.totalorder %s31, %s32
    %p46 = scmp.eq.s32.totalorder %s24, 1
    %p47 = por %p45, %p46
    %p49 = scmp.ne.s32.totalorder %s32, %s48
    %p50 = scmp.eq.s32.totalorder %s24, 0
    %p51 = por %p49, %p50
    %s52 = ssub.s32 %s18, %s25
    %p53 = scmp.eq.s32.totalorder %s52, 0
    %s55 = sadd.s32 %s54, 1
    %s56 = scalar_select %p53, %s54, %s55
    %p59 = pneg %p53
    %p60 = scmp.eq.s32.totalorder %s18, 1
    %p61 = por %p59, %p60
    %p62 = scmp.ne.s32.totalorder %s54, %s57
    %p63 = scmp.eq.s32.totalorder %s18, 0
    %p64 = por %p62, %p63
    %p65 = scmp.ne.s32.totalorder %s54, %s57
    %p66 = scmp.eq.s32.totalorder %s23, 1
    %p67 = por %p65, %p66
    %p68 = scmp.ne.s32.totalorder %s57, %s58
    %p69 = scmp.eq.s32.totalorder %s23, 0
    %p70 = por %p68, %p69
    %p71 = scmp.ne.s32.totalorder %s57, %s58
    %p72 = scmp.eq.s32.totalorder %s24, 1
    %p73 = por %p71, %p72
    %p75 = scmp.ne.s32.totalorder %s58, %s74
    %p76 = scmp.eq.s32.totalorder %s24, 0
    %p77 = por %p75, %p76
    %s79 = sadd.s32 %s78, 1
    %p82 = scmp.eq.s32.totalorder %s18, 1
    %p83 = scmp.ne.s32.totalorder %s78, %s80
    %p84 = scmp.eq.s32.totalorder %s18, 0
    %p85 = por %p83, %p84
    %p86 = scmp.ne.s32.totalorder %s78, %s80
    %p87 = scmp.eq.s32.totalorder %s23, 1
    %p88 = por %p86, %p87
    %p89 = scmp.ne.s32.totalorder %s80, %s81
    %p90 = scmp.eq.s32.totalorder %s23, 0
    %p91 = por %p89, %p90
    %p92 = scmp.ne.s32.totalorder %s80, %s81
    %p93 = scmp.eq.s32.totalorder %s24, 1
    %p94 = por %p92, %p93
    %p96 = scmp.ne.s32.totalorder %s81, %s95
    %p97 = scmp.eq.s32.totalorder %s24, 0
    %p98 = por %p96, %p97
    %s100 = sadd.s32 %s99, 1
    %p103 = scmp.eq.s32.totalorder %s18, 1
    %p104 = scmp.ne.s32.totalorder %s99, %s101
    %p105 = scmp.eq.s32.totalorder %s18, 0
    %p106 = por %p104, %p105
    %p107 = scmp.ne.s32.totalorder %s99, %s101
    %p108 = scmp.eq.s32.totalorder %s23, 1
    %p109 = por %p107, %p108
    %p110 = scmp.ne.s32.totalorder %s101, %s102
    %p111 = scmp.eq.s32.totalorder %s23, 0
    %p112 = por %p110, %p111
    %p113 = scmp.ne.s32.totalorder %s101, %s102
    %p114 = scmp.eq.s32.totalorder %s24, 1
    %p115 = por %p113, %p114
    %p117 = scmp.ne.s32.totalorder %s102, %s116
    %p118 = scmp.eq.s32.totalorder %s24, 0
    %p119 = por %p117, %p118
    %s121 = sadd.s32 %s120, 1
    %p124 = scmp.eq.s32.totalorder %s18, 1
    %p125 = scmp.ne.s32.totalorder %s120, %s122
    %p126 = scmp.eq.s32.totalorder %s18, 0
    %p127 = por %p125, %p126
    %p128 = scmp.ne.s32.totalorder %s120, %s122
    %p129 = scmp.eq.s32.totalorder %s23, 1
    %p130 = por %p128, %p129
    %p131 = scmp.ne.s32.totalorder %s122, %s123
    %p132 = scmp.eq.s32.totalorder %s23, 0
    %p133 = por %p131, %p132
    %p134 = scmp.ne.s32.totalorder %s122, %s123
    %p135 = scmp.eq.s32.totalorder %s24, 1
    %p136 = por %p134, %p135
    %p138 = scmp.ne.s32.totalorder %s123, %s137
    %p139 = scmp.eq.s32.totalorder %s24, 0
    %p140 = por %p138, %p139
    %s142 = sadd.s32 %s141, 1
    %p145 = scmp.eq.s32.totalorder %s18, 1
    %p146 = scmp.ne.s32.totalorder %s141, %s143
    %p147 = scmp.eq.s32.totalorder %s18, 0
    %p148 = por %p146, %p147
    %p149 = scmp.ne.s32.totalorder %s141, %s143
    %p150 = scmp.eq.s32.totalorder %s23, 1
    %p151 = por %p149, %p150
    %p152 = scmp.ne.s32.totalorder %s143, %s144
    %p153 = scmp.eq.s32.totalorder %s23, 0
    %p154 = por %p152, %p153
    %p155 = scmp.ne.s32.totalorder %s143, %s144
    %p156 = scmp.eq.s32.totalorder %s24, 1
    %p157 = por %p155, %p156
    %p159 = scmp.ne.s32.totalorder %s144, %s158
    %p160 = scmp.eq.s32.totalorder %s24, 0
    %p161 = por %p159, %p160
    %s163 = sadd.s32 %s162, 1
    %p166 = scmp.eq.s32.totalorder %s18, 1
    %p167 = scmp.ne.s32.totalorder %s162, %s164
    %p168 = scmp.eq.s32.totalorder %s18, 0
    %p169 = por %p167, %p168
    %p170 = scmp.ne.s32.totalorder %s162, %s164
    %p171 = scmp.eq.s32.totalorder %s23, 1
    %p172 = por %p170, %p171
    %p173 = scmp.ne.s32.totalorder %s164, %s165
    %p174 = scmp.eq.s32.totalorder %s23, 0
    %p175 = por %p173, %p174
    %p176 = scmp.ne.s32.totalorder %s164, %s165
    %p177 = scmp.eq.s32.totalorder %s24, 1
    %p178 = por %p176, %p177
    %p180 = scmp.ne.s32.totalorder %s165, %s179
    %p181 = scmp.eq.s32.totalorder %s24, 0
    %p182 = por %p180, %p181
    %s184 = sadd.s32 %s183, 1
    %p187 = scmp.eq.s32.totalorder %s18, 1
    %p188 = scmp.ne.s32.totalorder %s183, %s185
    %p189 = scmp.eq.s32.totalorder %s18, 0
    %p190 = por %p188, %p189
    %p191 = scmp.ne.s32.totalorder %s183, %s185
    %p192 = scmp.eq.s32.totalorder %s23, 1
    %p193 = por %p191, %p192
    %p194 = scmp.ne.s32.totalorder %s185, %s186
    %p195 = scmp.eq.s32.totalorder %s23, 0
    %p196 = por %p194, %p195
    %p197 = scmp.ne.s32.totalorder %s185, %s186
    %p198 = scmp.eq.s32.totalorder %s24, 1
    %p199 = por %p197, %p198
    %p201 = scmp.ne.s32.totalorder %s186, %s200
    %p202 = scmp.eq.s32.totalorder %s24, 0
    %p203 = por %p201, %p202
    %s205 = sadd.s32 %s204, 1
    %p208 = scmp.eq.s32.totalorder %s18, 1
    %p209 = scmp.ne.s32.totalorder %s204, %s206
    %p210 = scmp.eq.s32.totalorder %s18, 0
    %p211 = por %p209, %p210
    %p212 = scmp.ne.s32.totalorder %s204, %s206
    %p213 = scmp.eq.s32.totalorder %s23, 1
    %p214 = por %p212, %p213
    %p215 = scmp.ne.s32.totalorder %s206, %s207
    %p216 = scmp.eq.s32.totalorder %s23, 0
    %p217 = por %p215, %p216
    %p218 = scmp.ne.s32.totalorder %s206, %s207
    %p219 = scmp.eq.s32.totalorder %s24, 1
    %p220 = por %p218, %p219
    %p222 = scmp.ne.s32.totalorder %s207, %s221
    %p223 = scmp.eq.s32.totalorder %s24, 0
    %p224 = por %p222, %p223
    %s226 = sadd.s32 %s225, 1
    %p229 = scmp.eq.s32.totalorder %s18, 1
    %p230 = scmp.ne.s32.totalorder %s225, %s227
    %p231 = scmp.eq.s32.totalorder %s18, 0
    %p232 = por %p230, %p231
    %p233 = scmp.ne.s32.totalorder %s225, %s227
    %p234 = scmp.eq.s32.totalorder %s23, 1
    %p235 = por %p233, %p234
    %p236 = scmp.ne.s32.totalorder %s227, %s228
    %p237 = scmp.eq.s32.totalorder %s23, 0
    %p238 = por %p236, %p237
    %p239 = scmp.ne.s32.totalorder %s227, %s228
    %p240 = scmp.eq.s32.totalorder %s24, 1
    %p241 = por %p239, %p240
    %p243 = scmp.ne.s32.totalorder %s228, %s242
    %p244 = scmp.eq.s32.totalorder %s24, 0
    %p245 = por %p243, %p244
    %s247 = sadd.s32 %s246, 1
    %p250 = scmp.eq.s32.totalorder %s18, 1
    %p251 = scmp.ne.s32.totalorder %s246, %s248
    %p252 = scmp.eq.s32.totalorder %s18, 0
    %p253 = por %p251, %p252
    %p254 = scmp.ne.s32.totalorder %s246, %s248
    %p255 = scmp.eq.s32.totalorder %s23, 1
    %p256 = por %p254, %p255
    %p257 = scmp.ne.s32.totalorder %s248, %s249
    %p258 = scmp.eq.s32.totalorder %s23, 0
    %p259 = por %p257, %p258
    %p260 = scmp.ne.s32.totalorder %s248, %s249
    %p261 = scmp.eq.s32.totalorder %s24, 1
    %p262 = por %p260, %p261
    %p264 = scmp.ne.s32.totalorder %s249, %s263
    %p265 = scmp.eq.s32.totalorder %s24, 0
    %p266 = por %p264, %p265
    %s268 = sadd.s32 %s267, 1
    %p271 = scmp.eq.s32.totalorder %s18, 1
    %p272 = scmp.ne.s32.totalorder %s267, %s269
    %p273 = scmp.eq.s32.totalorder %s18, 0
    %p274 = por %p272, %p273
    %p275 = scmp.ne.s32.totalorder %s267, %s269
    %p276 = scmp.eq.s32.totalorder %s23, 1
    %p277 = por %p275, %p276
    %p278 = scmp.ne.s32.totalorder %s269, %s270
    %p279 = scmp.eq.s32.totalorder %s23, 0
    %p280 = por %p278, %p279
    %p281 = scmp.ne.s32.totalorder %s269, %s270
    %p282 = scmp.eq.s32.totalorder %s24, 1
    %p283 = por %p281, %p282
    %p285 = scmp.ne.s32.totalorder %s270, %s284
    %p286 = scmp.eq.s32.totalorder %s24, 0
    %p287 = por %p285, %p286
    %s288 = ssub.s32 %s18, %s25
    %p289 = scmp.eq.s32.totalorder %s288, 0
    %s291 = sadd.s32 %s290, 1
    %s292 = scalar_select %p289, %s290, %s291
    %p295 = pneg %p289
    %p296 = scmp.eq.s32.totalorder %s18, 1
    %p297 = por %p295, %p296
    %p298 = scmp.ne.s32.totalorder %s290, %s293
    %p299 = scmp.eq.s32.totalorder %s18, 0
    %p300 = por %p298, %p299
    %p301 = scmp.ne.s32.totalorder %s290, %s293
    %p302 = scmp.eq.s32.totalorder %s23, 1
    %p303 = por %p301, %p302
    %p304 = scmp.ne.s32.totalorder %s293, %s294
    %p305 = scmp.eq.s32.totalorder %s23, 0
    %p306 = por %p304, %p305
    %p307 = scmp.ne.s32.totalorder %s293, %s294
    %p308 = scmp.eq.s32.totalorder %s24, 1
    %p309 = por %p307, %p308
    %p311 = scmp.ne.s32.totalorder %s294, %s310
    %p312 = scmp.eq.s32.totalorder %s24, 0
    %p313 = por %p311, %p312
    %p314 = scmp.le.s32.totalorder 1, %s18
    %p315 = scmp.lt.s32.totalorder %s18, 3
    %p316 = pnand %p314, %p315
    %p317 = pneg %p316
    // Predicated region
    $region9: #{transformer_forward.13} parent=5 // pred_check
      _
    $region10: #{transformer_forward.13} parent=5 // pred_check_branch
      %319 = sbr.rel (%p316) target = $region12
    $region11: #{transformer_forward.13} parent=5 // pred_region
      %s320 = ssub.s32 %s18, 1
      // Predicated region
      $region13: #{transformer_forward.13} parent=11 // pred_check
        %p321 = pneg %p91
      $region14: #{transformer_forward.13} parent=11 // pred_check_branch
        %323 = sbr.rel (%p321) target = $region16
      $region15: #{transformer_forward.13} parent=11 // pred_region
        _
      $region16: #{transformer_forward.13} parent=11 // pred_fallthru
        _
      // Predicated region
      $region17: #{transformer_forward.13} parent=11 // pred_check
        %p324 = pneg %p112
      $region18: #{transformer_forward.13} parent=11 // pred_check_branch
        %326 = sbr.rel (%p324) target = $region20
      $region19: #{transformer_forward.13} parent=11 // pred_region
        _
      $region20: #{transformer_forward.13} parent=11 // pred_fallthru
        _
      // Predicated region
      $region21: #{transformer_forward.13} parent=11 // pred_check
        %p327 = pneg %p133
      $region22: #{transformer_forward.13} parent=11 // pred_check_branch
        %329 = sbr.rel (%p327) target = $region24
      $region23: #{transformer_forward.13} parent=11 // pred_region
        _
      $region24: #{transformer_forward.13} parent=11 // pred_fallthru
        _
      // Predicated region
      $region25: #{transformer_forward.13} parent=11 // pred_check
        %p330 = pneg %p154
      $region26: #{transformer_forward.13} parent=11 // pred_check_branch
        %332 = sbr.rel (%p330) target = $region28
      $region27: #{transformer_forward.13} parent=11 // pred_region
        _
      $region28: #{transformer_forward.13} parent=11 // pred_fallthru
        _
      // Predicated region
      $region29: #{transformer_forward.13} parent=11 // pred_check
        %p333 = pneg %p175
      $region30: #{transformer_forward.13} parent=11 // pred_check_branch
        %335 = sbr.rel (%p333) target = $region32
      $region31: #{transformer_forward.13} parent=11 // pred_region
        _
      $region32: #{transformer_forward.13} parent=11 // pred_fallthru
        _
      // Predicated region
      $region33: #{transformer_forward.13} parent=11 // pred_check
        %p336 = pneg %p196
      $region34: #{transformer_forward.13} parent=11 // pred_check_branch
        %338 = sbr.rel (%p336) target = $region36
      $region35: #{transformer_forward.13} parent=11 // pred_region
        _
      $region36: #{transformer_forward.13} parent=11 // pred_fallthru
        _
      // Predicated region
      $region37: #{transformer_forward.13} parent=11 // pred_check
        %p339 = pneg %p217
      $region38: #{transformer_forward.13} parent=11 // pred_check_branch
        %341 = sbr.rel (%p339) target = $region40
      $region39: #{transformer_forward.13} parent=11 // pred_region
        _
      $region40: #{transformer_forward.13} parent=11 // pred_fallthru
        _
      // Predicated region
      $region41: #{transformer_forward.13} parent=11 // pred_check
        %p342 = pneg %p238
      $region42: #{transformer_forward.13} parent=11 // pred_check_branch
        %344 = sbr.rel (%p342) target = $region44
      $region43: #{transformer_forward.13} parent=11 // pred_region
        _
      $region44: #{transformer_forward.13} parent=11 // pred_fallthru
        _
      // Predicated region
      $region45: #{transformer_forward.13} parent=11 // pred_check
        %p345 = pneg %p259
      $region46: #{transformer_forward.13} parent=11 // pred_check_branch
        %347 = sbr.rel (%p345) target = $region48
      $region47: #{transformer_forward.13} parent=11 // pred_region
        _
      $region48: #{transformer_forward.13} parent=11 // pred_fallthru
        _
      // Predicated region
      $region49: #{transformer_forward.13} parent=11 // pred_check
        %p348 = pneg %p280
      $region50: #{transformer_forward.13} parent=11 // pred_check_branch
        %350 = sbr.rel (%p348) target = $region52
      $region51: #{transformer_forward.13} parent=11 // pred_region
        _
      $region52: #{transformer_forward.13} parent=11 // pred_fallthru
        _
    $region12: #{transformer_forward.13} parent=5 // pred_fallthru
      _
    %p351 = scmp.lt.s32.totalorder %s18, 2
    // Predicated region
    $region53: #{transformer_forward.13} parent=5 // pred_check
      %p352 = pneg %p351
    $region54: #{transformer_forward.13} parent=5 // pred_check_branch
      %354 = sbr.rel (%p352) target = $region56
    $region55: #{transformer_forward.13} parent=5 // pred_region
      // Predicated region
      $region57: #{transformer_forward.13} parent=55 // pred_check
        %p355 = pneg %p38
      $region58: #{transformer_forward.13} parent=55 // pred_check_branch
        %357 = sbr.rel (%p355) target = $region60
      $region59: #{transformer_forward.13} parent=55 // pred_region
        %p358 = scmp.lt.s32.totalorder %s18, 1
        %s359 = scalar_select %p358, %s18, 1
        %s360 = smul.addr %s359, 8
        %s361 = scalar_lea.vmem %s0, %s360
      $region60: #{transformer_forward.13} parent=55 // pred_fallthru
        _
      // Predicated region
      $region61: #{transformer_forward.13} parent=55 // pred_check
        %p362 = pneg %p64
      $region62: #{transformer_forward.13} parent=55 // pred_check_branch
        %364 = sbr.rel (%p362) target = $region64
      $region63: #{transformer_forward.13} parent=55 // pred_region
        %p365 = scmp.lt.s32.totalorder %s18, 1
        %s366 = scalar_select %p365, %s18, 1
        %s367 = smul.addr %s366, 8
        %s368 = scalar_lea.vmem %s1, %s367
      $region64: #{transformer_forward.13} parent=55 // pred_fallthru
        _
    $region56: #{transformer_forward.13} parent=5 // pred_fallthru
      _
    %p369 = scmp.le.s32.totalorder 1, %s18
    %p370 = scmp.lt.s32.totalorder %s18, 3
    %p371 = pnand %p369, %p370
    %p372 = pneg %p371
    // Predicated region
    $region65: #{transformer_forward.13} parent=5 // pred_check
      _
    $region66: #{transformer_forward.13} parent=5 // pred_check_branch
      %374 = sbr.rel (%p371) target = $region68
    $region67: #{transformer_forward.13} parent=5 // pred_region
      %s375 = ssub.s32 %s18, 1
      %p376 = scmp.lt.s32.totalorder %s23, 1
      %s377 = scalar_select %p376, %s23, 1
      %s378 = smul.addr %s377, 8
      %s379 = scalar_lea.vmem %s0, %s378
      %p380 = pneg %p44
      %p381 = pneg %p41
      %p382 = scmp.lt.s32.totalorder %s23, 1
      %s383 = scalar_select %p382, %s23, 1
      %s384 = smul.addr %s383, 8
      %s385 = scalar_lea.vmem %s1, %s384
      %p386 = pneg %p70
      %p387 = pneg %p67
      %p388 = pneg %p91
      %p389 = pneg %p88
      %p390 = pneg %p112
      %p391 = pneg %p109
      %p392 = pneg %p133
      %p393 = pneg %p130
      %p394 = pneg %p154
      %p395 = pneg %p151
      %p396 = pneg %p175
      %p397 = pneg %p172
      %p398 = pneg %p196
      %p399 = pneg %p193
      %p400 = pneg %p217
      %p401 = pneg %p214
      %p402 = pneg %p238
      %p403 = pneg %p235
      %p404 = pneg %p259
      %p405 = pneg %p256
      %p406 = pneg %p280
      %p407 = pneg %p277
      %p408 = pneg %p306
      %p409 = pneg %p303
      %p410 = scmp.lt.s32.totalorder %s23, 1
      %s411 = scalar_select %p410, %s23, 1
      %s412 = smul.addr %s411, 8
      %s413 = scalar_lea.vmem %s12, %s412
      %p414 = scmp.lt.s32.totalorder %s23, 1
      %s415 = scalar_select %p414, %s23, 1
      %s416 = smul.addr %s415, 8
      %s417 = scalar_lea.vmem %s0, %s416
      %p418 = scmp.lt.s32.totalorder %s23, 1
      %s419 = scalar_select %p418, %s23, 1
      %s420 = smul.addr %s419, 8
      %s421 = scalar_lea.vmem %s1, %s420
      %p422 = scmp.lt.s32.totalorder %s23, 1
      %s423 = scalar_select %p422, %s23, 1
      %s424 = smul.addr %s423, 8
      %s425 = scalar_lea.vmem %s12, %s424
      %v427 = vld [vmem:[%s417] sm:$0xff]
      %v428 = vld [vmem:[%s421] sm:$0xff]
      %v429 = vpack.c.bf16 %v427, %v427
      %v430 = vpack.c.bf16 %v428, %v428
      %v431 = vld [vmem:[%s2] sm:$0xf]
      %v432 = vld [vmem:[%s2 + $0x4] sm:$0xf]
      %v433 = vld [vmem:[%s2 + $0x8] sm:$0xf]
      %v434 = vld [vmem:[%s2 + $0xc] sm:$0xf]
      %v435 = vld [vmem:[%s3] sm:$0x1]
      %v437 = vlaneseq
      %v438 = vshrl.u32 %v437, 7
      %v439 = vsub.s32 0, %v438
      %v440 = vrot.slane %v435, %v439
      %v446 = vunpack.c.l.b16 %v431
      %v447 = vunpack.c.l.b16 %v432
      %v448 = vunpack.c.l.b16 %v433
      %v449 = vunpack.c.l.b16 %v434
      %v450 = vpack.c.b16 %v447, %v446
      %v451 = vpack.c.b16 %v449, %v448
      %vm454 = vcmask 261120
      %v456 = vsel %vm454, %v429, 0
      %458 = vmatprep.subr.bf16.mxu0 0
      %459 = vmatpush1.bf16.msra.mxu0 0
      %460 = vmatprep.subr.bf16.mxu0 0
      %461 = vmatpush1.bf16.msra.mxu0 0
      %462 = vmatprep.subr.bf16.mxu0 0
      %463 = vmatpush1.bf16.msra.mxu0 0
      %464 = vmatprep.subr.bf16.mxu0 0
      %465 = vmatpush1.bf16.msra.mxu0 0
      %466 = vmatprep.subr.bf16.mxu0 0
      %467 = vmatpush1.bf16.msra.mxu0 0
      %468 = vmatprep.subr.bf16.mxu0 0
      %469 = vmatpush1.bf16.msra.mxu0 0
      %470 = vmatprep.subr.bf16.mxu0 0
      %471 = vmatpush1.bf16.msra.mxu0 %v451
      %472 = vmatprep.subr.bf16.mxu0 0
      %473 = vmatpush1.bf16.msra.mxu0 %v450
      %474 = vmatprep.subr.bf16.mxu0 0
      %475 = vmatpush2.bf16.msra.mxu0 0
      %476 = vmatprep.subr.bf16.mxu0 0
      %477 = vmatpush2.bf16.msra.mxu0 0
      %478 = vmatprep.subr.bf16.mxu0 0
      %479 = vmatpush2.bf16.msra.mxu0 0
      %480 = vmatprep.subr.bf16.mxu0 0
      %481 = vmatpush2.bf16.msra.mxu0 0
      %482 = vmatprep.subr.bf16.mxu0 0
      %483 = vmatpush2.bf16.msra.mxu0 0
      %484 = vmatprep.subr.bf16.mxu0 0
      %485 = vmatpush2.bf16.msra.mxu0 0
      %486 = vmatprep.subr.bf16.mxu0 0
      %487 = vmatpush2.bf16.msra.mxu0 0
      %488 = vmatprep.subr.bf16.mxu0 0
      %489 = vmatpush2.bf16.msra.mxu0 0
      %490 = vmatprep.mubr.bf16.mxu0 0
      %491 = vmatmul.mubr.bf16.gmra.mxu0 %v456
      %v492 = vpop.f32.mrf.mxu0
      %v493 = vadd.f32 %v440, %v492
      %v494 = vpop.f32.mrf.mxu0
      %v495 = vpop.f32.mrf.mxu0
      %v496 = vpop.f32.mrf.mxu0
      %497 = vdwg.mxu0
      %v498 = vld [vmem:[%s4] sm:$0xf]
      %v499 = vld [vmem:[%s4 + $0x4] sm:$0xf]
      %v500 = vld [vmem:[%s4 + $0x8] sm:$0xf]
      %v501 = vld [vmem:[%s4 + $0xc] sm:$0xf]
      %v502 = vld [vmem:[%s5] sm:$0x1]
      %v504 = vlaneseq
      %v505 = vshrl.u32 %v504, 7
      %v506 = vsub.s32 0, %v505
      %v507 = vrot.slane %v502, %v506
      %v513 = vunpack.c.l.b16 %v498
      %v514 = vunpack.c.l.b16 %v499
      %v515 = vunpack.c.l.b16 %v500
      %v516 = vunpack.c.l.b16 %v501
      %v517 = vpack.c.b16 %v514, %v513
      %v518 = vpack.c.b16 %v516, %v515
      %v522 = vsel %vm454, %v430, 0
      %524 = vmatprep.subr.bf16.mxu0 0
      %525 = vmatpush1.bf16.msra.mxu0 0
      %526 = vmatprep.subr.bf16.mxu0 0
      %527 = vmatpush1.bf16.msra.mxu0 0
      %528 = vmatprep.subr.bf16.mxu0 0
      %529 = vmatpush1.bf16.msra.mxu0 0
      %530 = vmatprep.subr.bf16.mxu0 0
      %531 = vmatpush1.bf16.msra.mxu0 0
      %532 = vmatprep.subr.bf16.mxu0 0
      %533 = vmatpush1.bf16.msra.mxu0 0
      %534 = vmatprep.subr.bf16.mxu0 0
      %535 = vmatpush1.bf16.msra.mxu0 0
      %536 = vmatprep.subr.bf16.mxu0 0
      %537 = vmatpush1.bf16.msra.mxu0 %v518
      %538 = vmatprep.subr.bf16.mxu0 0
      %539 = vmatpush1.bf16.msra.mxu0 %v517
      %540 = vmatprep.subr.bf16.mxu0 0
      %541 = vmatpush2.bf16.msra.mxu0 0
      %542 = vmatprep.subr.bf16.mxu0 0
      %543 = vmatpush2.bf16.msra.mxu0 0
      %544 = vmatprep.subr.bf16.mxu0 0
      %545 = vmatpush2.bf16.msra.mxu0 0
      %546 = vmatprep.subr.bf16.mxu0 0
      %547 = vmatpush2.bf16.msra.mxu0 0
      %548 = vmatprep.subr.bf16.mxu0 0
      %549 = vmatpush2.bf16.msra.mxu0 0
      %550 = vmatprep.subr.bf16.mxu0 0
      %551 = vmatpush2.bf16.msra.mxu0 0
      %552 = vmatprep.subr.bf16.mxu0 0
      %553 = vmatpush2.bf16.msra.mxu0 0
      %554 = vmatprep.subr.bf16.mxu0 0
      %555 = vmatpush2.bf16.msra.mxu0 0
      %556 = vmatprep.mubr.bf16.mxu0 0
      %557 = vmatmul.mubr.bf16.gmra.mxu0 %v522
      %v558 = vpop.f32.mrf.mxu0
      %v559 = vadd.f32 %v507, %v558
      %v560 = vpop.f32.mrf.mxu0
      %v561 = vpop.f32.mrf.mxu0
      %v562 = vpop.f32.mrf.mxu0
      %563 = vdwg.mxu0
      %v564 = vld [vmem:[%s6] sm:$0xf]
      %v565 = vld [vmem:[%s6 + $0x4] sm:$0xf]
      %v566 = vld [vmem:[%s6 + $0x8] sm:$0xf]
      %v567 = vld [vmem:[%s6 + $0xc] sm:$0xf]
      %v568 = vld [vmem:[%s7] sm:$0x1]
      %v570 = vlaneseq
      %v571 = vshrl.u32 %v570, 7
      %v572 = vsub.s32 0, %v571
      %v573 = vrot.slane %v568, %v572
      %v579 = vunpack.c.l.b16 %v564
      %v580 = vunpack.c.l.b16 %v565
      %v581 = vunpack.c.l.b16 %v566
      %v582 = vunpack.c.l.b16 %v567
      %v583 = vpack.c.b16 %v580, %v579
      %v584 = vpack.c.b16 %v582, %v581
      %587 = vmatprep.subr.bf16.mxu0 0
      %588 = vmatpush1.bf16.msra.mxu0 0
      %589 = vmatprep.subr.bf16.mxu0 0
      %590 = vmatpush1.bf16.msra.mxu0 0
      %591 = vmatprep.subr.bf16.mxu0 0
      %592 = vmatpush1.bf16.msra.mxu0 0
      %593 = vmatprep.subr.bf16.mxu0 0
      %594 = vmatpush1.bf16.msra.mxu0 0
      %595 = vmatprep.subr.bf16.mxu0 0
      %596 = vmatpush1.bf16.msra.mxu0 0
      %597 = vmatprep.subr.bf16.mxu0 0
      %598 = vmatpush1.bf16.msra.mxu0 0
      %599 = vmatprep.subr.bf16.mxu0 0
      %600 = vmatpush1.bf16.msra.mxu0 %v584
      %601 = vmatprep.subr.bf16.mxu0 0
      %602 = vmatpush1.bf16.msra.mxu0 %v583
      %603 = vmatprep.subr.bf16.mxu0 0
      %604 = vmatpush2.bf16.msra.mxu0 0
      %605 = vmatprep.subr.bf16.mxu0 0
      %606 = vmatpush2.bf16.msra.mxu0 0
      %607 = vmatprep.subr.bf16.mxu0 0
      %608 = vmatpush2.bf16.msra.mxu0 0
      %609 = vmatprep.subr.bf16.mxu0 0
      %610 = vmatpush2.bf16.msra.mxu0 0
      %611 = vmatprep.subr.bf16.mxu0 0
      %612 = vmatpush2.bf16.msra.mxu0 0
      %613 = vmatprep.subr.bf16.mxu0 0
      %614 = vmatpush2.bf16.msra.mxu0 0
      %615 = vmatprep.subr.bf16.mxu0 0
      %616 = vmatpush2.bf16.msra.mxu0 0
      %617 = vmatprep.subr.bf16.mxu0 0
      %618 = vmatpush2.bf16.msra.mxu0 0
      %619 = vmatprep.mubr.bf16.mxu0 0
      %620 = vmatmul.mubr.bf16.gmra.mxu0 %v522
      %v621 = vpop.f32.mrf.mxu0
      %v622 = vadd.f32 %v573, %v621
      %v623 = vpop.f32.mrf.mxu0
      %v624 = vpop.f32.mrf.mxu0
      %v625 = vpop.f32.mrf.mxu0
      %626 = vdwg.mxu0
      %v627 = vpack.c.bf16 %v493, %v493
      %v628 = vpack.c.bf16 %v559, %v559
      %vm629 = vcmask 64512
      %v631 = vsel %vm629, %v627, 0
      %v634 = vsel %vm629, %v628, 0
      %636 = vmatprep.subr.bf16.mxu0 0
      %637 = vmatpush1.bf16.xpose.msra.mxu0 0
      %638 = vmatprep.subr.bf16.mxu0 0
      %639 = vmatpush1.bf16.xpose.msra.mxu0 0
      %640 = vmatprep.subr.bf16.mxu0 0
      %641 = vmatpush1.bf16.xpose.msra.mxu0 0
      %642 = vmatprep.subr.bf16.mxu0 0
      %643 = vmatpush1.bf16.xpose.msra.mxu0 0
      %644 = vmatprep.subr.bf16.mxu0 0
      %645 = vmatpush1.bf16.xpose.msra.mxu0 0
      %646 = vmatprep.subr.bf16.mxu0 0
      %647 = vmatpush1.bf16.xpose.msra.mxu0 0
      %648 = vmatprep.subr.bf16.mxu0 0
      %649 = vmatpush1.bf16.xpose.msra.mxu0 0
      %650 = vmatprep.subr.bf16.mxu0 0
      %651 = vmatpush1.bf16.xpose.msra.mxu0 %v634
      %652 = vmatprep.subr.bf16.mxu0 0
      %653 = vmatpush2.bf16.xpose.msra.mxu0 0
      %654 = vmatprep.subr.bf16.mxu0 0
      %655 = vmatpush2.bf16.xpose.msra.mxu0 0
      %656 = vmatprep.subr.bf16.mxu0 0
      %657 = vmatpush2.bf16.xpose.msra.mxu0 0
      %658 = vmatprep.subr.bf16.mxu0 0
      %659 = vmatpush2.bf16.xpose.msra.mxu0 0
      %660 = vmatprep.subr.bf16.mxu0 0
      %661 = vmatpush2.bf16.xpose.msra.mxu0 0
      %662 = vmatprep.subr.bf16.mxu0 0
      %663 = vmatpush2.bf16.xpose.msra.mxu0 0
      %664 = vmatprep.subr.bf16.mxu0 0
      %665 = vmatpush2.bf16.xpose.msra.mxu0 0
      %666 = vmatprep.subr.bf16.mxu0 0
      %667 = vmatpush2.bf16.xpose.msra.mxu0 0
      %668 = vmatprep.mubr.bf16.mxu0 0
      %669 = vmatmul.mubr.bf16.gmra.mxu0 %v631
      %v670 = vpop.f32.mrf.mxu0
      %v671 = vadd.f32 0.0, %v670
      %v672 = vpop.f32.mrf.mxu0
      %v673 = vpop.f32.mrf.mxu0
      %v674 = vpop.f32.mrf.mxu0
      %675 = vdwg.mxu0
      %v676 = vmul.f32 %v671, 0.35355338
      %v677 = vsel %vm629, %v676, -inf
      %678 = vmax.xlane.f32.xlu0 %v677
      %v679 = vpop.xlane.xlu0 %678
      %v680 = vsub.f32 %v676, %v679
      %v681 = vmul.f32 %v680, 1.442695
      %v682 = vpow.pop %v681
      %v683 = vsel %vm629, %v682, 0.0
      %684 = vadd.xlane.f32.xlu0 %v683
      %v685 = vpop.xlane.xlu0 %684
      %v686 = vrcp.pop %v685
      %v687 = vmul.f32 %v682, %v686
      %v688 = vpack.c.bf16 %v687, %v687
      %v689 = vpack.c.bf16 %v622, %v622
      %v691 = vsel %vm629, %v688, 0
      %vm693 = vcmask 1043456
      %v695 = vsel %vm693, %v689, 0
      %697 = vmatprep.subr.bf16.mxu0 0
      %698 = vmatpush1.bf16.msra.mxu0 0
      %699 = vmatprep.subr.bf16.mxu0 0
      %700 = vmatpush1.bf16.msra.mxu0 0
      %701 = vmatprep.subr.bf16.mxu0 0
      %702 = vmatpush1.bf16.msra.mxu0 0
      %703 = vmatprep.subr.bf16.mxu0 0
      %704 = vmatpush1.bf16.msra.mxu0 0
      %705 = vmatprep.subr.bf16.mxu0 0
      %706 = vmatpush1.bf16.msra.mxu0 0
      %707 = vmatprep.subr.bf16.mxu0 0
      %708 = vmatpush1.bf16.msra.mxu0 0
      %709 = vmatprep.subr.bf16.mxu0 0
      %710 = vmatpush1.bf16.msra.mxu0 0
      %711 = vmatprep.subr.bf16.mxu0 0
      %712 = vmatpush1.bf16.msra.mxu0 %v695
      %713 = vmatprep.subr.bf16.mxu0 0
      %714 = vmatpush2.bf16.msra.mxu0 0
      %715 = vmatprep.subr.bf16.mxu0 0
      %716 = vmatpush2.bf16.msra.mxu0 0
      %717 = vmatprep.subr.bf16.mxu0 0
      %718 = vmatpush2.bf16.msra.mxu0 0
      %719 = vmatprep.subr.bf16.mxu0 0
      %720 = vmatpush2.bf16.msra.mxu0 0
      %721 = vmatprep.subr.bf16.mxu0 0
      %722 = vmatpush2.bf16.msra.mxu0 0
      %723 = vmatprep.subr.bf16.mxu0 0
      %724 = vmatpush2.bf16.msra.mxu0 0
      %725 = vmatprep.subr.bf16.mxu0 0
      %726 = vmatpush2.bf16.msra.mxu0 0
      %727 = vmatprep.subr.bf16.mxu0 0
      %728 = vmatpush2.bf16.msra.mxu0 0
      %729 = vmatprep.mubr.bf16.mxu0 0
      %730 = vmatmul.mubr.bf16.gmra.mxu0 %v691
      %v731 = vpop.f32.mrf.mxu0
      %v732 = vadd.f32 0.0, %v731
      %v733 = vpop.f32.mrf.mxu0
      %v734 = vpop.f32.mrf.mxu0
      %v735 = vpop.f32.mrf.mxu0
      %736 = vdwg.mxu0
      %v737 = vpack.c.bf16 %v732, %v732
      %v738 = vld [vmem:[%s8] sm:$0xf]
      %s739 = scalar_lea.vmem %s2, 16
      %v740 = vld [vmem:[%s739] sm:$0xf]
      %v741 = vld [vmem:[%s739 + $0x4] sm:$0xf]
      %v742 = vld [vmem:[%s739 + $0x8] sm:$0xf]
      %v743 = vld [vmem:[%s739 + $0xc] sm:$0xf]
      %s744 = scalar_lea.vmem %s3, 1
      %v745 = vld [vmem:[%s744] sm:$0x1]
      %v747 = vlaneseq
      %v748 = vshrl.u32 %v747, 7
      %v749 = vsub.s32 0, %v748
      %v750 = vrot.slane %v745, %v749
      %v756 = vunpack.c.l.b16 %v740
      %v757 = vunpack.c.l.b16 %v741
      %v758 = vunpack.c.l.b16 %v742
      %v759 = vunpack.c.l.b16 %v743
      %v760 = vpack.c.b16 %v757, %v756
      %v761 = vpack.c.b16 %v759, %v758
      %764 = vmatprep.subr.bf16.mxu0 0
      %765 = vmatpush1.bf16.msra.mxu0 0
      %766 = vmatprep.subr.bf16.mxu0 0
      %767 = vmatpush1.bf16.msra.mxu0 0
      %768 = vmatprep.subr.bf16.mxu0 0
      %769 = vmatpush1.bf16.msra.mxu0 0
      %770 = vmatprep.subr.bf16.mxu0 0
      %771 = vmatpush1.bf16.msra.mxu0 0
      %772 = vmatprep.subr.bf16.mxu0 0
      %773 = vmatpush1.bf16.msra.mxu0 0
      %774 = vmatprep.subr.bf16.mxu0 0
      %775 = vmatpush1.bf16.msra.mxu0 0
      %776 = vmatprep.subr.bf16.mxu0 0
      %777 = vmatpush1.bf16.msra.mxu0 %v761
      %778 = vmatprep.subr.bf16.mxu0 0
      %779 = vmatpush1.bf16.msra.mxu0 %v760
      %780 = vmatprep.subr.bf16.mxu0 0
      %781 = vmatpush2.bf16.msra.mxu0 0
      %782 = vmatprep.subr.bf16.mxu0 0
      %783 = vmatpush2.bf16.msra.mxu0 0
      %784 = vmatprep.subr.bf16.mxu0 0
      %785 = vmatpush2.bf16.msra.mxu0 0
      %786 = vmatprep.subr.bf16.mxu0 0
      %787 = vmatpush2.bf16.msra.mxu0 0
      %788 = vmatprep.subr.bf16.mxu0 0
      %789 = vmatpush2.bf16.msra.mxu0 0
      %790 = vmatprep.subr.bf16.mxu0 0
      %791 = vmatpush2.bf16.msra.mxu0 0
      %792 = vmatprep.subr.bf16.mxu0 0
      %793 = vmatpush2.bf16.msra.mxu0 0
      %794 = vmatprep.subr.bf16.mxu0 0
      %795 = vmatpush2.bf16.msra.mxu0 0
      %796 = vmatprep.mubr.bf16.mxu0 0
      %797 = vmatmul.mubr.bf16.gmra.mxu0 %v456
      %v798 = vpop.f32.mrf.mxu0
      %v799 = vadd.f32 %v750, %v798
      %v800 = vpop.f32.mrf.mxu0
      %v801 = vpop.f32.mrf.mxu0
      %v802 = vpop.f32.mrf.mxu0
      %803 = vdwg.mxu0
      %s804 = scalar_lea.vmem %s4, 16
      %v805 = vld [vmem:[%s804] sm:$0xf]
      %v806 = vld [vmem:[%s804 + $0x4] sm:$0xf]
      %v807 = vld [vmem:[%s804 + $0x8] sm:$0xf]
      %v808 = vld [vmem:[%s804 + $0xc] sm:$0xf]
      %s809 = scalar_lea.vmem %s5, 1
      %v810 = vld [vmem:[%s809] sm:$0x1]
      %v812 = vlaneseq
      %v813 = vshrl.u32 %v812, 7
      %v814 = vsub.s32 0, %v813
      %v815 = vrot.slane %v810, %v814
      %v821 = vunpack.c.l.b16 %v805
      %v822 = vunpack.c.l.b16 %v806
      %v823 = vunpack.c.l.b16 %v807
      %v824 = vunpack.c.l.b16 %v808
      %v825 = vpack.c.b16 %v822, %v821
      %v826 = vpack.c.b16 %v824, %v823
      %829 = vmatprep.subr.bf16.mxu0 0
      %830 = vmatpush1.bf16.msra.mxu0 0
      %831 = vmatprep.subr.bf16.mxu0 0
      %832 = vmatpush1.bf16.msra.mxu0 0
      %833 = vmatprep.subr.bf16.mxu0 0
      %834 = vmatpush1.bf16.msra.mxu0 0
      %835 = vmatprep.subr.bf16.mxu0 0
      %836 = vmatpush1.bf16.msra.mxu0 0
      %837 = vmatprep.subr.bf16.mxu0 0
      %838 = vmatpush1.bf16.msra.mxu0 0
      %839 = vmatprep.subr.bf16.mxu0 0
      %840 = vmatpush1.bf16.msra.mxu0 0
      %841 = vmatprep.subr.bf16.mxu0 0
      %842 = vmatpush1.bf16.msra.mxu0 %v826
      %843 = vmatprep.subr.bf16.mxu0 0
      %844 = vmatpush1.bf16.msra.mxu0 %v825
      %845 = vmatprep.subr.bf16.mxu0 0
      %846 = vmatpush2.bf16.msra.mxu0 0
      %847 = vmatprep.subr.bf16.mxu0 0
      %848 = vmatpush2.bf16.msra.mxu0 0
      %849 = vmatprep.subr.bf16.mxu0 0
      %850 = vmatpush2.bf16.msra.mxu0 0
      %851 = vmatprep.subr.bf16.mxu0 0
      %852 = vmatpush2.bf16.msra.mxu0 0
      %853 = vmatprep.subr.bf16.mxu0 0
      %854 = vmatpush2.bf16.msra.mxu0 0
      %855 = vmatprep.subr.bf16.mxu0 0
      %856 = vmatpush2.bf16.msra.mxu0 0
      %857 = vmatprep.subr.bf16.mxu0 0
      %858 = vmatpush2.bf16.msra.mxu0 0
      %859 = vmatprep.subr.bf16.mxu0 0
      %860 = vmatpush2.bf16.msra.mxu0 0
      %861 = vmatprep.mubr.bf16.mxu0 0
      %862 = vmatmul.mubr.bf16.gmra.mxu0 %v522
      %v863 = vpop.f32.mrf.mxu0
      %v864 = vadd.f32 %v815, %v863
      %v865 = vpop.f32.mrf.mxu0
      %v866 = vpop.f32.mrf.mxu0
      %v867 = vpop.f32.mrf.mxu0
      %868 = vdwg.mxu0
      %s869 = scalar_lea.vmem %s6, 16
      %v870 = vld [vmem:[%s869] sm:$0xf]
      %v871 = vld [vmem:[%s869 + $0x4] sm:$0xf]
      %v872 = vld [vmem:[%s869 + $0x8] sm:$0xf]
      %v873 = vld [vmem:[%s869 + $0xc] sm:$0xf]
      %s874 = scalar_lea.vmem %s7, 1
      %v875 = vld [vmem:[%s874] sm:$0x1]
      %v877 = vlaneseq
      %v878 = vshrl.u32 %v877, 7
      %v879 = vsub.s32 0, %v878
      %v880 = vrot.slane %v875, %v879
      %v886 = vunpack.c.l.b16 %v870
      %v887 = vunpack.c.l.b16 %v871
      %v888 = vunpack.c.l.b16 %v872
      %v889 = vunpack.c.l.b16 %v873
      %v890 = vpack.c.b16 %v887, %v886
      %v891 = vpack.c.b16 %v889, %v888
      %894 = vmatprep.subr.bf16.mxu0 0
      %895 = vmatpush1.bf16.msra.mxu0 0
      %896 = vmatprep.subr.bf16.mxu0 0
      %897 = vmatpush1.bf16.msra.mxu0 0
      %898 = vmatprep.subr.bf16.mxu0 0
      %899 = vmatpush1.bf16.msra.mxu0 0
      %900 = vmatprep.subr.bf16.mxu0 0
      %901 = vmatpush1.bf16.msra.mxu0 0
      %902 = vmatprep.subr.bf16.mxu0 0
      %903 = vmatpush1.bf16.msra.mxu0 0
      %904 = vmatprep.subr.bf16.mxu0 0
      %905 = vmatpush1.bf16.msra.mxu0 0
      %906 = vmatprep.subr.bf16.mxu0 0
      %907 = vmatpush1.bf16.msra.mxu0 %v891
      %908 = vmatprep.subr.bf16.mxu0 0
      %909 = vmatpush1.bf16.msra.mxu0 %v890
      %910 = vmatprep.subr.bf16.mxu0 0
      %911 = vmatpush2.bf16.msra.mxu0 0
      %912 = vmatprep.subr.bf16.mxu0 0
      %913 = vmatpush2.bf16.msra.mxu0 0
      %914 = vmatprep.subr.bf16.mxu0 0
      %915 = vmatpush2.bf16.msra.mxu0 0
      %916 = vmatprep.subr.bf16.mxu0 0
      %917 = vmatpush2.bf16.msra.mxu0 0
      %918 = vmatprep.subr.bf16.mxu0 0
      %919 = vmatpush2.bf16.msra.mxu0 0
      %920 = vmatprep.subr.bf16.mxu0 0
      %921 = vmatpush2.bf16.msra.mxu0 0
      %922 = vmatprep.subr.bf16.mxu0 0
      %923 = vmatpush2.bf16.msra.mxu0 0
      %924 = vmatprep.subr.bf16.mxu0 0
      %925 = vmatpush2.bf16.msra.mxu0 0
      %926 = vmatprep.mubr.bf16.mxu0 0
      %927 = vmatmul.mubr.bf16.gmra.mxu0 %v522
      %v928 = vpop.f32.mrf.mxu0
      %v929 = vadd.f32 %v880, %v928
      %v930 = vpop.f32.mrf.mxu0
      %v931 = vpop.f32.mrf.mxu0
      %v932 = vpop.f32.mrf.mxu0
      %933 = vdwg.mxu0
      %v934 = vpack.c.bf16 %v799, %v799
      %v935 = vpack.c.bf16 %v864, %v864
      %v937 = vsel %vm629, %v934, 0
      %v940 = vsel %vm629, %v935, 0
      %942 = vmatprep.subr.bf16.mxu0 0
      %943 = vmatpush1.bf16.xpose.msra.mxu0 0
      %944 = vmatprep.subr.bf16.mxu0 0
      %945 = vmatpush1.bf16.xpose.msra.mxu0 0
      %946 = vmatprep.subr.bf16.mxu0 0
      %947 = vmatpush1.bf16.xpose.msra.mxu0 0
      %948 = vmatprep.subr.bf16.mxu0 0
      %949 = vmatpush1.bf16.xpose.msra.mxu0 0
      %950 = vmatprep.subr.bf16.mxu0 0
      %951 = vmatpush1.bf16.xpose.msra.mxu0 0
      %952 = vmatprep.subr.bf16.mxu0 0
      %953 = vmatpush1.bf16.xpose.msra.mxu0 0
      %954 = vmatprep.subr.bf16.mxu0 0
      %955 = vmatpush1.bf16.xpose.msra.mxu0 0
      %956 = vmatprep.subr.bf16.mxu0 0
      %957 = vmatpush1.bf16.xpose.msra.mxu0 %v940
      %958 = vmatprep.subr.bf16.mxu0 0
      %959 = vmatpush2.bf16.xpose.msra.mxu0 0
      %960 = vmatprep.subr.bf16.mxu0 0
      %961 = vmatpush2.bf16.xpose.msra.mxu0 0
      %962 = vmatprep.subr.bf16.mxu0 0
      %963 = vmatpush2.bf16.xpose.msra.mxu0 0
      %964 = vmatprep.subr.bf16.mxu0 0
      %965 = vmatpush2.bf16.xpose.msra.mxu0 0
      %966 = vmatprep.subr.bf16.mxu0 0
      %967 = vmatpush2.bf16.xpose.msra.mxu0 0
      %968 = vmatprep.subr.bf16.mxu0 0
      %969 = vmatpush2.bf16.xpose.msra.mxu0 0
      %970 = vmatprep.subr.bf16.mxu0 0
      %971 = vmatpush2.bf16.xpose.msra.mxu0 0
      %972 = vmatprep.subr.bf16.mxu0 0
      %973 = vmatpush2.bf16.xpose.msra.mxu0 0
      %974 = vmatprep.mubr.bf16.mxu0 0
      %975 = vmatmul.mubr.bf16.gmra.mxu0 %v937
      %v976 = vpop.f32.mrf.mxu0
      %v977 = vadd.f32 0.0, %v976
      %v978 = vpop.f32.mrf.mxu0
      %v979 = vpop.f32.mrf.mxu0
      %v980 = vpop.f32.mrf.mxu0
      %981 = vdwg.mxu0
      %v982 = vmul.f32 %v977, 0.35355338
      %v983 = vsel %vm629, %v982, -inf
      %984 = vmax.xlane.f32.xlu0 %v983
      %v985 = vpop.xlane.xlu0 %984
      %v986 = vsub.f32 %v982, %v985
      %v987 = vmul.f32 %v986, 1.442695
      %v988 = vpow.pop %v987
      %v989 = vsel %vm629, %v988, 0.0
      %990 = vadd.xlane.f32.xlu0 %v989
      %v991 = vpop.xlane.xlu0 %990
      %v992 = vrcp.pop %v991
      %v993 = vmul.f32 %v988, %v992
      %v994 = vpack.c.bf16 %v993, %v993
      %v995 = vpack.c.bf16 %v929, %v929
      %v997 = vsel %vm629, %v994, 0
      %v1000 = vsel %vm693, %v995, 0
      %1002 = vmatprep.subr.bf16.mxu0 0
      %1003 = vmatpush1.bf16.msra.mxu0 0
      %1004 = vmatprep.subr.bf16.mxu0 0
      %1005 = vmatpush1.bf16.msra.mxu0 0
      %1006 = vmatprep.subr.bf16.mxu0 0
      %1007 = vmatpush1.bf16.msra.mxu0 0
      %1008 = vmatprep.subr.bf16.mxu0 0
      %1009 = vmatpush1.bf16.msra.mxu0 0
      %1010 = vmatprep.subr.bf16.mxu0 0
      %1011 = vmatpush1.bf16.msra.mxu0 0
      %1012 = vmatprep.subr.bf16.mxu0 0
      %1013 = vmatpush1.bf16.msra.mxu0 0
      %1014 = vmatprep.subr.bf16.mxu0 0
      %1015 = vmatpush1.bf16.msra.mxu0 0
      %1016 = vmatprep.subr.bf16.mxu0 0
      %1017 = vmatpush1.bf16.msra.mxu0 %v1000
      %1018 = vmatprep.subr.bf16.mxu0 0
      %1019 = vmatpush2.bf16.msra.mxu0 0
      %1020 = vmatprep.subr.bf16.mxu0 0
      %1021 = vmatpush2.bf16.msra.mxu0 0
      %1022 = vmatprep.subr.bf16.mxu0 0
      %1023 = vmatpush2.bf16.msra.mxu0 0
      %1024 = vmatprep.subr.bf16.mxu0 0
      %1025 = vmatpush2.bf16.msra.mxu0 0
      %1026 = vmatprep.subr.bf16.mxu0 0
      %1027 = vmatpush2.bf16.msra.mxu0 0
      %1028 = vmatprep.subr.bf16.mxu0 0
      %1029 = vmatpush2.bf16.msra.mxu0 0
      %1030 = vmatprep.subr.bf16.mxu0 0
      %1031 = vmatpush2.bf16.msra.mxu0 0
      %1032 = vmatprep.subr.bf16.mxu0 0
      %1033 = vmatpush2.bf16.msra.mxu0 0
      %1034 = vmatprep.mubr.bf16.mxu0 0
      %1035 = vmatmul.mubr.bf16.gmra.mxu0 %v997
      %v1036 = vpop.f32.mrf.mxu0
      %v1037 = vadd.f32 0.0, %v1036
      %v1038 = vpop.f32.mrf.mxu0
      %v1039 = vpop.f32.mrf.mxu0
      %v1040 = vpop.f32.mrf.mxu0
      %1041 = vdwg.mxu0
      %v1042 = vpack.c.bf16 %v1037, %v1037
      %s1043 = scalar_lea.vmem %s8, 4
      %v1044 = vld [vmem:[%s1043] sm:$0xf]
      %v1046 = vsel %vm629, %v1042, 0
      %v1049 = vsel %vm693, %v1044, 0
      %1051 = vmatprep.subr.bf16.mxu0 0
      %1052 = vmatpush1.bf16.msra.mxu0 0
      %1053 = vmatprep.subr.bf16.mxu0 0
      %1054 = vmatpush1.bf16.msra.mxu0 0
      %1055 = vmatprep.subr.bf16.mxu0 0
      %1056 = vmatpush1.bf16.msra.mxu0 0
      %1057 = vmatprep.subr.bf16.mxu0 0
      %1058 = vmatpush1.bf16.msra.mxu0 0
      %1059 = vmatprep.subr.bf16.mxu0 0
      %1060 = vmatpush1.bf16.msra.mxu0 0
      %1061 = vmatprep.subr.bf16.mxu0 0
      %1062 = vmatpush1.bf16.msra.mxu0 0
      %1063 = vmatprep.subr.bf16.mxu0 0
      %1064 = vmatpush1.bf16.msra.mxu0 0
      %1065 = vmatprep.subr.bf16.mxu0 0
      %1066 = vmatpush1.bf16.msra.mxu0 %v1049
      %1067 = vmatprep.subr.bf16.mxu0 0
      %1068 = vmatpush2.bf16.msra.mxu0 0
      %1069 = vmatprep.subr.bf16.mxu0 0
      %1070 = vmatpush2.bf16.msra.mxu0 0
      %1071 = vmatprep.subr.bf16.mxu0 0
      %1072 = vmatpush2.bf16.msra.mxu0 0
      %1073 = vmatprep.subr.bf16.mxu0 0
      %1074 = vmatpush2.bf16.msra.mxu0 0
      %1075 = vmatprep.subr.bf16.mxu0 0
      %1076 = vmatpush2.bf16.msra.mxu0 0
      %1077 = vmatprep.subr.bf16.mxu0 0
      %1078 = vmatpush2.bf16.msra.mxu0 0
      %1079 = vmatprep.subr.bf16.mxu0 0
      %1080 = vmatpush2.bf16.msra.mxu0 0
      %1081 = vmatprep.subr.bf16.mxu0 0
      %1082 = vmatpush2.bf16.msra.mxu0 0
      %1083 = vmatprep.mubr.bf16.mxu0 0
      %1084 = vmatmul.mubr.bf16.gmra.mxu0 %v1046
      %v1085 = vpop.f32.mrf.mxu0
      %v1086 = vadd.f32 0.0, %v1085
      %v1087 = vpop.f32.mrf.mxu0
      %v1088 = vpop.f32.mrf.mxu0
      %v1089 = vpop.f32.mrf.mxu0
      %1090 = vdwg.mxu0
      %v1092 = vsel %vm629, %v737, 0
      %v1095 = vsel %vm693, %v738, 0
      %1097 = vmatprep.subr.bf16.mxu0 0
      %1098 = vmatpush1.bf16.msra.mxu0 0
      %1099 = vmatprep.subr.bf16.mxu0 0
      %1100 = vmatpush1.bf16.msra.mxu0 0
      %1101 = vmatprep.subr.bf16.mxu0 0
      %1102 = vmatpush1.bf16.msra.mxu0 0
      %1103 = vmatprep.subr.bf16.mxu0 0
      %1104 = vmatpush1.bf16.msra.mxu0 0
      %1105 = vmatprep.subr.bf16.mxu0 0
      %1106 = vmatpush1.bf16.msra.mxu0 0
      %1107 = vmatprep.subr.bf16.mxu0 0
      %1108 = vmatpush1.bf16.msra.mxu0 0
      %1109 = vmatprep.subr.bf16.mxu0 0
      %1110 = vmatpush1.bf16.msra.mxu0 0
      %1111 = vmatprep.subr.bf16.mxu0 0
      %1112 = vmatpush1.bf16.msra.mxu0 %v1095
      %1113 = vmatprep.subr.bf16.mxu0 0
      %1114 = vmatpush2.bf16.msra.mxu0 0
      %1115 = vmatprep.subr.bf16.mxu0 0
      %1116 = vmatpush2.bf16.msra.mxu0 0
      %1117 = vmatprep.subr.bf16.mxu0 0
      %1118 = vmatpush2.bf16.msra.mxu0 0
      %1119 = vmatprep.subr.bf16.mxu0 0
      %1120 = vmatpush2.bf16.msra.mxu0 0
      %1121 = vmatprep.subr.bf16.mxu0 0
      %1122 = vmatpush2.bf16.msra.mxu0 0
      %1123 = vmatprep.subr.bf16.mxu0 0
      %1124 = vmatpush2.bf16.msra.mxu0 0
      %1125 = vmatprep.subr.bf16.mxu0 0
      %1126 = vmatpush2.bf16.msra.mxu0 0
      %1127 = vmatprep.subr.bf16.mxu0 0
      %1128 = vmatpush2.bf16.msra.mxu0 0
      %1129 = vmatprep.mubr.bf16.mxu0 0
      %1130 = vmatmul.mubr.bf16.gmra.mxu0 %v1092
      %v1131 = vpop.f32.mrf.mxu0
      %v1132 = vadd.f32 %v1086, %v1131
      %v1133 = vpop.f32.mrf.mxu0
      %v1134 = vpop.f32.mrf.mxu0
      %v1135 = vpop.f32.mrf.mxu0
      %1136 = vdwg.mxu0
      %s1137 = scalar_lea.vmem %s2, 32
      %v1138 = vld [vmem:[%s1137] sm:$0xf]
      %v1139 = vld [vmem:[%s1137 + $0x4] sm:$0xf]
      %v1140 = vld [vmem:[%s1137 + $0x8] sm:$0xf]
      %v1141 = vld [vmem:[%s1137 + $0xc] sm:$0xf]
      %s1142 = scalar_lea.vmem %s3, 2
      %v1143 = vld [vmem:[%s1142] sm:$0x1]
      %v1145 = vlaneseq
      %v1146 = vshrl.u32 %v1145, 7
      %v1147 = vsub.s32 0, %v1146
      %v1148 = vrot.slane %v1143, %v1147
      %v1154 = vunpack.c.l.b16 %v1138
      %v1155 = vunpack.c.l.b16 %v1139
      %v1156 = vunpack.c.l.b16 %v1140
      %v1157 = vunpack.c.l.b16 %v1141
      %v1158 = vpack.c.b16 %v1155, %v1154
      %v1159 = vpack.c.b16 %v1157, %v1156
      %1162 = vmatprep.subr.bf16.mxu0 0
      %1163 = vmatpush1.bf16.msra.mxu0 0
      %1164 = vmatprep.subr.bf16.mxu0 0
      %1165 = vmatpush1.bf16.msra.mxu0 0
      %1166 = vmatprep.subr.bf16.mxu0 0
      %1167 = vmatpush1.bf16.msra.mxu0 0
      %1168 = vmatprep.subr.bf16.mxu0 0
      %1169 = vmatpush1.bf16.msra.mxu0 0
      %1170 = vmatprep.subr.bf16.mxu0 0
      %1171 = vmatpush1.bf16.msra.mxu0 0
      %1172 = vmatprep.subr.bf16.mxu0 0
      %1173 = vmatpush1.bf16.msra.mxu0 0
      %1174 = vmatprep.subr.bf16.mxu0 0
      %1175 = vmatpush1.bf16.msra.mxu0 %v1159
      %1176 = vmatprep.subr.bf16.mxu0 0
      %1177 = vmatpush1.bf16.msra.mxu0 %v1158
      %1178 = vmatprep.subr.bf16.mxu0 0
      %1179 = vmatpush2.bf16.msra.mxu0 0
      %1180 = vmatprep.subr.bf16.mxu0 0
      %1181 = vmatpush2.bf16.msra.mxu0 0
      %1182 = vmatprep.subr.bf16.mxu0 0
      %1183 = vmatpush2.bf16.msra.mxu0 0
      %1184 = vmatprep.subr.bf16.mxu0 0
      %1185 = vmatpush2.bf16.msra.mxu0 0
      %1186 = vmatprep.subr.bf16.mxu0 0
      %1187 = vmatpush2.bf16.msra.mxu0 0
      %1188 = vmatprep.subr.bf16.mxu0 0
      %1189 = vmatpush2.bf16.msra.mxu0 0
      %1190 = vmatprep.subr.bf16.mxu0 0
      %1191 = vmatpush2.bf16.msra.mxu0 0
      %1192 = vmatprep.subr.bf16.mxu0 0
      %1193 = vmatpush2.bf16.msra.mxu0 0
      %1194 = vmatprep.mubr.bf16.mxu0 0
      %1195 = vmatmul.mubr.bf16.gmra.mxu0 %v456
      %v1196 = vpop.f32.mrf.mxu0
      %v1197 = vadd.f32 %v1148, %v1196
      %v1198 = vpop.f32.mrf.mxu0
      %v1199 = vpop.f32.mrf.mxu0
      %v1200 = vpop.f32.mrf.mxu0
      %1201 = vdwg.mxu0
      %s1202 = scalar_lea.vmem %s4, 32
      %v1203 = vld [vmem:[%s1202] sm:$0xf]
      %v1204 = vld [vmem:[%s1202 + $0x4] sm:$0xf]
      %v1205 = vld [vmem:[%s1202 + $0x8] sm:$0xf]
      %v1206 = vld [vmem:[%s1202 + $0xc] sm:$0xf]
      %s1207 = scalar_lea.vmem %s5, 2
      %v1208 = vld [vmem:[%s1207] sm:$0x1]
      %v1210 = vlaneseq
      %v1211 = vshrl.u32 %v1210, 7
      %v1212 = vsub.s32 0, %v1211
      %v1213 = vrot.slane %v1208, %v1212
      %v1219 = vunpack.c.l.b16 %v1203
      %v1220 = vunpack.c.l.b16 %v1204
      %v1221 = vunpack.c.l.b16 %v1205
      %v1222 = vunpack.c.l.b16 %v1206
      %v1223 = vpack.c.b16 %v1220, %v1219
      %v1224 = vpack.c.b16 %v1222, %v1221
      %1227 = vmatprep.subr.bf16.mxu0 0
      %1228 = vmatpush1.bf16.msra.mxu0 0
      %1229 = vmatprep.subr.bf16.mxu0 0
      %1230 = vmatpush1.bf16.msra.mxu0 0
      %1231 = vmatprep.subr.bf16.mxu0 0
      %1232 = vmatpush1.bf16.msra.mxu0 0
      %1233 = vmatprep.subr.bf16.mxu0 0
      %1234 = vmatpush1.bf16.msra.mxu0 0
      %1235 = vmatprep.subr.bf16.mxu0 0
      %1236 = vmatpush1.bf16.msra.mxu0 0
      %1237 = vmatprep.subr.bf16.mxu0 0
      %1238 = vmatpush1.bf16.msra.mxu0 0
      %1239 = vmatprep.subr.bf16.mxu0 0
      %1240 = vmatpush1.bf16.msra.mxu0 %v1224
      %1241 = vmatprep.subr.bf16.mxu0 0
      %1242 = vmatpush1.bf16.msra.mxu0 %v1223
      %1243 = vmatprep.subr.bf16.mxu0 0
      %1244 = vmatpush2.bf16.msra.mxu0 0
      %1245 = vmatprep.subr.bf16.mxu0 0
      %1246 = vmatpush2.bf16.msra.mxu0 0
      %1247 = vmatprep.subr.bf16.mxu0 0
      %1248 = vmatpush2.bf16.msra.mxu0 0
      %1249 = vmatprep.subr.bf16.mxu0 0
      %1250 = vmatpush2.bf16.msra.mxu0 0
      %1251 = vmatprep.subr.bf16.mxu0 0
      %1252 = vmatpush2.bf16.msra.mxu0 0
      %1253 = vmatprep.subr.bf16.mxu0 0
      %1254 = vmatpush2.bf16.msra.mxu0 0
      %1255 = vmatprep.subr.bf16.mxu0 0
      %1256 = vmatpush2.bf16.msra.mxu0 0
      %1257 = vmatprep.subr.bf16.mxu0 0
      %1258 = vmatpush2.bf16.msra.mxu0 0
      %1259 = vmatprep.mubr.bf16.mxu0 0
      %1260 = vmatmul.mubr.bf16.gmra.mxu0 %v522
      %v1261 = vpop.f32.mrf.mxu0
      %v1262 = vadd.f32 %v1213, %v1261
      %v1263 = vpop.f32.mrf.mxu0
      %v1264 = vpop.f32.mrf.mxu0
      %v1265 = vpop.f32.mrf.mxu0
      %1266 = vdwg.mxu0
      %s1267 = scalar_lea.vmem %s6, 32
      %v1268 = vld [vmem:[%s1267] sm:$0xf]
      %v1269 = vld [vmem:[%s1267 + $0x4] sm:$0xf]
      %v1270 = vld [vmem:[%s1267 + $0x8] sm:$0xf]
      %v1271 = vld [vmem:[%s1267 + $0xc] sm:$0xf]
      %s1272 = scalar_lea.vmem %s7, 2
      %v1273 = vld [vmem:[%s1272] sm:$0x1]
      %v1275 = vlaneseq
      %v1276 = vshrl.u32 %v1275, 7
      %v1277 = vsub.s32 0, %v1276
      %v1278 = vrot.slane %v1273, %v1277
      %v1284 = vunpack.c.l.b16 %v1268
      %v1285 = vunpack.c.l.b16 %v1269
      %v1286 = vunpack.c.l.b16 %v1270
      %v1287 = vunpack.c.l.b16 %v1271
      %v1288 = vpack.c.b16 %v1285, %v1284
      %v1289 = vpack.c.b16 %v1287, %v1286
      %1292 = vmatprep.subr.bf16.mxu0 0
      %1293 = vmatpush1.bf16.msra.mxu0 0
      %1294 = vmatprep.subr.bf16.mxu0 0
      %1295 = vmatpush1.bf16.msra.mxu0 0
      %1296 = vmatprep.subr.bf16.mxu0 0
      %1297 = vmatpush1.bf16.msra.mxu0 0
      %1298 = vmatprep.subr.bf16.mxu0 0
      %1299 = vmatpush1.bf16.msra.mxu0 0
      %1300 = vmatprep.subr.bf16.mxu0 0
      %1301 = vmatpush1.bf16.msra.mxu0 0
      %1302 = vmatprep.subr.bf16.mxu0 0
      %1303 = vmatpush1.bf16.msra.mxu0 0
      %1304 = vmatprep.subr.bf16.mxu0 0
      %1305 = vmatpush1.bf16.msra.mxu0 %v1289
      %1306 = vmatprep.subr.bf16.mxu0 0
      %1307 = vmatpush1.bf16.msra.mxu0 %v1288
      %1308 = vmatprep.subr.bf16.mxu0 0
      %1309 = vmatpush2.bf16.msra.mxu0 0
      %1310 = vmatprep.subr.bf16.mxu0 0
      %1311 = vmatpush2.bf16.msra.mxu0 0
      %1312 = vmatprep.subr.bf16.mxu0 0
      %1313 = vmatpush2.bf16.msra.mxu0 0
      %1314 = vmatprep.subr.bf16.mxu0 0
      %1315 = vmatpush2.bf16.msra.mxu0 0
      %1316 = vmatprep.subr.bf16.mxu0 0
      %1317 = vmatpush2.bf16.msra.mxu0 0
      %1318 = vmatprep.subr.bf16.mxu0 0
      %1319 = vmatpush2.bf16.msra.mxu0 0
      %1320 = vmatprep.subr.bf16.mxu0 0
      %1321 = vmatpush2.bf16.msra.mxu0 0
      %1322 = vmatprep.subr.bf16.mxu0 0
      %1323 = vmatpush2.bf16.msra.mxu0 0
      %1324 = vmatprep.mubr.bf16.mxu0 0
      %1325 = vmatmul.mubr.bf16.gmra.mxu0 %v522
      %v1326 = vpop.f32.mrf.mxu0
      %v1327 = vadd.f32 %v1278, %v1326
      %v1328 = vpop.f32.mrf.mxu0
      %v1329 = vpop.f32.mrf.mxu0
      %v1330 = vpop.f32.mrf.mxu0
      %1331 = vdwg.mxu0
      %v1332 = vpack.c.bf16 %v1197, %v1197
      %v1333 = vpack.c.bf16 %v1262, %v1262
      %v1335 = vsel %vm629, %v1332, 0
      %v1338 = vsel %vm629, %v1333, 0
      %1340 = vmatprep.subr.bf16.mxu0 0
      %1341 = vmatpush1.bf16.xpose.msra.mxu0 0
      %1342 = vmatprep.subr.bf16.mxu0 0
      %1343 = vmatpush1.bf16.xpose.msra.mxu0 0
      %1344 = vmatprep.subr.bf16.mxu0 0
      %1345 = vmatpush1.bf16.xpose.msra.mxu0 0
      %1346 = vmatprep.subr.bf16.mxu0 0
      %1347 = vmatpush1.bf16.xpose.msra.mxu0 0
      %1348 = vmatprep.subr.bf16.mxu0 0
      %1349 = vmatpush1.bf16.xpose.msra.mxu0 0
      %1350 = vmatprep.subr.bf16.mxu0 0
      %1351 = vmatpush1.bf16.xpose.msra.mxu0 0
      %1352 = vmatprep.subr.bf16.mxu0 0
      %1353 = vmatpush1.bf16.xpose.msra.mxu0 0
      %1354 = vmatprep.subr.bf16.mxu0 0
      %1355 = vmatpush1.bf16.xpose.msra.mxu0 %v1338
      %1356 = vmatprep.subr.bf16.mxu0 0
      %1357 = vmatpush2.bf16.xpose.msra.mxu0 0
      %1358 = vmatprep.subr.bf16.mxu0 0
      %1359 = vmatpush2.bf16.xpose.msra.mxu0 0
      %1360 = vmatprep.subr.bf16.mxu0 0
      %1361 = vmatpush2.bf16.xpose.msra.mxu0 0
      %1362 = vmatprep.subr.bf16.mxu0 0
      %1363 = vmatpush2.bf16.xpose.msra.mxu0 0
      %1364 = vmatprep.subr.bf16.mxu0 0
      %1365 = vmatpush2.bf16.xpose.msra.mxu0 0
      %1366 = vmatprep.subr.bf16.mxu0 0
      %1367 = vmatpush2.bf16.xpose.msra.mxu0 0
      %1368 = vmatprep.subr.bf16.mxu0 0
      %1369 = vmatpush2.bf16.xpose.msra.mxu0 0
      %1370 = vmatprep.subr.bf16.mxu0 0
      %1371 = vmatpush2.bf16.xpose.msra.mxu0 0
      %1372 = vmatprep.mubr.bf16.mxu0 0
      %1373 = vmatmul.mubr.bf16.gmra.mxu0 %v1335
      %v1374 = vpop.f32.mrf.mxu0
      %v1375 = vadd.f32 0.0, %v1374
      %v1376 = vpop.f32.mrf.mxu0
      %v1377 = vpop.f32.mrf.mxu0
      %v1378 = vpop.f32.mrf.mxu0
      %1379 = vdwg.mxu0
      %v1380 = vmul.f32 %v1375, 0.35355338
      %v1381 = vsel %vm629, %v1380, -inf
      %1382 = vmax.xlane.f32.xlu0 %v1381
      %v1383 = vpop.xlane.xlu0 %1382
      %v1384 = vsub.f32 %v1380, %v1383
      %v1385 = vmul.f32 %v1384, 1.442695
      %v1386 = vpow.pop %v1385
      %v1387 = vsel %vm629, %v1386, 0.0
      %1388 = vadd.xlane.f32.xlu0 %v1387
      %v1389 = vpop.xlane.xlu0 %1388
      %v1390 = vrcp.pop %v1389
      %v1391 = vmul.f32 %v1386, %v1390
      %v1392 = vpack.c.bf16 %v1391, %v1391
      %v1393 = vpack.c.bf16 %v1327, %v1327
      %v1395 = vsel %vm629, %v1392, 0
      %v1398 = vsel %vm693, %v1393, 0
      %1400 = vmatprep.subr.bf16.mxu0 0
      %1401 = vmatpush1.bf16.msra.mxu0 0
      %1402 = vmatprep.subr.bf16.mxu0 0
      %1403 = vmatpush1.bf16.msra.mxu0 0
      %1404 = vmatprep.subr.bf16.mxu0 0
      %1405 = vmatpush1.bf16.msra.mxu0 0
      %1406 = vmatprep.subr.bf16.mxu0 0
      %1407 = vmatpush1.bf16.msra.mxu0 0
      %1408 = vmatprep.subr.bf16.mxu0 0
      %1409 = vmatpush1.bf16.msra.mxu0 0
      %1410 = vmatprep.subr.bf16.mxu0 0
      %1411 = vmatpush1.bf16.msra.mxu0 0
      %1412 = vmatprep.subr.bf16.mxu0 0
      %1413 = vmatpush1.bf16.msra.mxu0 0
      %1414 = vmatprep.subr.bf16.mxu0 0
      %1415 = vmatpush1.bf16.msra.mxu0 %v1398
      %1416 = vmatprep.subr.bf16.mxu0 0
      %1417 = vmatpush2.bf16.msra.mxu0 0
      %1418 = vmatprep.subr.bf16.mxu0 0
      %1419 = vmatpush2.bf16.msra.mxu0 0
      %1420 = vmatprep.subr.bf16.mxu0 0
      %1421 = vmatpush2.bf16.msra.mxu0 0
      %1422 = vmatprep.subr.bf16.mxu0 0
      %1423 = vmatpush2.bf16.msra.mxu0 0
      %1424 = vmatprep.subr.bf16.mxu0 0
      %1425 = vmatpush2.bf16.msra.mxu0 0
      %1426 = vmatprep.subr.bf16.mxu0 0
      %1427 = vmatpush2.bf16.msra.mxu0 0
      %1428 = vmatprep.subr.bf16.mxu0 0
      %1429 = vmatpush2.bf16.msra.mxu0 0
      %1430 = vmatprep.subr.bf16.mxu0 0
      %1431 = vmatpush2.bf16.msra.mxu0 0
      %1432 = vmatprep.mubr.bf16.mxu0 0
      %1433 = vmatmul.mubr.bf16.gmra.mxu0 %v1395
      %v1434 = vpop.f32.mrf.mxu0
      %v1435 = vadd.f32 0.0, %v1434
      %v1436 = vpop.f32.mrf.mxu0
      %v1437 = vpop.f32.mrf.mxu0
      %v1438 = vpop.f32.mrf.mxu0
      %1439 = vdwg.mxu0
      %v1440 = vpack.c.bf16 %v1435, %v1435
      %s1441 = scalar_lea.vmem %s8, 8
      %v1442 = vld [vmem:[%s1441] sm:$0xf]
      %v1444 = vsel %vm629, %v1440, 0
      %v1447 = vsel %vm693, %v1442, 0
      %1449 = vmatprep.subr.bf16.mxu0 0
      %1450 = vmatpush1.bf16.msra.mxu0 0
      %1451 = vmatprep.subr.bf16.mxu0 0
      %1452 = vmatpush1.bf16.msra.mxu0 0
      %1453 = vmatprep.subr.bf16.mxu0 0
      %1454 = vmatpush1.bf16.msra.mxu0 0
      %1455 = vmatprep.subr.bf16.mxu0 0
      %1456 = vmatpush1.bf16.msra.mxu0 0
      %1457 = vmatprep.subr.bf16.mxu0 0
      %1458 = vmatpush1.bf16.msra.mxu0 0
      %1459 = vmatprep.subr.bf16.mxu0 0
      %1460 = vmatpush1.bf16.msra.mxu0 0
      %1461 = vmatprep.subr.bf16.mxu0 0
      %1462 = vmatpush1.bf16.msra.mxu0 0
      %1463 = vmatprep.subr.bf16.mxu0 0
      %1464 = vmatpush1.bf16.msra.mxu0 %v1447
      %1465 = vmatprep.subr.bf16.mxu0 0
      %1466 = vmatpush2.bf16.msra.mxu0 0
      %1467 = vmatprep.subr.bf16.mxu0 0
      %1468 = vmatpush2.bf16.msra.mxu0 0
      %1469 = vmatprep.subr.bf16.mxu0 0
      %1470 = vmatpush2.bf16.msra.mxu0 0
      %1471 = vmatprep.subr.bf16.mxu0 0
      %1472 = vmatpush2.bf16.msra.mxu0 0
      %1473 = vmatprep.subr.bf16.mxu0 0
      %1474 = vmatpush2.bf16.msra.mxu0 0
      %1475 = vmatprep.subr.bf16.mxu0 0
      %1476 = vmatpush2.bf16.msra.mxu0 0
      %1477 = vmatprep.subr.bf16.mxu0 0
      %1478 = vmatpush2.bf16.msra.mxu0 0
      %1479 = vmatprep.subr.bf16.mxu0 0
      %1480 = vmatpush2.bf16.msra.mxu0 0
      %1481 = vmatprep.mubr.bf16.mxu0 0
      %1482 = vmatmul.mubr.bf16.gmra.mxu0 %v1444
      %v1483 = vpop.f32.mrf.mxu0
      %v1484 = vadd.f32 0.0, %v1483
      %v1485 = vpop.f32.mrf.mxu0
      %v1486 = vpop.f32.mrf.mxu0
      %v1487 = vpop.f32.mrf.mxu0
      %1488 = vdwg.mxu0
      %v1489 = vadd.f32 %v1132, %v1484
      %s1490 = scalar_lea.vmem %s2, 48
      %v1491 = vld [vmem:[%s1490] sm:$0xf]
      %v1492 = vld [vmem:[%s1490 + $0x4] sm:$0xf]
      %v1493 = vld [vmem:[%s1490 + $0x8] sm:$0xf]
      %v1494 = vld [vmem:[%s1490 + $0xc] sm:$0xf]
      %s1495 = scalar_lea.vmem %s3, 3
      %v1496 = vld [vmem:[%s1495] sm:$0x1]
      %v1498 = vlaneseq
      %v1499 = vshrl.u32 %v1498, 7
      %v1500 = vsub.s32 0, %v1499
      %v1501 = vrot.slane %v1496, %v1500
      %v1507 = vunpack.c.l.b16 %v1491
      %v1508 = vunpack.c.l.b16 %v1492
      %v1509 = vunpack.c.l.b16 %v1493
      %v1510 = vunpack.c.l.b16 %v1494
      %v1511 = vpack.c.b16 %v1508, %v1507
      %v1512 = vpack.c.b16 %v1510, %v1509
      %1515 = vmatprep.subr.bf16.mxu0 0
      %1516 = vmatpush1.bf16.msra.mxu0 0
      %1517 = vmatprep.subr.bf16.mxu0 0
      %1518 = vmatpush1.bf16.msra.mxu0 0
      %1519 = vmatprep.subr.bf16.mxu0 0
      %1520 = vmatpush1.bf16.msra.mxu0 0
      %1521 = vmatprep.subr.bf16.mxu0 0
      %1522 = vmatpush1.bf16.msra.mxu0 0
      %1523 = vmatprep.subr.bf16.mxu0 0
      %1524 = vmatpush1.bf16.msra.mxu0 0
      %1525 = vmatprep.subr.bf16.mxu0 0
      %1526 = vmatpush1.bf16.msra.mxu0 0
      %1527 = vmatprep.subr.bf16.mxu0 0
      %1528 = vmatpush1.bf16.msra.mxu0 %v1512
      %1529 = vmatprep.subr.bf16.mxu0 0
      %1530 = vmatpush1.bf16.msra.mxu0 %v1511
      %1531 = vmatprep.subr.bf16.mxu0 0
      %1532 = vmatpush2.bf16.msra.mxu0 0
      %1533 = vmatprep.subr.bf16.mxu0 0
      %1534 = vmatpush2.bf16.msra.mxu0 0
      %1535 = vmatprep.subr.bf16.mxu0 0
      %1536 = vmatpush2.bf16.msra.mxu0 0
      %1537 = vmatprep.subr.bf16.mxu0 0
      %1538 = vmatpush2.bf16.msra.mxu0 0
      %1539 = vmatprep.subr.bf16.mxu0 0
      %1540 = vmatpush2.bf16.msra.mxu0 0
      %1541 = vmatprep.subr.bf16.mxu0 0
      %1542 = vmatpush2.bf16.msra.mxu0 0
      %1543 = vmatprep.subr.bf16.mxu0 0
      %1544 = vmatpush2.bf16.msra.mxu0 0
      %1545 = vmatprep.subr.bf16.mxu0 0
      %1546 = vmatpush2.bf16.msra.mxu0 0
      %1547 = vmatprep.mubr.bf16.mxu0 0
      %1548 = vmatmul.mubr.bf16.gmra.mxu0 %v456
      %v1549 = vpop.f32.mrf.mxu0
      %v1550 = vadd.f32 %v1501, %v1549
      %v1551 = vpop.f32.mrf.mxu0
      %v1552 = vpop.f32.mrf.mxu0
      %v1553 = vpop.f32.mrf.mxu0
      %1554 = vdwg.mxu0
      %s1555 = scalar_lea.vmem %s4, 48
      %v1556 = vld [vmem:[%s1555] sm:$0xf]
      %v1557 = vld [vmem:[%s1555 + $0x4] sm:$0xf]
      %v1558 = vld [vmem:[%s1555 + $0x8] sm:$0xf]
      %v1559 = vld [vmem:[%s1555 + $0xc] sm:$0xf]
      %s1560 = scalar_lea.vmem %s5, 3
      %v1561 = vld [vmem:[%s1560] sm:$0x1]
      %v1563 = vlaneseq
      %v1564 = vshrl.u32 %v1563, 7
      %v1565 = vsub.s32 0, %v1564
      %v1566 = vrot.slane %v1561, %v1565
      %v1572 = vunpack.c.l.b16 %v1556
      %v1573 = vunpack.c.l.b16 %v1557
      %v1574 = vunpack.c.l.b16 %v1558
      %v1575 = vunpack.c.l.b16 %v1559
      %v1576 = vpack.c.b16 %v1573, %v1572
      %v1577 = vpack.c.b16 %v1575, %v1574
      %1580 = vmatprep.subr.bf16.mxu0 0
      %1581 = vmatpush1.bf16.msra.mxu0 0
      %1582 = vmatprep.subr.bf16.mxu0 0
      %1583 = vmatpush1.bf16.msra.mxu0 0
      %1584 = vmatprep.subr.bf16.mxu0 0
      %1585 = vmatpush1.bf16.msra.mxu0 0
      %1586 = vmatprep.subr.bf16.mxu0 0
      %1587 = vmatpush1.bf16.msra.mxu0 0
      %1588 = vmatprep.subr.bf16.mxu0 0
      %1589 = vmatpush1.bf16.msra.mxu0 0
      %1590 = vmatprep.subr.bf16.mxu0 0
      %1591 = vmatpush1.bf16.msra.mxu0 0
      %1592 = vmatprep.subr.bf16.mxu0 0
      %1593 = vmatpush1.bf16.msra.mxu0 %v1577
      %1594 = vmatprep.subr.bf16.mxu0 0
      %1595 = vmatpush1.bf16.msra.mxu0 %v1576
      %1596 = vmatprep.subr.bf16.mxu0 0
      %1597 = vmatpush2.bf16.msra.mxu0 0
      %1598 = vmatprep.subr.bf16.mxu0 0
      %1599 = vmatpush2.bf16.msra.mxu0 0
      %1600 = vmatprep.subr.bf16.mxu0 0
      %1601 = vmatpush2.bf16.msra.mxu0 0
      %1602 = vmatprep.subr.bf16.mxu0 0
      %1603 = vmatpush2.bf16.msra.mxu0 0
      %1604 = vmatprep.subr.bf16.mxu0 0
      %1605 = vmatpush2.bf16.msra.mxu0 0
      %1606 = vmatprep.subr.bf16.mxu0 0
      %1607 = vmatpush2.bf16.msra.mxu0 0
      %1608 = vmatprep.subr.bf16.mxu0 0
      %1609 = vmatpush2.bf16.msra.mxu0 0
      %1610 = vmatprep.subr.bf16.mxu0 0
      %1611 = vmatpush2.bf16.msra.mxu0 0
      %1612 = vmatprep.mubr.bf16.mxu0 0
      %1613 = vmatmul.mubr.bf16.gmra.mxu0 %v522
      %v1614 = vpop.f32.mrf.mxu0
      %v1615 = vadd.f32 %v1566, %v1614
      %v1616 = vpop.f32.mrf.mxu0
      %v1617 = vpop.f32.mrf.mxu0
      %v1618 = vpop.f32.mrf.mxu0
      %1619 = vdwg.mxu0
      %s1620 = scalar_lea.vmem %s6, 48
      %v1621 = vld [vmem:[%s1620] sm:$0xf]
      %v1622 = vld [vmem:[%s1620 + $0x4] sm:$0xf]
      %v1623 = vld [vmem:[%s1620 + $0x8] sm:$0xf]
      %v1624 = vld [vmem:[%s1620 + $0xc] sm:$0xf]
      %s1625 = scalar_lea.vmem %s7, 3
      %v1626 = vld [vmem:[%s1625] sm:$0x1]
      %v1628 = vlaneseq
      %v1629 = vshrl.u32 %v1628, 7
      %v1630 = vsub.s32 0, %v1629
      %v1631 = vrot.slane %v1626, %v1630
      %v1637 = vunpack.c.l.b16 %v1621
      %v1638 = vunpack.c.l.b16 %v1622
      %v1639 = vunpack.c.l.b16 %v1623
      %v1640 = vunpack.c.l.b16 %v1624
      %v1641 = vpack.c.b16 %v1638, %v1637
      %v1642 = vpack.c.b16 %v1640, %v1639
      %1645 = vmatprep.subr.bf16.mxu0 0
      %1646 = vmatpush1.bf16.msra.mxu0 0
      %1647 = vmatprep.subr.bf16.mxu0 0
      %1648 = vmatpush1.bf16.msra.mxu0 0
      %1649 = vmatprep.subr.bf16.mxu0 0
      %1650 = vmatpush1.bf16.msra.mxu0 0
      %1651 = vmatprep.subr.bf16.mxu0 0
      %1652 = vmatpush1.bf16.msra.mxu0 0
      %1653 = vmatprep.subr.bf16.mxu0 0
      %1654 = vmatpush1.bf16.msra.mxu0 0
      %1655 = vmatprep.subr.bf16.mxu0 0
      %1656 = vmatpush1.bf16.msra.mxu0 0
      %1657 = vmatprep.subr.bf16.mxu0 0
      %1658 = vmatpush1.bf16.msra.mxu0 %v1642
      %1659 = vmatprep.subr.bf16.mxu0 0
      %1660 = vmatpush1.bf16.msra.mxu0 %v1641
      %1661 = vmatprep.subr.bf16.mxu0 0
      %1662 = vmatpush2.bf16.msra.mxu0 0
      %1663 = vmatprep.subr.bf16.mxu0 0
      %1664 = vmatpush2.bf16.msra.mxu0 0
      %1665 = vmatprep.subr.bf16.mxu0 0
      %1666 = vmatpush2.bf16.msra.mxu0 0
      %1667 = vmatprep.subr.bf16.mxu0 0
      %1668 = vmatpush2.bf16.msra.mxu0 0
      %1669 = vmatprep.subr.bf16.mxu0 0
      %1670 = vmatpush2.bf16.msra.mxu0 0
      %1671 = vmatprep.subr.bf16.mxu0 0
      %1672 = vmatpush2.bf16.msra.mxu0 0
      %1673 = vmatprep.subr.bf16.mxu0 0
      %1674 = vmatpush2.bf16.msra.mxu0 0
      %1675 = vmatprep.subr.bf16.mxu0 0
      %1676 = vmatpush2.bf16.msra.mxu0 0
      %1677 = vmatprep.mubr.bf16.mxu0 0
      %1678 = vmatmul.mubr.bf16.gmra.mxu0 %v522
      %v1679 = vpop.f32.mrf.mxu0
      %v1680 = vadd.f32 %v1631, %v1679
      %v1681 = vpop.f32.mrf.mxu0
      %v1682 = vpop.f32.mrf.mxu0
      %v1683 = vpop.f32.mrf.mxu0
      %1684 = vdwg.mxu0
      %v1685 = vpack.c.bf16 %v1550, %v1550
      %v1686 = vpack.c.bf16 %v1615, %v1615
      %v1688 = vsel %vm629, %v1685, 0
      %v1691 = vsel %vm629, %v1686, 0
      %1693 = vmatprep.subr.bf16.mxu0 0
      %1694 = vmatpush1.bf16.xpose.msra.mxu0 0
      %1695 = vmatprep.subr.bf16.mxu0 0
      %1696 = vmatpush1.bf16.xpose.msra.mxu0 0
      %1697 = vmatprep.subr.bf16.mxu0 0
      %1698 = vmatpush1.bf16.xpose.msra.mxu0 0
      %1699 = vmatprep.subr.bf16.mxu0 0
      %1700 = vmatpush1.bf16.xpose.msra.mxu0 0
      %1701 = vmatprep.subr.bf16.mxu0 0
      %1702 = vmatpush1.bf16.xpose.msra.mxu0 0
      %1703 = vmatprep.subr.bf16.mxu0 0
      %1704 = vmatpush1.bf16.xpose.msra.mxu0 0
      %1705 = vmatprep.subr.bf16.mxu0 0
      %1706 = vmatpush1.bf16.xpose.msra.mxu0 0
      %1707 = vmatprep.subr.bf16.mxu0 0
      %1708 = vmatpush1.bf16.xpose.msra.mxu0 %v1691
      %1709 = vmatprep.subr.bf16.mxu0 0
      %1710 = vmatpush2.bf16.xpose.msra.mxu0 0
      %1711 = vmatprep.subr.bf16.mxu0 0
      %1712 = vmatpush2.bf16.xpose.msra.mxu0 0
      %1713 = vmatprep.subr.bf16.mxu0 0
      %1714 = vmatpush2.bf16.xpose.msra.mxu0 0
      %1715 = vmatprep.subr.bf16.mxu0 0
      %1716 = vmatpush2.bf16.xpose.msra.mxu0 0
      %1717 = vmatprep.subr.bf16.mxu0 0
      %1718 = vmatpush2.bf16.xpose.msra.mxu0 0
      %1719 = vmatprep.subr.bf16.mxu0 0
      %1720 = vmatpush2.bf16.xpose.msra.mxu0 0
      %1721 = vmatprep.subr.bf16.mxu0 0
      %1722 = vmatpush2.bf16.xpose.msra.mxu0 0
      %1723 = vmatprep.subr.bf16.mxu0 0
      %1724 = vmatpush2.bf16.xpose.msra.mxu0 0
      %1725 = vmatprep.mubr.bf16.mxu0 0
      %1726 = vmatmul.mubr.bf16.gmra.mxu0 %v1688
      %v1727 = vpop.f32.mrf.mxu0
      %v1728 = vadd.f32 0.0, %v1727
      %v1729 = vpop.f32.mrf.mxu0
      %v1730 = vpop.f32.mrf.mxu0
      %v1731 = vpop.f32.mrf.mxu0
      %1732 = vdwg.mxu0
      %v1733 = vmul.f32 %v1728, 0.35355338
      %v1734 = vsel %vm629, %v1733, -inf
      %1735 = vmax.xlane.f32.xlu0 %v1734
      %v1736 = vpop.xlane.xlu0 %1735
      %v1737 = vsub.f32 %v1733, %v1736
      %v1738 = vmul.f32 %v1737, 1.442695
      %v1739 = vpow.pop %v1738
      %v1740 = vsel %vm629, %v1739, 0.0
      %1741 = vadd.xlane.f32.xlu0 %v1740
      %v1742 = vpop.xlane.xlu0 %1741
      %v1743 = vrcp.pop %v1742
      %v1744 = vmul.f32 %v1739, %v1743
      %v1745 = vpack.c.bf16 %v1744, %v1744
      %v1746 = vpack.c.bf16 %v1680, %v1680
      %v1748 = vsel %vm629, %v1745, 0
      %v1751 = vsel %vm693, %v1746, 0
      %1753 = vmatprep.subr.bf16.mxu0 0
      %1754 = vmatpush1.bf16.msra.mxu0 0
      %1755 = vmatprep.subr.bf16.mxu0 0
      %1756 = vmatpush1.bf16.msra.mxu0 0
      %1757 = vmatprep.subr.bf16.mxu0 0
      %1758 = vmatpush1.bf16.msra.mxu0 0
      %1759 = vmatprep.subr.bf16.mxu0 0
      %1760 = vmatpush1.bf16.msra.mxu0 0
      %1761 = vmatprep.subr.bf16.mxu0 0
      %1762 = vmatpush1.bf16.msra.mxu0 0
      %1763 = vmatprep.subr.bf16.mxu0 0
      %1764 = vmatpush1.bf16.msra.mxu0 0
      %1765 = vmatprep.subr.bf16.mxu0 0
      %1766 = vmatpush1.bf16.msra.mxu0 0
      %1767 = vmatprep.subr.bf16.mxu0 0
      %1768 = vmatpush1.bf16.msra.mxu0 %v1751
      %1769 = vmatprep.subr.bf16.mxu0 0
      %1770 = vmatpush2.bf16.msra.mxu0 0
      %1771 = vmatprep.subr.bf16.mxu0 0
      %1772 = vmatpush2.bf16.msra.mxu0 0
      %1773 = vmatprep.subr.bf16.mxu0 0
      %1774 = vmatpush2.bf16.msra.mxu0 0
      %1775 = vmatprep.subr.bf16.mxu0 0
      %1776 = vmatpush2.bf16.msra.mxu0 0
      %1777 = vmatprep.subr.bf16.mxu0 0
      %1778 = vmatpush2.bf16.msra.mxu0 0
      %1779 = vmatprep.subr.bf16.mxu0 0
      %1780 = vmatpush2.bf16.msra.mxu0 0
      %1781 = vmatprep.subr.bf16.mxu0 0
      %1782 = vmatpush2.bf16.msra.mxu0 0
      %1783 = vmatprep.subr.bf16.mxu0 0
      %1784 = vmatpush2.bf16.msra.mxu0 0
      %1785 = vmatprep.mubr.bf16.mxu0 0
      %1786 = vmatmul.mubr.bf16.gmra.mxu0 %v1748
      %v1787 = vpop.f32.mrf.mxu0
      %v1788 = vadd.f32 0.0, %v1787
      %v1789 = vpop.f32.mrf.mxu0
      %v1790 = vpop.f32.mrf.mxu0
      %v1791 = vpop.f32.mrf.mxu0
      %1792 = vdwg.mxu0
      %v1793 = vpack.c.bf16 %v1788, %v1788
      %s1794 = scalar_lea.vmem %s8, 12
      %v1795 = vld [vmem:[%s1794] sm:$0xf]
      %v1797 = vsel %vm629, %v1793, 0
      %v1800 = vsel %vm693, %v1795, 0
      %1802 = vmatprep.subr.bf16.mxu0 0
      %1803 = vmatpush1.bf16.msra.mxu0 0
      %1804 = vmatprep.subr.bf16.mxu0 0
      %1805 = vmatpush1.bf16.msra.mxu0 0
      %1806 = vmatprep.subr.bf16.mxu0 0
      %1807 = vmatpush1.bf16.msra.mxu0 0
      %1808 = vmatprep.subr.bf16.mxu0 0
      %1809 = vmatpush1.bf16.msra.mxu0 0
      %1810 = vmatprep.subr.bf16.mxu0 0
      %1811 = vmatpush1.bf16.msra.mxu0 0
      %1812 = vmatprep.subr.bf16.mxu0 0
      %1813 = vmatpush1.bf16.msra.mxu0 0
      %1814 = vmatprep.subr.bf16.mxu0 0
      %1815 = vmatpush1.bf16.msra.mxu0 0
      %1816 = vmatprep.subr.bf16.mxu0 0
      %1817 = vmatpush1.bf16.msra.mxu0 %v1800
      %1818 = vmatprep.subr.bf16.mxu0 0
      %1819 = vmatpush2.bf16.msra.mxu0 0
      %1820 = vmatprep.subr.bf16.mxu0 0
      %1821 = vmatpush2.bf16.msra.mxu0 0
      %1822 = vmatprep.subr.bf16.mxu0 0
      %1823 = vmatpush2.bf16.msra.mxu0 0
      %1824 = vmatprep.subr.bf16.mxu0 0
      %1825 = vmatpush2.bf16.msra.mxu0 0
      %1826 = vmatprep.subr.bf16.mxu0 0
      %1827 = vmatpush2.bf16.msra.mxu0 0
      %1828 = vmatprep.subr.bf16.mxu0 0
      %1829 = vmatpush2.bf16.msra.mxu0 0
      %1830 = vmatprep.subr.bf16.mxu0 0
      %1831 = vmatpush2.bf16.msra.mxu0 0
      %1832 = vmatprep.subr.bf16.mxu0 0
      %1833 = vmatpush2.bf16.msra.mxu0 0
      %1834 = vmatprep.mubr.bf16.mxu0 0
      %1835 = vmatmul.mubr.bf16.gmra.mxu0 %v1797
      %v1836 = vpop.f32.mrf.mxu0
      %v1837 = vadd.f32 0.0, %v1836
      %v1838 = vpop.f32.mrf.mxu0
      %v1839 = vpop.f32.mrf.mxu0
      %v1840 = vpop.f32.mrf.mxu0
      %1841 = vdwg.mxu0
      %v1842 = vadd.f32 %v1489, %v1837
      %v1843 = vadd.f32 %v427, %v1842
      %v1844 = vld [vmem:[%s9] sm:$0x1]
      %v1846 = vlaneseq
      %v1847 = vshrl.u32 %v1846, 7
      %v1848 = vsub.s32 0, %v1847
      %v1849 = vrot.slane %v1844, %v1848
      %v1851 = vadd.f32 %v1843, %v1849
      %v1852 = vsel %vm454, %v1851, 0.0
      %1853 = vadd.xlane.f32.xlu0 %v1852
      %v1854 = vpop.xlane.xlu0 %1853
      %v1855 = vrcp.pop 32.0
      %v1856 = vmul.f32 %v1854, %v1855
      %v1857 = vsub.f32 %v1851, %v1856
      %v1858 = vmul.f32 %v1857, %v1857
      %v1859 = vsel %vm454, %v1858, 0.0
      %1860 = vadd.xlane.f32.xlu0 %v1859
      %v1861 = vpop.xlane.xlu0 %1860
      %v1862 = vmul.f32 %v1861, %v1855
      %v1863 = vadd.f32 %v1862, 1e-05
      %v1864 = vrsqrt.pop %v1863
      %v1865 = vmul.f32 %v1857, %v1864
      %v1866 = vld [vmem:[%s10] sm:$0x1]
      %v1868 = vlaneseq
      %v1869 = vshrl.u32 %v1868, 7
      %v1870 = vsub.s32 0, %v1869
      %v1871 = vrot.slane %v1866, %v1870
      %v1873 = vmul.f32 %v1865, %v1871
      %v1874 = vld [vmem:[%s11] sm:$0x1]
      %v1876 = vlaneseq
      %v1877 = vshrl.u32 %v1876, 7
      %v1878 = vsub.s32 0, %v1877
      %v1879 = vrot.slane %v1874, %v1878
      %v1881 = vadd.f32 %v1873, %v1879
      %1882 = vst.msk [vmem:[%s425] sm:$0xff] %vm454, %v1881
      %p1883 = scmp.lt.s32.totalorder %s23, 1
      %s1884 = scalar_select %p1883, %s23, 1
      %s1885 = smul.addr %s1884, 8
      %s1886 = scalar_lea.vmem %s12, %s1885
      // Predicated region
      $region69: #{transformer_forward.13} parent=67 // pred_check
        %p1887 = pneg %p303
      $region70: #{transformer_forward.13} parent=67 // pred_check_branch
        %1889 = sbr.rel (%p1887) target = $region72
      $region71: #{transformer_forward.13} parent=67 // pred_region
        _
      $region72: #{transformer_forward.13} parent=67 // pred_fallthru
        _
    $region68: #{transformer_forward.13} parent=5 // pred_fallthru
      _
    %p1890 = scmp.le.s32.totalorder 2, %s18
    // Predicated region
    $region73: #{transformer_forward.13} parent=5 // pred_check
      %p1891 = pneg %p1890
    $region74: #{transformer_forward.13} parent=5 // pred_check_branch
      %1893 = sbr.rel (%p1891) target = $region76
    $region75: #{transformer_forward.13} parent=5 // pred_region
      %s1894 = ssub.s32 %s18, 2
      // Predicated region
      $region77: #{transformer_forward.13} parent=75 // pred_check
        %p1895 = pneg %p309
      $region78: #{transformer_forward.13} parent=75 // pred_check_branch
        %1897 = sbr.rel (%p1895) target = $region80
      $region79: #{transformer_forward.13} parent=75 // pred_region
        %p1898 = scmp.lt.s32.totalorder %s24, 1
        %s1899 = scalar_select %p1898, %s24, 1
        %s1900 = smul.addr %s1899, 8
        %s1901 = scalar_lea.vmem %s12, %s1900
      $region80: #{transformer_forward.13} parent=75 // pred_fallthru
        _
    $region76: #{transformer_forward.13} parent=5 // pred_fallthru
      _
  $region6: #{transformer_forward.13} parent=0 // loop_footer
    %s22 = sadd.s32 1, %s18
  $region7: #{transformer_forward.13} parent=0 // loop_footer_branch
    %17 = sbr.rel target = $region3
  $region8: #{transformer_forward.13} parent=0 // loop_exit
    _

</llo_original>
